<compile_context>
chip_gen: v7x
topology: tpu7x:2x2x1
jax: 0.10.0
libtpu: 0.0.40
codegen_flags: <defaults>
</compile_context>

<pallas_src>
import jax
import jax.numpy as jnp
from jax.experimental import pallas as pl
from jax.experimental.pallas import tpu as pltpu

LANE = 128  # lane-dense padding width for the 1-wide Q output


# ----------------------------------------------------------------------------
# Fused kernel: wavefront 2-layer LSTM + Linear(H,256)+ReLU + Linear(256,1)
# ----------------------------------------------------------------------------
def _lstm_q_fused_kernel(x_ref, wih0_ref, b0_ref, wfused_ref, b1_ref,
                         wfc_ref, bfc_ref, wout_ref, bout_ref,
                         q_ref, y_scr):
    T, BB, D = x_ref.shape
    H = wfused_ref.shape[0] // 2
    f32 = jnp.float32
    bf16 = jnp.bfloat16

    def cell(g, c):
        # permuted gate order [i, f, o, g]: one contiguous sigmoid + one tanh (EUP)
        sg = jax.nn.sigmoid(g[:, :3 * H])
        i_g = sg[:, 0 * H:1 * H]
        f_g = sg[:, 1 * H:2 * H]
        o_g = sg[:, 2 * H:3 * H]
        g_g = jnp.tanh(g[:, 3 * H:])
        c_new = f_g * c + i_g * g_g
        h_new = o_g * jnp.tanh(c_new)
        return h_new, c_new

    # Hoisted layer-0 input projection, time-major: per-step reads are tile-aligned.
    x2d = x_ref[...].reshape(T * BB, D).astype(bf16)
    gin0 = (jnp.dot(x2d, wih0_ref[...], preferred_element_type=f32)
            + b0_ref[...])                                        # (T*BB, 4H) f32

    b1 = b1_ref[...]
    wfused = wfused_ref[...]                                      # (2H, 8H) bf16

    zeros = jnp.zeros((BB, H), f32)
    h0, c0 = cell(gin0[0:BB, :], zeros)                           # layer-0 step 0
    h1, c1 = zeros, zeros

    # Wavefront: step s = layer-0 step s + layer-1 step s-1, ONE fused matmul (K=2H).
    # T is small & static -> full Python unroll (LLO visibility, no per-step launch).
    for s in range(1, T + 1):
        lhs = jnp.concatenate([h0, h1], axis=1).astype(bf16)       # (BB, 2H)
        fused = jnp.dot(lhs, wfused, preferred_element_type=f32)   # (BB, 8H)
        # layer-1 step s-1:  h0_{s-1} @ Wih1 + h1_{s-2} @ Whh1 + b1
        h1, c1 = cell(fused[:, 4 * H:] + b1, c1)
        y_scr[(s - 1) * BB:s * BB, :] = h1                         # tile-aligned write
        if s < T:
            # layer-0 step s:  x_s @ Wih0 + b0 (hoisted) + h0_{s-1} @ Whh0
            h0, c0 = cell(gin0[s * BB:(s + 1) * BB, :] + fused[:, :4 * H], c0)

    # Head: Linear(H,256)+ReLU then Linear(256,1) padded to a lane-dense 128 slab.
    y = y_scr[...].astype(bf16)                                    # (T*BB, H)
    hdn = jnp.maximum(
        jnp.dot(y, wfc_ref[...], preferred_element_type=f32) + bfc_ref[...], 0.0)
    out = (jnp.dot(hdn.astype(bf16), wout_ref[...], preferred_element_type=f32)
           + bout_ref[...])                                        # (T*BB, LANE)
    q_ref[...] = out.reshape(T, BB, LANE)


# ----------------------------------------------------------------------------
# Wrapper
# ----------------------------------------------------------------------------
def lstm_q_forward(obs, act, params, *, batch_block=8):
    """obs: (B, T, obs_dim), act: (B, T, act_dim) -> q: (B, T, 1)."""
    B, T, obs_dim = obs.shape
    act_dim = act.shape[-1]
    D = obs_dim + act_dim
    H = params["whh0"].shape[0]
    FC = params["w_fc"].shape[1]
    assert B % batch_block == 0 and batch_block % 8 == 0

    bf16 = jnp.bfloat16
    f32 = jnp.float32

    def perm(w):  # gate columns [i, f, g, o] -> [i, f, o, g]
        i, f, g, o = jnp.split(w, 4, axis=-1)
        return jnp.concatenate([i, f, o, g], axis=-1)

    wih0 = perm(params["wih0"]).astype(bf16)                       # (D, 4H)
    b0 = perm(params["b0"]).reshape(1, 4 * H).astype(f32)
    b1 = perm(params["b1"]).reshape(1, 4 * H).astype(f32)

    # Block RHS for the wavefront fusion:
    #   [[Whh0, Wih1],
    #    [  0 , Whh1]]   (zero block sits under Whh0's column block)
    wfused = jnp.zeros((2 * H, 8 * H), f32)
    wfused = wfused.at[:H, :4 * H].set(perm(params["whh0"]))
    wfused = wfused.at[:H, 4 * H:].set(perm(params["wih1"]))
    wfused = wfused.at[H:, 4 * H:].set(perm(params["whh1"]))
    wfused = wfused.astype(bf16)

    w_fc = params["w_fc"].astype(bf16)
    b_fc = params["b_fc"].reshape(1, FC).astype(f32)
    w_out = jnp.zeros((FC, LANE), f32).at[:, :1].set(params["w_out"]).astype(bf16)
    b_out = jnp.zeros((1, LANE), f32).at[:, :1].set(params["b_out"].reshape(1, 1))

    # Pre-concatenated, time-major input (T, B, D): single layer-0 input matmul,
    # tile-aligned per-step gate reads, batch-block gridding along dim 1.
    x = jnp.concatenate([obs, act], axis=-1).transpose(1, 0, 2)

    full = lambda shape: pl.BlockSpec(shape, lambda i: (0, 0))
    q_pad = pl.pallas_call(
        _lstm_q_fused_kernel,
        out_shape=jax.ShapeDtypeStruct((T, B, LANE), jnp.float32),
        grid=(B // batch_block,),
        in_specs=[
            pl.BlockSpec((T, batch_block, D), lambda i: (0, i, 0)),   # x
            full((D, 4 * H)),        # wih0
            full((1, 4 * H)),        # b0
            full((2 * H, 8 * H)),    # fused block RHS
            full((1, 4 * H)),        # b1
            full((H, FC)),           # w_fc
            full((1, FC)),           # b_fc
            full((FC, LANE)),        # w_out (lane padded)
            full((1, LANE)),         # b_out (lane padded)
        ],
        out_specs=pl.BlockSpec((T, batch_block, LANE), lambda i: (0, i, 0)),
        scratch_shapes=[pltpu.VMEM((T * batch_block, H), jnp.float32)],
        compiler_params=pltpu.CompilerParams(
            dimension_semantics=("parallel",)),   # v7x: 2 TCs split the batch grid
    )(x, wih0, b0, wfused, b1, w_fc, b_fc, w_out, b_out)

    return q_pad[:, :, :1].transpose(1, 0, 2)     # (B, T, 1)


# ----------------------------------------------------------------------------
# Pure-JAX reference (full f32 precision, PyTorch gate order) for correctness
# ----------------------------------------------------------------------------
def lstm_q_reference(obs, act, params):
    HP = jax.lax.Precision.HIGHEST
    x = jnp.concatenate([obs, act], axis=-1)
    B, T, _ = x.shape
    for layer in (0, 1):
        wih = params[f"wih{layer}"]
        whh = params[f"whh{layer}"]
        b = params[f"b{layer}"]
        H = whh.shape[0]
        h = jnp.zeros((B, H), jnp.float32)
        c = jnp.zeros((B, H), jnp.float32)
        ys = []
        for t in range(T):
            g = (jnp.dot(x[:, t, :], wih, precision=HP)
                 + jnp.dot(h, whh, precision=HP) + b)
            i_g = jax.nn.sigmoid(g[:, :H])
            f_g = jax.nn.sigmoid(g[:, H:2 * H])
            g_g = jnp.tanh(g[:, 2 * H:3 * H])
            o_g = jax.nn.sigmoid(g[:, 3 * H:])
            c = f_g * c + i_g * g_g
            h = o_g * jnp.tanh(c)
            ys.append(h)
        x = jnp.stack(ys, axis=1)
    flat = x.reshape(B * T, -1)
    hdn = jnp.maximum(jnp.dot(flat, params["w_fc"], precision=HP) + params["b_fc"], 0.0)
    out = jnp.dot(hdn, params["w_out"], precision=HP) + params["b_out"]
    return out.reshape(B, T, 1)


def init_params(key, obs_dim, act_dim, H, fc_hidden):
    def u(k, shape, scale):
        return jax.random.uniform(k, shape, jnp.float32, -scale, scale)

    D = obs_dim + act_dim
    k_l = 1.0 / (H ** 0.5)
    keys = jax.random.split(key, 12)
    params = {
        "wih0": u(keys[0], (D, 4 * H), k_l),
        "whh0": u(keys[1], (H, 4 * H), k_l),
        "b0": u(keys[2], (4 * H,), k_l) + u(keys[3], (4 * H,), k_l),   # b_ih + b_hh
        "wih1": u(keys[4], (H, 4 * H), k_l),
        "whh1": u(keys[5], (H, 4 * H), k_l),
        "b1": u(keys[6], (4 * H,), k_l) + u(keys[7], (4 * H,), k_l),
    }
    k_fc = 1.0 / (H ** 0.5)
    params["w_fc"] = u(keys[8], (H, fc_hidden), k_fc)
    params["b_fc"] = u(keys[9], (fc_hidden,), k_fc)
    k_out = 1.0 / (fc_hidden ** 0.5)
    params["w_out"] = u(keys[10], (fc_hidden, 1), k_out)
    params["b_out"] = u(keys[11], (1,), k_out)
    return params


if __name__ == "__main__":
    # B >= 8 per batch block (sublane occupancy); B=16 exercises the parallel grid.
    B, T = 16, 8
    OBS_DIM, ACT_DIM = 16, 4
    LSTM_HIDDEN, FC_HIDDEN = 128, 256

    key = jax.random.PRNGKey(0)
    kp, ko, ka = jax.random.split(key, 3)
    params = init_params(kp, OBS_DIM, ACT_DIM, LSTM_HIDDEN, FC_HIDDEN)
    obs = jax.random.normal(ko, (B, T, OBS_DIM), jnp.float32)
    act = jax.random.normal(ka, (B, T, ACT_DIM), jnp.float32)

    fwd = jax.jit(lstm_q_forward)
    q = jax.block_until_ready(fwd(obs, act, params))
    ref = jax.block_until_ready(lstm_q_reference(obs, act, params))

    assert q.shape == (B, T, 1), q.shape
    assert bool(jnp.all(jnp.isfinite(q)))
    err = float(jnp.max(jnp.abs(q - ref)))
    # bf16 matmul operands (f32 accumulate) -> expected max error O(1e-3);
    # 2e-2 still catches gate-order / bias / fused-block-RHS regressions (>= 1e-1).
    assert err < 2e-2, err

    print("KERNEL_OK")
</pallas_src>

<mosaic_0001>
module attributes {stable_mosaic.version = 11 : i64} {
  func.func @_lstm_q_fused_kernel(%arg0: i32, %arg1: memref<8x8x20xf32, #tpu.memory_space<vmem>>, %arg2: memref<20x512xbf16, #tpu.memory_space<vmem>>, %arg3: memref<1x512xf32, #tpu.memory_space<vmem>>, %arg4: memref<256x1024xbf16, #tpu.memory_space<vmem>>, %arg5: memref<1x512xf32, #tpu.memory_space<vmem>>, %arg6: memref<128x256xbf16, #tpu.memory_space<vmem>>, %arg7: memref<1x256xf32, #tpu.memory_space<vmem>>, %arg8: memref<256x128xbf16, #tpu.memory_space<vmem>>, %arg9: memref<1x128xf32, #tpu.memory_space<vmem>>, %arg10: memref<8x8x128xf32, #tpu.memory_space<vmem>>, %arg11: memref<64x128xf32, #tpu.memory_space<vmem>>) attributes {dimension_semantics = [#tpu.dimension_semantics<parallel>], iteration_bounds = array<i64: 2>, scalar_prefetch = 0 : i64, scratch_operands = 1 : i64, tpu.core_type = #tpu.core_type<tc>, window_params = [{transform_indices = @transform_0, window_bounds = array<i64: 8, 8, 20>}, {pipeline_mode = #tpu.pipeline_mode<synchronous>, transform_indices = @transform_1, window_bounds = array<i64: 20, 512>}, {pipeline_mode = #tpu.pipeline_mode<synchronous>, transform_indices = @transform_2, window_bounds = array<i64: 1, 512>}, {pipeline_mode = #tpu.pipeline_mode<synchronous>, transform_indices = @transform_3, window_bounds = array<i64: 256, 1024>}, {pipeline_mode = #tpu.pipeline_mode<synchronous>, transform_indices = @transform_4, window_bounds = array<i64: 1, 512>}, {pipeline_mode = #tpu.pipeline_mode<synchronous>, transform_indices = @transform_5, window_bounds = array<i64: 128, 256>}, {pipeline_mode = #tpu.pipeline_mode<synchronous>, transform_indices = @transform_6, window_bounds = array<i64: 1, 256>}, {pipeline_mode = #tpu.pipeline_mode<synchronous>, transform_indices = @transform_7, window_bounds = array<i64: 256, 128>}, {pipeline_mode = #tpu.pipeline_mode<synchronous>, transform_indices = @transform_8, window_bounds = array<i64: 1, 128>}, {transform_indices = @transform_9, window_bounds = array<i64: 8, 8, 128>}]} {
    %c0 = arith.constant 0 : index
    %c0_0 = arith.constant 0 : index
    %c0_1 = arith.constant 0 : index
    %0 = vector.load %arg1[%c0, %c0_0, %c0_1] : memref<8x8x20xf32, #tpu.memory_space<vmem>>, vector<8x8x20xf32>
    %1 = vector.shape_cast %0 : vector<8x8x20xf32> to vector<64x20xf32>
    %2 = arith.truncf %1 : vector<64x20xf32> to vector<64x20xbf16>
    %c0_2 = arith.constant 0 : index
    %c0_3 = arith.constant 0 : index
    %3 = vector.load %arg2[%c0_2, %c0_3] : memref<20x512xbf16, #tpu.memory_space<vmem>>, vector<20x512xbf16>
    %cst = arith.constant dense<0.000000e+00> : vector<64x512xf32>
    %4 = tpu.matmul %2, %3, %cst {dimension_numbers = #tpu.dot_dimension_numbers<[1], [0], [0], [1], [0, 0, 1, 1], [], []>} : vector<64x20xbf16>, vector<20x512xbf16>, vector<64x512xf32> -> vector<64x512xf32>
    %c0_4 = arith.constant 0 : index
    %c0_5 = arith.constant 0 : index
    %5 = vector.load %arg3[%c0_4, %c0_5] : memref<1x512xf32, #tpu.memory_space<vmem>>, vector<1x512xf32>
    %6 = vector.broadcast %5 : vector<1x512xf32> to vector<64x512xf32>
    %7 = arith.addf %4, %6 : vector<64x512xf32>
    %c0_6 = arith.constant 0 : index
    %c0_7 = arith.constant 0 : index
    %8 = vector.load %arg5[%c0_6, %c0_7] : memref<1x512xf32, #tpu.memory_space<vmem>>, vector<1x512xf32>
    %c0_8 = arith.constant 0 : index
    %c0_9 = arith.constant 0 : index
    %9 = vector.load %arg4[%c0_8, %c0_9] : memref<256x1024xbf16, #tpu.memory_space<vmem>>, vector<256x1024xbf16>
    %cst_10 = arith.constant 0.000000e+00 : f32
    %10 = vector.broadcast %cst_10 : f32 to vector<8x128xf32>
    %11 = vector.extract_strided_slice %7 {offsets = [0, 0], sizes = [8, 512], strides = [1, 1]} : vector<64x512xf32> to vector<8x512xf32>
    %12 = vector.extract_strided_slice %11 {offsets = [0, 0], sizes = [8, 384], strides = [1, 1]} : vector<8x512xf32> to vector<8x384xf32>
    %13 = arith.negf %12 : vector<8x384xf32>
    %14 = math.exp %13 : vector<8x384xf32>
    %cst_11 = arith.constant 1.000000e+00 : f32
    %15 = vector.broadcast %cst_11 : f32 to vector<8x384xf32>
    %16 = arith.addf %15, %14 : vector<8x384xf32>
    %17 = arith.divf %15, %16 : vector<8x384xf32>
    %18 = vector.extract_strided_slice %17 {offsets = [0, 0], sizes = [8, 128], strides = [1, 1]} : vector<8x384xf32> to vector<8x128xf32>
    %19 = vector.extract_strided_slice %17 {offsets = [0, 128], sizes = [8, 128], strides = [1, 1]} : vector<8x384xf32> to vector<8x128xf32>
    %20 = vector.extract_strided_slice %17 {offsets = [0, 256], sizes = [8, 128], strides = [1, 1]} : vector<8x384xf32> to vector<8x128xf32>
    %21 = vector.extract_strided_slice %11 {offsets = [0, 384], sizes = [8, 128], strides = [1, 1]} : vector<8x512xf32> to vector<8x128xf32>
    %22 = math.tanh %21 : vector<8x128xf32>
    %23 = arith.mulf %19, %10 : vector<8x128xf32>
    %24 = arith.mulf %18, %22 : vector<8x128xf32>
    %25 = arith.addf %23, %24 : vector<8x128xf32>
    %26 = math.tanh %25 : vector<8x128xf32>
    %27 = arith.mulf %20, %26 : vector<8x128xf32>
    %28 = tpu.concatenate %27, %10 in 1 : vector<8x128xf32>, vector<8x128xf32> -> vector<8x256xf32>
    %29 = arith.truncf %28 : vector<8x256xf32> to vector<8x256xbf16>
    %cst_12 = arith.constant dense<0.000000e+00> : vector<8x1024xf32>
    %30 = tpu.matmul %29, %9, %cst_12 {dimension_numbers = #tpu.dot_dimension_numbers<[1], [0], [0], [1], [0, 0, 1, 1], [], []>} : vector<8x256xbf16>, vector<256x1024xbf16>, vector<8x1024xf32> -> vector<8x1024xf32>
    %31 = vector.extract_strided_slice %30 {offsets = [0, 512], sizes = [8, 512], strides = [1, 1]} : vector<8x1024xf32> to vector<8x512xf32>
    %32 = vector.broadcast %8 : vector<1x512xf32> to vector<8x512xf32>
    %33 = arith.addf %31, %32 : vector<8x512xf32>
    %34 = vector.extract_strided_slice %33 {offsets = [0, 0], sizes = [8, 384], strides = [1, 1]} : vector<8x512xf32> to vector<8x384xf32>
    %35 = arith.negf %34 : vector<8x384xf32>
    %36 = math.exp %35 : vector<8x384xf32>
    %cst_13 = arith.constant 1.000000e+00 : f32
    %37 = vector.broadcast %cst_13 : f32 to vector<8x384xf32>
    %38 = arith.addf %37, %36 : vector<8x384xf32>
    %39 = arith.divf %37, %38 : vector<8x384xf32>
    %40 = vector.extract_strided_slice %39 {offsets = [0, 0], sizes = [8, 128], strides = [1, 1]} : vector<8x384xf32> to vector<8x128xf32>
    %41 = vector.extract_strided_slice %39 {offsets = [0, 128], sizes = [8, 128], strides = [1, 1]} : vector<8x384xf32> to vector<8x128xf32>
    %42 = vector.extract_strided_slice %39 {offsets = [0, 256], sizes = [8, 128], strides = [1, 1]} : vector<8x384xf32> to vector<8x128xf32>
    %43 = vector.extract_strided_slice %33 {offsets = [0, 384], sizes = [8, 128], strides = [1, 1]} : vector<8x512xf32> to vector<8x128xf32>
    %44 = math.tanh %43 : vector<8x128xf32>
    %45 = arith.mulf %41, %10 : vector<8x128xf32>
    %46 = arith.mulf %40, %44 : vector<8x128xf32>
    %47 = arith.addf %45, %46 : vector<8x128xf32>
    %48 = math.tanh %47 : vector<8x128xf32>
    %49 = arith.mulf %42, %48 : vector<8x128xf32>
    %c0_14 = arith.constant 0 : index
    %c0_15 = arith.constant 0 : index
    %50 = vector.load %arg11[%c0_14, %c0_15] : memref<64x128xf32, #tpu.memory_space<vmem>>, vector<8x128xf32>
    tpu.vector_store %arg11[%c0_14, %c0_15], %49 {strides = array<i32>} : memref<64x128xf32, #tpu.memory_space<vmem>>, vector<8x128xf32>,
    %51 = vector.extract_strided_slice %7 {offsets = [8, 0], sizes = [8, 512], strides = [1, 1]} : vector<64x512xf32> to vector<8x512xf32>
    %52 = vector.extract_strided_slice %30 {offsets = [0, 0], sizes = [8, 512], strides = [1, 1]} : vector<8x1024xf32> to vector<8x512xf32>
    %53 = arith.addf %51, %52 : vector<8x512xf32>
    %54 = vector.extract_strided_slice %53 {offsets = [0, 0], sizes = [8, 384], strides = [1, 1]} : vector<8x512xf32> to vector<8x384xf32>
    %55 = arith.negf %54 : vector<8x384xf32>
    %56 = math.exp %55 : vector<8x384xf32>
    %cst_16 = arith.constant 1.000000e+00 : f32
    %57 = vector.broadcast %cst_16 : f32 to vector<8x384xf32>
    %58 = arith.addf %57, %56 : vector<8x384xf32>
    %59 = arith.divf %57, %58 : vector<8x384xf32>
    %60 = vector.extract_strided_slice %59 {offsets = [0, 0], sizes = [8, 128], strides = [1, 1]} : vector<8x384xf32> to vector<8x128xf32>
    %61 = vector.extract_strided_slice %59 {offsets = [0, 128], sizes = [8, 128], strides = [1, 1]} : vector<8x384xf32> to vector<8x128xf32>
    %62 = vector.extract_strided_slice %59 {offsets = [0, 256], sizes = [8, 128], strides = [1, 1]} : vector<8x384xf32> to vector<8x128xf32>
    %63 = vector.extract_strided_slice %53 {offsets = [0, 384], sizes = [8, 128], strides = [1, 1]} : vector<8x512xf32> to vector<8x128xf32>
    %64 = math.tanh %63 : vector<8x128xf32>
    %65 = arith.mulf %61, %25 : vector<8x128xf32>
    %66 = arith.mulf %60, %64 : vector<8x128xf32>
    %67 = arith.addf %65, %66 : vector<8x128xf32>
    %68 = math.tanh %67 : vector<8x128xf32>
    %69 = arith.mulf %62, %68 : vector<8x128xf32>
    %70 = tpu.concatenate %69, %49 in 1 : vector<8x128xf32>, vector<8x128xf32> -> vector<8x256xf32>
    %71 = arith.truncf %70 : vector<8x256xf32> to vector<8x256xbf16>
    %cst_17 = arith.constant dense<0.000000e+00> : vector<8x1024xf32>
    %72 = tpu.matmul %71, %9, %cst_17 {dimension_numbers = #tpu.dot_dimension_numbers<[1], [0], [0], [1], [0, 0, 1, 1], [], []>} : vector<8x256xbf16>, vector<256x1024xbf16>, vector<8x1024xf32> -> vector<8x1024xf32>
    %73 = vector.extract_strided_slice %72 {offsets = [0, 512], sizes = [8, 512], strides = [1, 1]} : vector<8x1024xf32> to vector<8x512xf32>
    %74 = vector.broadcast %8 : vector<1x512xf32> to vector<8x512xf32>
    %75 = arith.addf %73, %74 : vector<8x512xf32>
    %76 = vector.extract_strided_slice %75 {offsets = [0, 0], sizes = [8, 384], strides = [1, 1]} : vector<8x512xf32> to vector<8x384xf32>
    %77 = arith.negf %76 : vector<8x384xf32>
    %78 = math.exp %77 : vector<8x384xf32>
    %cst_18 = arith.constant 1.000000e+00 : f32
    %79 = vector.broadcast %cst_18 : f32 to vector<8x384xf32>
    %80 = arith.addf %79, %78 : vector<8x384xf32>
    %81 = arith.divf %79, %80 : vector<8x384xf32>
    %82 = vector.extract_strided_slice %81 {offsets = [0, 0], sizes = [8, 128], strides = [1, 1]} : vector<8x384xf32> to vector<8x128xf32>
    %83 = vector.extract_strided_slice %81 {offsets = [0, 128], sizes = [8, 128], strides = [1, 1]} : vector<8x384xf32> to vector<8x128xf32>
    %84 = vector.extract_strided_slice %81 {offsets = [0, 256], sizes = [8, 128], strides = [1, 1]} : vector<8x384xf32> to vector<8x128xf32>
    %85 = vector.extract_strided_slice %75 {offsets = [0, 384], sizes = [8, 128], strides = [1, 1]} : vector<8x512xf32> to vector<8x128xf32>
    %86 = math.tanh %85 : vector<8x128xf32>
    %87 = arith.mulf %83, %47 : vector<8x128xf32>
    %88 = arith.mulf %82, %86 : vector<8x128xf32>
    %89 = arith.addf %87, %88 : vector<8x128xf32>
    %90 = math.tanh %89 : vector<8x128xf32>
    %91 = arith.mulf %84, %90 : vector<8x128xf32>
    %c8 = arith.constant 8 : index
    %c0_19 = arith.constant 0 : index
    %92 = vector.load %arg11[%c8, %c0_19] : memref<64x128xf32, #tpu.memory_space<vmem>>, vector<8x128xf32>
    tpu.vector_store %arg11[%c8, %c0_19], %91 {strides = array<i32>} : memref<64x128xf32, #tpu.memory_space<vmem>>, vector<8x128xf32>,
    %93 = vector.extract_strided_slice %7 {offsets = [16, 0], sizes = [8, 512], strides = [1, 1]} : vector<64x512xf32> to vector<8x512xf32>
    %94 = vector.extract_strided_slice %72 {offsets = [0, 0], sizes = [8, 512], strides = [1, 1]} : vector<8x1024xf32> to vector<8x512xf32>
    %95 = arith.addf %93, %94 : vector<8x512xf32>
    %96 = vector.extract_strided_slice %95 {offsets = [0, 0], sizes = [8, 384], strides = [1, 1]} : vector<8x512xf32> to vector<8x384xf32>
    %97 = arith.negf %96 : vector<8x384xf32>
    %98 = math.exp %97 : vector<8x384xf32>
    %cst_20 = arith.constant 1.000000e+00 : f32
    %99 = vector.broadcast %cst_20 : f32 to vector<8x384xf32>
    %100 = arith.addf %99, %98 : vector<8x384xf32>
    %101 = arith.divf %99, %100 : vector<8x384xf32>
    %102 = vector.extract_strided_slice %101 {offsets = [0, 0], sizes = [8, 128], strides = [1, 1]} : vector<8x384xf32> to vector<8x128xf32>
    %103 = vector.extract_strided_slice %101 {offsets = [0, 128], sizes = [8, 128], strides = [1, 1]} : vector<8x384xf32> to vector<8x128xf32>
    %104 = vector.extract_strided_slice %101 {offsets = [0, 256], sizes = [8, 128], strides = [1, 1]} : vector<8x384xf32> to vector<8x128xf32>
    %105 = vector.extract_strided_slice %95 {offsets = [0, 384], sizes = [8, 128], strides = [1, 1]} : vector<8x512xf32> to vector<8x128xf32>
    %106 = math.tanh %105 : vector<8x128xf32>
    %107 = arith.mulf %103, %67 : vector<8x128xf32>
    %108 = arith.mulf %102, %106 : vector<8x128xf32>
    %109 = arith.addf %107, %108 : vector<8x128xf32>
    %110 = math.tanh %109 : vector<8x128xf32>
    %111 = arith.mulf %104, %110 : vector<8x128xf32>
    %112 = tpu.concatenate %111, %91 in 1 : vector<8x128xf32>, vector<8x128xf32> -> vector<8x256xf32>
    %113 = arith.truncf %112 : vector<8x256xf32> to vector<8x256xbf16>
    %cst_21 = arith.constant dense<0.000000e+00> : vector<8x1024xf32>
    %114 = tpu.matmul %113, %9, %cst_21 {dimension_numbers = #tpu.dot_dimension_numbers<[1], [0], [0], [1], [0, 0, 1, 1], [], []>} : vector<8x256xbf16>, vector<256x1024xbf16>, vector<8x1024xf32> -> vector<8x1024xf32>
    %115 = vector.extract_strided_slice %114 {offsets = [0, 512], sizes = [8, 512], strides = [1, 1]} : vector<8x1024xf32> to vector<8x512xf32>
    %116 = vector.broadcast %8 : vector<1x512xf32> to vector<8x512xf32>
    %117 = arith.addf %115, %116 : vector<8x512xf32>
    %118 = vector.extract_strided_slice %117 {offsets = [0, 0], sizes = [8, 384], strides = [1, 1]} : vector<8x512xf32> to vector<8x384xf32>
    %119 = arith.negf %118 : vector<8x384xf32>
    %120 = math.exp %119 : vector<8x384xf32>
    %cst_22 = arith.constant 1.000000e+00 : f32
    %121 = vector.broadcast %cst_22 : f32 to vector<8x384xf32>
    %122 = arith.addf %121, %120 : vector<8x384xf32>
    %123 = arith.divf %121, %122 : vector<8x384xf32>
    %124 = vector.extract_strided_slice %123 {offsets = [0, 0], sizes = [8, 128], strides = [1, 1]} : vector<8x384xf32> to vector<8x128xf32>
    %125 = vector.extract_strided_slice %123 {offsets = [0, 128], sizes = [8, 128], strides = [1, 1]} : vector<8x384xf32> to vector<8x128xf32>
    %126 = vector.extract_strided_slice %123 {offsets = [0, 256], sizes = [8, 128], strides = [1, 1]} : vector<8x384xf32> to vector<8x128xf32>
    %127 = vector.extract_strided_slice %117 {offsets = [0, 384], sizes = [8, 128], strides = [1, 1]} : vector<8x512xf32> to vector<8x128xf32>
    %128 = math.tanh %127 : vector<8x128xf32>
    %129 = arith.mulf %125, %89 : vector<8x128xf32>
    %130 = arith.mulf %124, %128 : vector<8x128xf32>
    %131 = arith.addf %129, %130 : vector<8x128xf32>
    %132 = math.tanh %131 : vector<8x128xf32>
    %133 = arith.mulf %126, %132 : vector<8x128xf32>
    %c16 = arith.constant 16 : index
    %c0_23 = arith.constant 0 : index
    %134 = vector.load %arg11[%c16, %c0_23] : memref<64x128xf32, #tpu.memory_space<vmem>>, vector<8x128xf32>
    tpu.vector_store %arg11[%c16, %c0_23], %133 {strides = array<i32>} : memref<64x128xf32, #tpu.memory_space<vmem>>, vector<8x128xf32>,
    %135 = vector.extract_strided_slice %7 {offsets = [24, 0], sizes = [8, 512], strides = [1, 1]} : vector<64x512xf32> to vector<8x512xf32>
    %136 = vector.extract_strided_slice %114 {offsets = [0, 0], sizes = [8, 512], strides = [1, 1]} : vector<8x1024xf32> to vector<8x512xf32>
    %137 = arith.addf %135, %136 : vector<8x512xf32>
    %138 = vector.extract_strided_slice %137 {offsets = [0, 0], sizes = [8, 384], strides = [1, 1]} : vector<8x512xf32> to vector<8x384xf32>
    %139 = arith.negf %138 : vector<8x384xf32>
    %140 = math.exp %139 : vector<8x384xf32>
    %cst_24 = arith.constant 1.000000e+00 : f32
    %141 = vector.broadcast %cst_24 : f32 to vector<8x384xf32>
    %142 = arith.addf %141, %140 : vector<8x384xf32>
    %143 = arith.divf %141, %142 : vector<8x384xf32>
    %144 = vector.extract_strided_slice %143 {offsets = [0, 0], sizes = [8, 128], strides = [1, 1]} : vector<8x384xf32> to vector<8x128xf32>
    %145 = vector.extract_strided_slice %143 {offsets = [0, 128], sizes = [8, 128], strides = [1, 1]} : vector<8x384xf32> to vector<8x128xf32>
    %146 = vector.extract_strided_slice %143 {offsets = [0, 256], sizes = [8, 128], strides = [1, 1]} : vector<8x384xf32> to vector<8x128xf32>
    %147 = vector.extract_strided_slice %137 {offsets = [0, 384], sizes = [8, 128], strides = [1, 1]} : vector<8x512xf32> to vector<8x128xf32>
    %148 = math.tanh %147 : vector<8x128xf32>
    %149 = arith.mulf %145, %109 : vector<8x128xf32>
    %150 = arith.mulf %144, %148 : vector<8x128xf32>
    %151 = arith.addf %149, %150 : vector<8x128xf32>
    %152 = math.tanh %151 : vector<8x128xf32>
    %153 = arith.mulf %146, %152 : vector<8x128xf32>
    %154 = tpu.concatenate %153, %133 in 1 : vector<8x128xf32>, vector<8x128xf32> -> vector<8x256xf32>
    %155 = arith.truncf %154 : vector<8x256xf32> to vector<8x256xbf16>
    %cst_25 = arith.constant dense<0.000000e+00> : vector<8x1024xf32>
    %156 = tpu.matmul %155, %9, %cst_25 {dimension_numbers = #tpu.dot_dimension_numbers<[1], [0], [0], [1], [0, 0, 1, 1], [], []>} : vector<8x256xbf16>, vector<256x1024xbf16>, vector<8x1024xf32> -> vector<8x1024xf32>
    %157 = vector.extract_strided_slice %156 {offsets = [0, 512], sizes = [8, 512], strides = [1, 1]} : vector<8x1024xf32> to vector<8x512xf32>
    %158 = vector.broadcast %8 : vector<1x512xf32> to vector<8x512xf32>
    %159 = arith.addf %157, %158 : vector<8x512xf32>
    %160 = vector.extract_strided_slice %159 {offsets = [0, 0], sizes = [8, 384], strides = [1, 1]} : vector<8x512xf32> to vector<8x384xf32>
    %161 = arith.negf %160 : vector<8x384xf32>
    %162 = math.exp %161 : vector<8x384xf32>
    %cst_26 = arith.constant 1.000000e+00 : f32
    %163 = vector.broadcast %cst_26 : f32 to vector<8x384xf32>
    %164 = arith.addf %163, %162 : vector<8x384xf32>
    %165 = arith.divf %163, %164 : vector<8x384xf32>
    %166 = vector.extract_strided_slice %165 {offsets = [0, 0], sizes = [8, 128], strides = [1, 1]} : vector<8x384xf32> to vector<8x128xf32>
    %167 = vector.extract_strided_slice %165 {offsets = [0, 128], sizes = [8, 128], strides = [1, 1]} : vector<8x384xf32> to vector<8x128xf32>
    %168 = vector.extract_strided_slice %165 {offsets = [0, 256], sizes = [8, 128], strides = [1, 1]} : vector<8x384xf32> to vector<8x128xf32>
    %169 = vector.extract_strided_slice %159 {offsets = [0, 384], sizes = [8, 128], strides = [1, 1]} : vector<8x512xf32> to vector<8x128xf32>
    %170 = math.tanh %169 : vector<8x128xf32>
    %171 = arith.mulf %167, %131 : vector<8x128xf32>
    %172 = arith.mulf %166, %170 : vector<8x128xf32>
    %173 = arith.addf %171, %172 : vector<8x128xf32>
    %174 = math.tanh %173 : vector<8x128xf32>
    %175 = arith.mulf %168, %174 : vector<8x128xf32>
    %c24 = arith.constant 24 : index
    %c0_27 = arith.constant 0 : index
    %176 = vector.load %arg11[%c24, %c0_27] : memref<64x128xf32, #tpu.memory_space<vmem>>, vector<8x128xf32>
    tpu.vector_store %arg11[%c24, %c0_27], %175 {strides = array<i32>} : memref<64x128xf32, #tpu.memory_space<vmem>>, vector<8x128xf32>,
    %177 = vector.extract_strided_slice %7 {offsets = [32, 0], sizes = [8, 512], strides = [1, 1]} : vector<64x512xf32> to vector<8x512xf32>
    %178 = vector.extract_strided_slice %156 {offsets = [0, 0], sizes = [8, 512], strides = [1, 1]} : vector<8x1024xf32> to vector<8x512xf32>
    %179 = arith.addf %177, %178 : vector<8x512xf32>
    %180 = vector.extract_strided_slice %179 {offsets = [0, 0], sizes = [8, 384], strides = [1, 1]} : vector<8x512xf32> to vector<8x384xf32>
    %181 = arith.negf %180 : vector<8x384xf32>
    %182 = math.exp %181 : vector<8x384xf32>
    %cst_28 = arith.constant 1.000000e+00 : f32
    %183 = vector.broadcast %cst_28 : f32 to vector<8x384xf32>
    %184 = arith.addf %183, %182 : vector<8x384xf32>
    %185 = arith.divf %183, %184 : vector<8x384xf32>
    %186 = vector.extract_strided_slice %185 {offsets = [0, 0], sizes = [8, 128], strides = [1, 1]} : vector<8x384xf32> to vector<8x128xf32>
    %187 = vector.extract_strided_slice %185 {offsets = [0, 128], sizes = [8, 128], strides = [1, 1]} : vector<8x384xf32> to vector<8x128xf32>
    %188 = vector.extract_strided_slice %185 {offsets = [0, 256], sizes = [8, 128], strides = [1, 1]} : vector<8x384xf32> to vector<8x128xf32>
    %189 = vector.extract_strided_slice %179 {offsets = [0, 384], sizes = [8, 128], strides = [1, 1]} : vector<8x512xf32> to vector<8x128xf32>
    %190 = math.tanh %189 : vector<8x128xf32>
    %191 = arith.mulf %187, %151 : vector<8x128xf32>
    %192 = arith.mulf %186, %190 : vector<8x128xf32>
    %193 = arith.addf %191, %192 : vector<8x128xf32>
    %194 = math.tanh %193 : vector<8x128xf32>
    %195 = arith.mulf %188, %194 : vector<8x128xf32>
    %196 = tpu.concatenate %195, %175 in 1 : vector<8x128xf32>, vector<8x128xf32> -> vector<8x256xf32>
    %197 = arith.truncf %196 : vector<8x256xf32> to vector<8x256xbf16>
    %cst_29 = arith.constant dense<0.000000e+00> : vector<8x1024xf32>
    %198 = tpu.matmul %197, %9, %cst_29 {dimension_numbers = #tpu.dot_dimension_numbers<[1], [0], [0], [1], [0, 0, 1, 1], [], []>} : vector<8x256xbf16>, vector<256x1024xbf16>, vector<8x1024xf32> -> vector<8x1024xf32>
    %199 = vector.extract_strided_slice %198 {offsets = [0, 512], sizes = [8, 512], strides = [1, 1]} : vector<8x1024xf32> to vector<8x512xf32>
    %200 = vector.broadcast %8 : vector<1x512xf32> to vector<8x512xf32>
    %201 = arith.addf %199, %200 : vector<8x512xf32>
    %202 = vector.extract_strided_slice %201 {offsets = [0, 0], sizes = [8, 384], strides = [1, 1]} : vector<8x512xf32> to vector<8x384xf32>
    %203 = arith.negf %202 : vector<8x384xf32>
    %204 = math.exp %203 : vector<8x384xf32>
    %cst_30 = arith.constant 1.000000e+00 : f32
    %205 = vector.broadcast %cst_30 : f32 to vector<8x384xf32>
    %206 = arith.addf %205, %204 : vector<8x384xf32>
    %207 = arith.divf %205, %206 : vector<8x384xf32>
    %208 = vector.extract_strided_slice %207 {offsets = [0, 0], sizes = [8, 128], strides = [1, 1]} : vector<8x384xf32> to vector<8x128xf32>
    %209 = vector.extract_strided_slice %207 {offsets = [0, 128], sizes = [8, 128], strides = [1, 1]} : vector<8x384xf32> to vector<8x128xf32>
    %210 = vector.extract_strided_slice %207 {offsets = [0, 256], sizes = [8, 128], strides = [1, 1]} : vector<8x384xf32> to vector<8x128xf32>
    %211 = vector.extract_strided_slice %201 {offsets = [0, 384], sizes = [8, 128], strides = [1, 1]} : vector<8x512xf32> to vector<8x128xf32>
    %212 = math.tanh %211 : vector<8x128xf32>
    %213 = arith.mulf %209, %173 : vector<8x128xf32>
    %214 = arith.mulf %208, %212 : vector<8x128xf32>
    %215 = arith.addf %213, %214 : vector<8x128xf32>
    %216 = math.tanh %215 : vector<8x128xf32>
    %217 = arith.mulf %210, %216 : vector<8x128xf32>
    %c32 = arith.constant 32 : index
    %c0_31 = arith.constant 0 : index
    %218 = vector.load %arg11[%c32, %c0_31] : memref<64x128xf32, #tpu.memory_space<vmem>>, vector<8x128xf32>
    tpu.vector_store %arg11[%c32, %c0_31], %217 {strides = array<i32>} : memref<64x128xf32, #tpu.memory_space<vmem>>, vector<8x128xf32>,
    %219 = vector.extract_strided_slice %7 {offsets = [40, 0], sizes = [8, 512], strides = [1, 1]} : vector<64x512xf32> to vector<8x512xf32>
    %220 = vector.extract_strided_slice %198 {offsets = [0, 0], sizes = [8, 512], strides = [1, 1]} : vector<8x1024xf32> to vector<8x512xf32>
    %221 = arith.addf %219, %220 : vector<8x512xf32>
    %222 = vector.extract_strided_slice %221 {offsets = [0, 0], sizes = [8, 384], strides = [1, 1]} : vector<8x512xf32> to vector<8x384xf32>
    %223 = arith.negf %222 : vector<8x384xf32>
    %224 = math.exp %223 : vector<8x384xf32>
    %cst_32 = arith.constant 1.000000e+00 : f32
    %225 = vector.broadcast %cst_32 : f32 to vector<8x384xf32>
    %226 = arith.addf %225, %224 : vector<8x384xf32>
    %227 = arith.divf %225, %226 : vector<8x384xf32>
    %228 = vector.extract_strided_slice %227 {offsets = [0, 0], sizes = [8, 128], strides = [1, 1]} : vector<8x384xf32> to vector<8x128xf32>
    %229 = vector.extract_strided_slice %227 {offsets = [0, 128], sizes = [8, 128], strides = [1, 1]} : vector<8x384xf32> to vector<8x128xf32>
    %230 = vector.extract_strided_slice %227 {offsets = [0, 256], sizes = [8, 128], strides = [1, 1]} : vector<8x384xf32> to vector<8x128xf32>
    %231 = vector.extract_strided_slice %221 {offsets = [0, 384], sizes = [8, 128], strides = [1, 1]} : vector<8x512xf32> to vector<8x128xf32>
    %232 = math.tanh %231 : vector<8x128xf32>
    %233 = arith.mulf %229, %193 : vector<8x128xf32>
    %234 = arith.mulf %228, %232 : vector<8x128xf32>
    %235 = arith.addf %233, %234 : vector<8x128xf32>
    %236 = math.tanh %235 : vector<8x128xf32>
    %237 = arith.mulf %230, %236 : vector<8x128xf32>
    %238 = tpu.concatenate %237, %217 in 1 : vector<8x128xf32>, vector<8x128xf32> -> vector<8x256xf32>
    %239 = arith.truncf %238 : vector<8x256xf32> to vector<8x256xbf16>
    %cst_33 = arith.constant dense<0.000000e+00> : vector<8x1024xf32>
    %240 = tpu.matmul %239, %9, %cst_33 {dimension_numbers = #tpu.dot_dimension_numbers<[1], [0], [0], [1], [0, 0, 1, 1], [], []>} : vector<8x256xbf16>, vector<256x1024xbf16>, vector<8x1024xf32> -> vector<8x1024xf32>
    %241 = vector.extract_strided_slice %240 {offsets = [0, 512], sizes = [8, 512], strides = [1, 1]} : vector<8x1024xf32> to vector<8x512xf32>
    %242 = vector.broadcast %8 : vector<1x512xf32> to vector<8x512xf32>
    %243 = arith.addf %241, %242 : vector<8x512xf32>
    %244 = vector.extract_strided_slice %243 {offsets = [0, 0], sizes = [8, 384], strides = [1, 1]} : vector<8x512xf32> to vector<8x384xf32>
    %245 = arith.negf %244 : vector<8x384xf32>
    %246 = math.exp %245 : vector<8x384xf32>
    %cst_34 = arith.constant 1.000000e+00 : f32
    %247 = vector.broadcast %cst_34 : f32 to vector<8x384xf32>
    %248 = arith.addf %247, %246 : vector<8x384xf32>
    %249 = arith.divf %247, %248 : vector<8x384xf32>
    %250 = vector.extract_strided_slice %249 {offsets = [0, 0], sizes = [8, 128], strides = [1, 1]} : vector<8x384xf32> to vector<8x128xf32>
    %251 = vector.extract_strided_slice %249 {offsets = [0, 128], sizes = [8, 128], strides = [1, 1]} : vector<8x384xf32> to vector<8x128xf32>
    %252 = vector.extract_strided_slice %249 {offsets = [0, 256], sizes = [8, 128], strides = [1, 1]} : vector<8x384xf32> to vector<8x128xf32>
    %253 = vector.extract_strided_slice %243 {offsets = [0, 384], sizes = [8, 128], strides = [1, 1]} : vector<8x512xf32> to vector<8x128xf32>
    %254 = math.tanh %253 : vector<8x128xf32>
    %255 = arith.mulf %251, %215 : vector<8x128xf32>
    %256 = arith.mulf %250, %254 : vector<8x128xf32>
    %257 = arith.addf %255, %256 : vector<8x128xf32>
    %258 = math.tanh %257 : vector<8x128xf32>
    %259 = arith.mulf %252, %258 : vector<8x128xf32>
    %c40 = arith.constant 40 : index
    %c0_35 = arith.constant 0 : index
    %260 = vector.load %arg11[%c40, %c0_35] : memref<64x128xf32, #tpu.memory_space<vmem>>, vector<8x128xf32>
    tpu.vector_store %arg11[%c40, %c0_35], %259 {strides = array<i32>} : memref<64x128xf32, #tpu.memory_space<vmem>>, vector<8x128xf32>,
    %261 = vector.extract_strided_slice %7 {offsets = [48, 0], sizes = [8, 512], strides = [1, 1]} : vector<64x512xf32> to vector<8x512xf32>
    %262 = vector.extract_strided_slice %240 {offsets = [0, 0], sizes = [8, 512], strides = [1, 1]} : vector<8x1024xf32> to vector<8x512xf32>
    %263 = arith.addf %261, %262 : vector<8x512xf32>
    %264 = vector.extract_strided_slice %263 {offsets = [0, 0], sizes = [8, 384], strides = [1, 1]} : vector<8x512xf32> to vector<8x384xf32>
    %265 = arith.negf %264 : vector<8x384xf32>
    %266 = math.exp %265 : vector<8x384xf32>
    %cst_36 = arith.constant 1.000000e+00 : f32
    %267 = vector.broadcast %cst_36 : f32 to vector<8x384xf32>
    %268 = arith.addf %267, %266 : vector<8x384xf32>
    %269 = arith.divf %267, %268 : vector<8x384xf32>
    %270 = vector.extract_strided_slice %269 {offsets = [0, 0], sizes = [8, 128], strides = [1, 1]} : vector<8x384xf32> to vector<8x128xf32>
    %271 = vector.extract_strided_slice %269 {offsets = [0, 128], sizes = [8, 128], strides = [1, 1]} : vector<8x384xf32> to vector<8x128xf32>
    %272 = vector.extract_strided_slice %269 {offsets = [0, 256], sizes = [8, 128], strides = [1, 1]} : vector<8x384xf32> to vector<8x128xf32>
    %273 = vector.extract_strided_slice %263 {offsets = [0, 384], sizes = [8, 128], strides = [1, 1]} : vector<8x512xf32> to vector<8x128xf32>
    %274 = math.tanh %273 : vector<8x128xf32>
    %275 = arith.mulf %271, %235 : vector<8x128xf32>
    %276 = arith.mulf %270, %274 : vector<8x128xf32>
    %277 = arith.addf %275, %276 : vector<8x128xf32>
    %278 = math.tanh %277 : vector<8x128xf32>
    %279 = arith.mulf %272, %278 : vector<8x128xf32>
    %280 = tpu.concatenate %279, %259 in 1 : vector<8x128xf32>, vector<8x128xf32> -> vector<8x256xf32>
    %281 = arith.truncf %280 : vector<8x256xf32> to vector<8x256xbf16>
    %cst_37 = arith.constant dense<0.000000e+00> : vector<8x1024xf32>
    %282 = tpu.matmul %281, %9, %cst_37 {dimension_numbers = #tpu.dot_dimension_numbers<[1], [0], [0], [1], [0, 0, 1, 1], [], []>} : vector<8x256xbf16>, vector<256x1024xbf16>, vector<8x1024xf32> -> vector<8x1024xf32>
    %283 = vector.extract_strided_slice %282 {offsets = [0, 512], sizes = [8, 512], strides = [1, 1]} : vector<8x1024xf32> to vector<8x512xf32>
    %284 = vector.broadcast %8 : vector<1x512xf32> to vector<8x512xf32>
    %285 = arith.addf %283, %284 : vector<8x512xf32>
    %286 = vector.extract_strided_slice %285 {offsets = [0, 0], sizes = [8, 384], strides = [1, 1]} : vector<8x512xf32> to vector<8x384xf32>
    %287 = arith.negf %286 : vector<8x384xf32>
    %288 = math.exp %287 : vector<8x384xf32>
    %cst_38 = arith.constant 1.000000e+00 : f32
    %289 = vector.broadcast %cst_38 : f32 to vector<8x384xf32>
    %290 = arith.addf %289, %288 : vector<8x384xf32>
    %291 = arith.divf %289, %290 : vector<8x384xf32>
    %292 = vector.extract_strided_slice %291 {offsets = [0, 0], sizes = [8, 128], strides = [1, 1]} : vector<8x384xf32> to vector<8x128xf32>
    %293 = vector.extract_strided_slice %291 {offsets = [0, 128], sizes = [8, 128], strides = [1, 1]} : vector<8x384xf32> to vector<8x128xf32>
    %294 = vector.extract_strided_slice %291 {offsets = [0, 256], sizes = [8, 128], strides = [1, 1]} : vector<8x384xf32> to vector<8x128xf32>
    %295 = vector.extract_strided_slice %285 {offsets = [0, 384], sizes = [8, 128], strides = [1, 1]} : vector<8x512xf32> to vector<8x128xf32>
    %296 = math.tanh %295 : vector<8x128xf32>
    %297 = arith.mulf %293, %257 : vector<8x128xf32>
    %298 = arith.mulf %292, %296 : vector<8x128xf32>
    %299 = arith.addf %297, %298 : vector<8x128xf32>
    %300 = math.tanh %299 : vector<8x128xf32>
    %301 = arith.mulf %294, %300 : vector<8x128xf32>
    %c48 = arith.constant 48 : index
    %c0_39 = arith.constant 0 : index
    %302 = vector.load %arg11[%c48, %c0_39] : memref<64x128xf32, #tpu.memory_space<vmem>>, vector<8x128xf32>
    tpu.vector_store %arg11[%c48, %c0_39], %301 {strides = array<i32>} : memref<64x128xf32, #tpu.memory_space<vmem>>, vector<8x128xf32>,
    %303 = vector.extract_strided_slice %7 {offsets = [56, 0], sizes = [8, 512], strides = [1, 1]} : vector<64x512xf32> to vector<8x512xf32>
    %304 = vector.extract_strided_slice %282 {offsets = [0, 0], sizes = [8, 512], strides = [1, 1]} : vector<8x1024xf32> to vector<8x512xf32>
    %305 = arith.addf %303, %304 : vector<8x512xf32>
    %306 = vector.extract_strided_slice %305 {offsets = [0, 0], sizes = [8, 384], strides = [1, 1]} : vector<8x512xf32> to vector<8x384xf32>
    %307 = arith.negf %306 : vector<8x384xf32>
    %308 = math.exp %307 : vector<8x384xf32>
    %cst_40 = arith.constant 1.000000e+00 : f32
    %309 = vector.broadcast %cst_40 : f32 to vector<8x384xf32>
    %310 = arith.addf %309, %308 : vector<8x384xf32>
    %311 = arith.divf %309, %310 : vector<8x384xf32>
    %312 = vector.extract_strided_slice %311 {offsets = [0, 0], sizes = [8, 128], strides = [1, 1]} : vector<8x384xf32> to vector<8x128xf32>
    %313 = vector.extract_strided_slice %311 {offsets = [0, 128], sizes = [8, 128], strides = [1, 1]} : vector<8x384xf32> to vector<8x128xf32>
    %314 = vector.extract_strided_slice %311 {offsets = [0, 256], sizes = [8, 128], strides = [1, 1]} : vector<8x384xf32> to vector<8x128xf32>
    %315 = vector.extract_strided_slice %305 {offsets = [0, 384], sizes = [8, 128], strides = [1, 1]} : vector<8x512xf32> to vector<8x128xf32>
    %316 = math.tanh %315 : vector<8x128xf32>
    %317 = arith.mulf %313, %277 : vector<8x128xf32>
    %318 = arith.mulf %312, %316 : vector<8x128xf32>
    %319 = arith.addf %317, %318 : vector<8x128xf32>
    %320 = math.tanh %319 : vector<8x128xf32>
    %321 = arith.mulf %314, %320 : vector<8x128xf32>
    %322 = tpu.concatenate %321, %301 in 1 : vector<8x128xf32>, vector<8x128xf32> -> vector<8x256xf32>
    %323 = arith.truncf %322 : vector<8x256xf32> to vector<8x256xbf16>
    %cst_41 = arith.constant dense<0.000000e+00> : vector<8x1024xf32>
    %324 = tpu.matmul %323, %9, %cst_41 {dimension_numbers = #tpu.dot_dimension_numbers<[1], [0], [0], [1], [0, 0, 1, 1], [], []>} : vector<8x256xbf16>, vector<256x1024xbf16>, vector<8x1024xf32> -> vector<8x1024xf32>
    %325 = vector.extract_strided_slice %324 {offsets = [0, 512], sizes = [8, 512], strides = [1, 1]} : vector<8x1024xf32> to vector<8x512xf32>
    %326 = vector.broadcast %8 : vector<1x512xf32> to vector<8x512xf32>
    %327 = arith.addf %325, %326 : vector<8x512xf32>
    %328 = vector.extract_strided_slice %327 {offsets = [0, 0], sizes = [8, 384], strides = [1, 1]} : vector<8x512xf32> to vector<8x384xf32>
    %329 = arith.negf %328 : vector<8x384xf32>
    %330 = math.exp %329 : vector<8x384xf32>
    %cst_42 = arith.constant 1.000000e+00 : f32
    %331 = vector.broadcast %cst_42 : f32 to vector<8x384xf32>
    %332 = arith.addf %331, %330 : vector<8x384xf32>
    %333 = arith.divf %331, %332 : vector<8x384xf32>
    %334 = vector.extract_strided_slice %333 {offsets = [0, 0], sizes = [8, 128], strides = [1, 1]} : vector<8x384xf32> to vector<8x128xf32>
    %335 = vector.extract_strided_slice %333 {offsets = [0, 128], sizes = [8, 128], strides = [1, 1]} : vector<8x384xf32> to vector<8x128xf32>
    %336 = vector.extract_strided_slice %333 {offsets = [0, 256], sizes = [8, 128], strides = [1, 1]} : vector<8x384xf32> to vector<8x128xf32>
    %337 = vector.extract_strided_slice %327 {offsets = [0, 384], sizes = [8, 128], strides = [1, 1]} : vector<8x512xf32> to vector<8x128xf32>
    %338 = math.tanh %337 : vector<8x128xf32>
    %339 = arith.mulf %335, %299 : vector<8x128xf32>
    %340 = arith.mulf %334, %338 : vector<8x128xf32>
    %341 = arith.addf %339, %340 : vector<8x128xf32>
    %342 = math.tanh %341 : vector<8x128xf32>
    %343 = arith.mulf %336, %342 : vector<8x128xf32>
    %c56 = arith.constant 56 : index
    %c0_43 = arith.constant 0 : index
    %344 = vector.load %arg11[%c56, %c0_43] : memref<64x128xf32, #tpu.memory_space<vmem>>, vector<8x128xf32>
    tpu.vector_store %arg11[%c56, %c0_43], %343 {strides = array<i32>} : memref<64x128xf32, #tpu.memory_space<vmem>>, vector<8x128xf32>,
    %c0_44 = arith.constant 0 : index
    %c0_45 = arith.constant 0 : index
    %345 = vector.load %arg11[%c0_44, %c0_45] : memref<64x128xf32, #tpu.memory_space<vmem>>, vector<64x128xf32>
    %346 = arith.truncf %345 : vector<64x128xf32> to vector<64x128xbf16>
    %c0_46 = arith.constant 0 : index
    %c0_47 = arith.constant 0 : index
    %347 = vector.load %arg6[%c0_46, %c0_47] : memref<128x256xbf16, #tpu.memory_space<vmem>>, vector<128x256xbf16>
    %cst_48 = arith.constant dense<0.000000e+00> : vector<64x256xf32>
    %348 = tpu.matmul %346, %347, %cst_48 {dimension_numbers = #tpu.dot_dimension_numbers<[1], [0], [0], [1], [0, 0, 1, 1], [], []>} : vector<64x128xbf16>, vector<128x256xbf16>, vector<64x256xf32> -> vector<64x256xf32>
    %c0_49 = arith.constant 0 : index
    %c0_50 = arith.constant 0 : index
    %349 = vector.load %arg7[%c0_49, %c0_50] : memref<1x256xf32, #tpu.memory_space<vmem>>, vector<1x256xf32>
    %350 = vector.broadcast %349 : vector<1x256xf32> to vector<64x256xf32>
    %351 = arith.addf %348, %350 : vector<64x256xf32>
    %cst_51 = arith.constant 0.000000e+00 : f32
    %352 = vector.broadcast %cst_51 : f32 to vector<64x256xf32>
    %353 = arith.maximumf %351, %352 : vector<64x256xf32>
    %354 = arith.truncf %353 : vector<64x256xf32> to vector<64x256xbf16>
    %c0_52 = arith.constant 0 : index
    %c0_53 = arith.constant 0 : index
    %355 = vector.load %arg8[%c0_52, %c0_53] : memref<256x128xbf16, #tpu.memory_space<vmem>>, vector<256x128xbf16>
    %cst_54 = arith.constant dense<0.000000e+00> : vector<64x128xf32>
    %356 = tpu.matmul %354, %355, %cst_54 {dimension_numbers = #tpu.dot_dimension_numbers<[1], [0], [0], [1], [0, 0, 1, 1], [], []>} : vector<64x256xbf16>, vector<256x128xbf16>, vector<64x128xf32> -> vector<64x128xf32>
    %c0_55 = arith.constant 0 : index
    %c0_56 = arith.constant 0 : index
    %357 = vector.load %arg9[%c0_55, %c0_56] : memref<1x128xf32, #tpu.memory_space<vmem>>, vector<1x128xf32>
    %358 = vector.broadcast %357 : vector<1x128xf32> to vector<64x128xf32>
    %359 = arith.addf %356, %358 : vector<64x128xf32>
    %360 = vector.shape_cast %359 : vector<64x128xf32> to vector<8x8x128xf32>
    %c0_57 = arith.constant 0 : index
    %c0_58 = arith.constant 0 : index
    %c0_59 = arith.constant 0 : index
    %361 = vector.load %arg10[%c0_57, %c0_58, %c0_59] : memref<8x8x128xf32, #tpu.memory_space<vmem>>, vector<8x8x128xf32>
    tpu.vector_store %arg10[%c0_57, %c0_58, %c0_59], %360 {strides = array<i32>} : memref<8x8x128xf32, #tpu.memory_space<vmem>>, vector<8x8x128xf32>,
    return
  }
  func.func @transform_0(%arg0: i32) -> (i32, i32, i32) {
    %c0_i32 = arith.constant 0 : i32
    %c0_i32_0 = arith.constant 0 : i32
    %c0_i32_1 = arith.constant 0 : i32
    return %c0_i32, %arg0, %c0_i32_0 : i32, i32, i32
  }
  func.func @transform_1(%arg0: i32) -> (i32, i32) {
    %c0_i32 = arith.constant 0 : i32
    %c0_i32_0 = arith.constant 0 : i32
    %c0_i32_1 = arith.constant 0 : i32
    return %c0_i32, %c0_i32_0 : i32, i32
  }
  func.func @transform_2(%arg0: i32) -> (i32, i32) {
    %c0_i32 = arith.constant 0 : i32
    %c0_i32_0 = arith.constant 0 : i32
    %c0_i32_1 = arith.constant 0 : i32
    return %c0_i32, %c0_i32_0 : i32, i32
  }
  func.func @transform_3(%arg0: i32) -> (i32, i32) {
    %c0_i32 = arith.constant 0 : i32
    %c0_i32_0 = arith.constant 0 : i32
    %c0_i32_1 = arith.constant 0 : i32
    return %c0_i32, %c0_i32_0 : i32, i32
  }
  func.func @transform_4(%arg0: i32) -> (i32, i32) {
    %c0_i32 = arith.constant 0 : i32
    %c0_i32_0 = arith.constant 0 : i32
    %c0_i32_1 = arith.constant 0 : i32
    return %c0_i32, %c0_i32_0 : i32, i32
  }
  func.func @transform_5(%arg0: i32) -> (i32, i32) {
    %c0_i32 = arith.constant 0 : i32
    %c0_i32_0 = arith.constant 0 : i32
    %c0_i32_1 = arith.constant 0 : i32
    return %c0_i32, %c0_i32_0 : i32, i32
  }
  func.func @transform_6(%arg0: i32) -> (i32, i32) {
    %c0_i32 = arith.constant 0 : i32
    %c0_i32_0 = arith.constant 0 : i32
    %c0_i32_1 = arith.constant 0 : i32
    return %c0_i32, %c0_i32_0 : i32, i32
  }
  func.func @transform_7(%arg0: i32) -> (i32, i32) {
    %c0_i32 = arith.constant 0 : i32
    %c0_i32_0 = arith.constant 0 : i32
    %c0_i32_1 = arith.constant 0 : i32
    return %c0_i32, %c0_i32_0 : i32, i32
  }
  func.func @transform_8(%arg0: i32) -> (i32, i32) {
    %c0_i32 = arith.constant 0 : i32
    %c0_i32_0 = arith.constant 0 : i32
    %c0_i32_1 = arith.constant 0 : i32
    return %c0_i32, %c0_i32_0 : i32, i32
  }
  func.func @transform_9(%arg0: i32) -> (i32, i32, i32) {
    %c0_i32 = arith.constant 0 : i32
    %c0_i32_0 = arith.constant 0 : i32
    %c0_i32_1 = arith.constant 0 : i32
    return %c0_i32, %arg0, %c0_i32_0 : i32, i32, i32
  }
}

</mosaic_0001>

<llo_original>
// kernel: lstm_q_forward.1
$region0: #{lstm_q_forward.1}
  #allocation0 [shape = 'u32[]', space=smem, size = 0x4, offset = 0x4, fixed_abs, tag = 'smem constant byte address 0x4 - core index']
  #allocation1 [shape = 'u32[144,128]{1,0:T(1,128)}', space=vmem, size = 0x12000, scoped, tag = 'internal scratch']
  #allocation2 [shape = 'f32[64,128]{1,0:T(8,128)}', space=vmem, size = 0x8000, scoped, tag = 'scratch operand']
  %s0 = inlined_call_operand.vmem [shape: f32[8,16,20], index: 0, kind: input, shape index: {}]
  %s1 = inlined_call_operand.vmem [shape: bf16[20,512], index: 1, kind: input, shape index: {}]
  %s2 = inlined_call_operand.vmem [shape: f32[1,512], index: 2, kind: input, shape index: {}]
  %s3 = inlined_call_operand.vmem [shape: bf16[256,1024], index: 3, kind: input, shape index: {}]
  %s4 = inlined_call_operand.vmem [shape: f32[1,512], index: 4, kind: input, shape index: {}]
  %s5 = inlined_call_operand.vmem [shape: bf16[128,256], index: 5, kind: input, shape index: {}]
  %s6 = inlined_call_operand.vmem [shape: f32[1,256], index: 6, kind: input, shape index: {}]
  %s7 = inlined_call_operand.vmem [shape: bf16[256,128], index: 7, kind: input, shape index: {}]
  %s8 = inlined_call_operand.vmem [shape: f32[1,128], index: 8, kind: input, shape index: {}]
  %s9 = inlined_call_operand.vmem [shape: f32[8,16,128], index: 9, kind: output, shape index: {}]
  %s10 = sld [smem:[#allocation0]]
  $region141: #{lstm_q_forward.1} parent=0
    _
  %s12 = ssub.s32 1, %s10
  %s13 = scalar_select 0, %s12, %s10
  $region1: #{lstm_q_forward.1} parent=0
    #allocation3 [shape = 'u8[65536]{0}', space=vmem, size = 0x10000, scoped, tag = 'input window, operand 0']
    #allocation4 [shape = 'u8[65536]{0}', space=vmem, size = 0x10000, scoped, tag = 'output window, operand 0']
    loop: start=0, step=1, limit=4
    $region2: #{lstm_q_forward.1} parent=1 // loop_pre_header
      _
    $region3: #{lstm_q_forward.1} parent=1 // loop_header
      %s15 = sphi 0, %s19
      %p16 = scmp.ge.s32.totalorder %s15, 4
      %s25 = sphi 0, %s27
      %s28 = sphi 0, %s25
      %s29 = sphi 0, %s28
      %s45 = sphi 0, %s29
      %s49 = sphi 0, %s49
      %s51 = sphi 0, %s49
      %s52 = sphi 0, %s51
      %s66 = sphi 0, %s52
      %s70 = sphi 0, %s70
      %s72 = sphi 0, %s70
      %s73 = sphi 0, %s72
      %s87 = sphi 0, %s73
      %s91 = sphi 0, %s91
      %s93 = sphi 0, %s91
      %s94 = sphi 0, %s93
      %s108 = sphi 0, %s94
      %s112 = sphi 0, %s112
      %s114 = sphi 0, %s112
      %s115 = sphi 0, %s114
      %s129 = sphi 0, %s115
      %s133 = sphi 0, %s133
      %s135 = sphi 0, %s133
      %s136 = sphi 0, %s135
      %s150 = sphi 0, %s136
      %s154 = sphi 0, %s154
      %s156 = sphi 0, %s154
      %s157 = sphi 0, %s156
      %s171 = sphi 0, %s157
      %s175 = sphi 0, %s175
      %s177 = sphi 0, %s175
      %s178 = sphi 0, %s177
      %s192 = sphi 0, %s178
      %s196 = sphi 0, %s196
      %s198 = sphi 0, %s196
      %s199 = sphi 0, %s198
      %s213 = sphi 0, %s199
      %s219 = sphi 0, %s221
      %s222 = sphi 0, %s219
      %s223 = sphi 0, %s222
      %s239 = sphi 0, %s223
    $region4: #{lstm_q_forward.1} parent=1 // loop_header_branch
      %18 = sbr.rel (%p16) target = $region8
    $region5: #{lstm_q_forward.1} parent=1 // loop_body
      %s20 = ssub.s32 %s15, 1
      %s21 = ssub.s32 %s15, 2
      %s22 = sadd.s32 %s15, 1
      %s23 = ssub.s32 %s15, %s22
      %p24 = scmp.eq.s32.totalorder %s23, 0
      %s26 = sadd.s32 %s25, 1
      %s27 = scalar_select %p24, %s25, %s26
      %p30 = pneg %p24
      %p31 = scmp.eq.s32.totalorder %s15, 1
      %p32 = por %p30, %p31
      %p33 = scmp.ne.s32.totalorder %s25, %s28
      %p34 = scmp.eq.s32.totalorder %s15, 0
      %p35 = por %p33, %p34
      %p36 = scmp.ne.s32.totalorder %s25, %s28
      %p37 = scmp.eq.s32.totalorder %s20, 1
      %p38 = por %p36, %p37
      %p39 = scmp.ne.s32.totalorder %s28, %s29
      %p40 = scmp.eq.s32.totalorder %s20, 0
      %p41 = por %p39, %p40
      %p42 = scmp.ne.s32.totalorder %s28, %s29
      %p43 = scmp.eq.s32.totalorder %s21, 1
      %p44 = por %p42, %p43
      %p46 = scmp.ne.s32.totalorder %s29, %s45
      %p47 = scmp.eq.s32.totalorder %s21, 0
      %p48 = por %p46, %p47
      %s50 = sadd.s32 %s49, 1
      %p53 = scmp.eq.s32.totalorder %s15, 1
      %p54 = scmp.ne.s32.totalorder %s49, %s51
      %p55 = scmp.eq.s32.totalorder %s15, 0
      %p56 = por %p54, %p55
      %p57 = scmp.ne.s32.totalorder %s49, %s51
      %p58 = scmp.eq.s32.totalorder %s20, 1
      %p59 = por %p57, %p58
      %p60 = scmp.ne.s32.totalorder %s51, %s52
      %p61 = scmp.eq.s32.totalorder %s20, 0
      %p62 = por %p60, %p61
      %p63 = scmp.ne.s32.totalorder %s51, %s52
      %p64 = scmp.eq.s32.totalorder %s21, 1
      %p65 = por %p63, %p64
      %p67 = scmp.ne.s32.totalorder %s52, %s66
      %p68 = scmp.eq.s32.totalorder %s21, 0
      %p69 = por %p67, %p68
      %s71 = sadd.s32 %s70, 1
      %p74 = scmp.eq.s32.totalorder %s15, 1
      %p75 = scmp.ne.s32.totalorder %s70, %s72
      %p76 = scmp.eq.s32.totalorder %s15, 0
      %p77 = por %p75, %p76
      %p78 = scmp.ne.s32.totalorder %s70, %s72
      %p79 = scmp.eq.s32.totalorder %s20, 1
      %p80 = por %p78, %p79
      %p81 = scmp.ne.s32.totalorder %s72, %s73
      %p82 = scmp.eq.s32.totalorder %s20, 0
      %p83 = por %p81, %p82
      %p84 = scmp.ne.s32.totalorder %s72, %s73
      %p85 = scmp.eq.s32.totalorder %s21, 1
      %p86 = por %p84, %p85
      %p88 = scmp.ne.s32.totalorder %s73, %s87
      %p89 = scmp.eq.s32.totalorder %s21, 0
      %p90 = por %p88, %p89
      %s92 = sadd.s32 %s91, 1
      %p95 = scmp.eq.s32.totalorder %s15, 1
      %p96 = scmp.ne.s32.totalorder %s91, %s93
      %p97 = scmp.eq.s32.totalorder %s15, 0
      %p98 = por %p96, %p97
      %p99 = scmp.ne.s32.totalorder %s91, %s93
      %p100 = scmp.eq.s32.totalorder %s20, 1
      %p101 = por %p99, %p100
      %p102 = scmp.ne.s32.totalorder %s93, %s94
      %p103 = scmp.eq.s32.totalorder %s20, 0
      %p104 = por %p102, %p103
      %p105 = scmp.ne.s32.totalorder %s93, %s94
      %p106 = scmp.eq.s32.totalorder %s21, 1
      %p107 = por %p105, %p106
      %p109 = scmp.ne.s32.totalorder %s94, %s108
      %p110 = scmp.eq.s32.totalorder %s21, 0
      %p111 = por %p109, %p110
      %s113 = sadd.s32 %s112, 1
      %p116 = scmp.eq.s32.totalorder %s15, 1
      %p117 = scmp.ne.s32.totalorder %s112, %s114
      %p118 = scmp.eq.s32.totalorder %s15, 0
      %p119 = por %p117, %p118
      %p120 = scmp.ne.s32.totalorder %s112, %s114
      %p121 = scmp.eq.s32.totalorder %s20, 1
      %p122 = por %p120, %p121
      %p123 = scmp.ne.s32.totalorder %s114, %s115
      %p124 = scmp.eq.s32.totalorder %s20, 0
      %p125 = por %p123, %p124
      %p126 = scmp.ne.s32.totalorder %s114, %s115
      %p127 = scmp.eq.s32.totalorder %s21, 1
      %p128 = por %p126, %p127
      %p130 = scmp.ne.s32.totalorder %s115, %s129
      %p131 = scmp.eq.s32.totalorder %s21, 0
      %p132 = por %p130, %p131
      %s134 = sadd.s32 %s133, 1
      %p137 = scmp.eq.s32.totalorder %s15, 1
      %p138 = scmp.ne.s32.totalorder %s133, %s135
      %p139 = scmp.eq.s32.totalorder %s15, 0
      %p140 = por %p138, %p139
      %p141 = scmp.ne.s32.totalorder %s133, %s135
      %p142 = scmp.eq.s32.totalorder %s20, 1
      %p143 = por %p141, %p142
      %p144 = scmp.ne.s32.totalorder %s135, %s136
      %p145 = scmp.eq.s32.totalorder %s20, 0
      %p146 = por %p144, %p145
      %p147 = scmp.ne.s32.totalorder %s135, %s136
      %p148 = scmp.eq.s32.totalorder %s21, 1
      %p149 = por %p147, %p148
      %p151 = scmp.ne.s32.totalorder %s136, %s150
      %p152 = scmp.eq.s32.totalorder %s21, 0
      %p153 = por %p151, %p152
      %s155 = sadd.s32 %s154, 1
      %p158 = scmp.eq.s32.totalorder %s15, 1
      %p159 = scmp.ne.s32.totalorder %s154, %s156
      %p160 = scmp.eq.s32.totalorder %s15, 0
      %p161 = por %p159, %p160
      %p162 = scmp.ne.s32.totalorder %s154, %s156
      %p163 = scmp.eq.s32.totalorder %s20, 1
      %p164 = por %p162, %p163
      %p165 = scmp.ne.s32.totalorder %s156, %s157
      %p166 = scmp.eq.s32.totalorder %s20, 0
      %p167 = por %p165, %p166
      %p168 = scmp.ne.s32.totalorder %s156, %s157
      %p169 = scmp.eq.s32.totalorder %s21, 1
      %p170 = por %p168, %p169
      %p172 = scmp.ne.s32.totalorder %s157, %s171
      %p173 = scmp.eq.s32.totalorder %s21, 0
      %p174 = por %p172, %p173
      %s176 = sadd.s32 %s175, 1
      %p179 = scmp.eq.s32.totalorder %s15, 1
      %p180 = scmp.ne.s32.totalorder %s175, %s177
      %p181 = scmp.eq.s32.totalorder %s15, 0
      %p182 = por %p180, %p181
      %p183 = scmp.ne.s32.totalorder %s175, %s177
      %p184 = scmp.eq.s32.totalorder %s20, 1
      %p185 = por %p183, %p184
      %p186 = scmp.ne.s32.totalorder %s177, %s178
      %p187 = scmp.eq.s32.totalorder %s20, 0
      %p188 = por %p186, %p187
      %p189 = scmp.ne.s32.totalorder %s177, %s178
      %p190 = scmp.eq.s32.totalorder %s21, 1
      %p191 = por %p189, %p190
      %p193 = scmp.ne.s32.totalorder %s178, %s192
      %p194 = scmp.eq.s32.totalorder %s21, 0
      %p195 = por %p193, %p194
      %s197 = sadd.s32 %s196, 1
      %p200 = scmp.eq.s32.totalorder %s15, 1
      %p201 = scmp.ne.s32.totalorder %s196, %s198
      %p202 = scmp.eq.s32.totalorder %s15, 0
      %p203 = por %p201, %p202
      %p204 = scmp.ne.s32.totalorder %s196, %s198
      %p205 = scmp.eq.s32.totalorder %s20, 1
      %p206 = por %p204, %p205
      %p207 = scmp.ne.s32.totalorder %s198, %s199
      %p208 = scmp.eq.s32.totalorder %s20, 0
      %p209 = por %p207, %p208
      %p210 = scmp.ne.s32.totalorder %s198, %s199
      %p211 = scmp.eq.s32.totalorder %s21, 1
      %p212 = por %p210, %p211
      %p214 = scmp.ne.s32.totalorder %s199, %s213
      %p215 = scmp.eq.s32.totalorder %s21, 0
      %p216 = por %p214, %p215
      %s217 = ssub.s32 %s15, %s22
      %p218 = scmp.eq.s32.totalorder %s217, 0
      %s220 = sadd.s32 %s219, 1
      %s221 = scalar_select %p218, %s219, %s220
      %p224 = pneg %p218
      %p225 = scmp.eq.s32.totalorder %s15, 1
      %p226 = por %p224, %p225
      %p227 = scmp.ne.s32.totalorder %s219, %s222
      %p228 = scmp.eq.s32.totalorder %s15, 0
      %p229 = por %p227, %p228
      %p230 = scmp.ne.s32.totalorder %s219, %s222
      %p231 = scmp.eq.s32.totalorder %s20, 1
      %p232 = por %p230, %p231
      %p233 = scmp.ne.s32.totalorder %s222, %s223
      %p234 = scmp.eq.s32.totalorder %s20, 0
      %p235 = por %p233, %p234
      %p236 = scmp.ne.s32.totalorder %s222, %s223
      %p237 = scmp.eq.s32.totalorder %s21, 1
      %p238 = por %p236, %p237
      %p240 = scmp.ne.s32.totalorder %s223, %s239
      %p241 = scmp.eq.s32.totalorder %s21, 0
      %p242 = por %p240, %p241
      %p243 = scmp.le.s32.totalorder 1, %s15
      %p244 = scmp.lt.s32.totalorder %s15, 3
      %p245 = pnand %p243, %p244
      %p246 = pneg %p245
      // Predicated region
      $region9: #{lstm_q_forward.1} parent=5 // pred_check
        _
      $region10: #{lstm_q_forward.1} parent=5 // pred_check_branch
        %248 = sbr.rel (%p245) target = $region12
      $region11: #{lstm_q_forward.1} parent=5 // pred_region
        %s249 = ssub.s32 %s15, 1
        // Predicated region
        $region13: #{lstm_q_forward.1} parent=11 // pred_check
          %p250 = pneg %p62
        $region14: #{lstm_q_forward.1} parent=11 // pred_check_branch
          %252 = sbr.rel (%p250) target = $region16
        $region15: #{lstm_q_forward.1} parent=11 // pred_region
          _
        $region16: #{lstm_q_forward.1} parent=11 // pred_fallthru
          _
        // Predicated region
        $region17: #{lstm_q_forward.1} parent=11 // pred_check
          %p253 = pneg %p83
        $region18: #{lstm_q_forward.1} parent=11 // pred_check_branch
          %255 = sbr.rel (%p253) target = $region20
        $region19: #{lstm_q_forward.1} parent=11 // pred_region
          _
        $region20: #{lstm_q_forward.1} parent=11 // pred_fallthru
          _
        // Predicated region
        $region21: #{lstm_q_forward.1} parent=11 // pred_check
          %p256 = pneg %p104
        $region22: #{lstm_q_forward.1} parent=11 // pred_check_branch
          %258 = sbr.rel (%p256) target = $region24
        $region23: #{lstm_q_forward.1} parent=11 // pred_region
          _
        $region24: #{lstm_q_forward.1} parent=11 // pred_fallthru
          _
        // Predicated region
        $region25: #{lstm_q_forward.1} parent=11 // pred_check
          %p259 = pneg %p125
        $region26: #{lstm_q_forward.1} parent=11 // pred_check_branch
          %261 = sbr.rel (%p259) target = $region28
        $region27: #{lstm_q_forward.1} parent=11 // pred_region
          _
        $region28: #{lstm_q_forward.1} parent=11 // pred_fallthru
          _
        // Predicated region
        $region29: #{lstm_q_forward.1} parent=11 // pred_check
          %p262 = pneg %p146
        $region30: #{lstm_q_forward.1} parent=11 // pred_check_branch
          %264 = sbr.rel (%p262) target = $region32
        $region31: #{lstm_q_forward.1} parent=11 // pred_region
          _
        $region32: #{lstm_q_forward.1} parent=11 // pred_fallthru
          _
        // Predicated region
        $region33: #{lstm_q_forward.1} parent=11 // pred_check
          %p265 = pneg %p167
        $region34: #{lstm_q_forward.1} parent=11 // pred_check_branch
          %267 = sbr.rel (%p265) target = $region36
        $region35: #{lstm_q_forward.1} parent=11 // pred_region
          _
        $region36: #{lstm_q_forward.1} parent=11 // pred_fallthru
          _
        // Predicated region
        $region37: #{lstm_q_forward.1} parent=11 // pred_check
          %p268 = pneg %p188
        $region38: #{lstm_q_forward.1} parent=11 // pred_check_branch
          %270 = sbr.rel (%p268) target = $region40
        $region39: #{lstm_q_forward.1} parent=11 // pred_region
          _
        $region40: #{lstm_q_forward.1} parent=11 // pred_fallthru
          _
        // Predicated region
        $region41: #{lstm_q_forward.1} parent=11 // pred_check
          %p271 = pneg %p209
        $region42: #{lstm_q_forward.1} parent=11 // pred_check_branch
          %273 = sbr.rel (%p271) target = $region44
        $region43: #{lstm_q_forward.1} parent=11 // pred_region
          _
        $region44: #{lstm_q_forward.1} parent=11 // pred_fallthru
          _
      $region12: #{lstm_q_forward.1} parent=5 // pred_fallthru
        _
      %p274 = scmp.lt.s32.totalorder %s15, 2
      // Predicated region
      $region45: #{lstm_q_forward.1} parent=5 // pred_check
        %p275 = pneg %p274
      $region46: #{lstm_q_forward.1} parent=5 // pred_check_branch
        %277 = sbr.rel (%p275) target = $region48
      $region47: #{lstm_q_forward.1} parent=5 // pred_region
        // Predicated region
        $region49: #{lstm_q_forward.1} parent=47 // pred_check
          %p278 = pneg %p35
        $region50: #{lstm_q_forward.1} parent=47 // pred_check_branch
          %280 = sbr.rel (%p278) target = $region52
        $region51: #{lstm_q_forward.1} parent=47 // pred_region
          %s281 = sand.u32 %s25, 1
          %s282 = sand.u32 %s25, 1
          %s283 = smul.addr %s282, 64
          %s284 = scalar_lea.vmem [#allocation3], %s283
          %s285 = smul.addr %s15, 8
          %s286 = scalar_lea.vmem %s0, %s285
          // Predicated region
          $region53: #{lstm_q_forward.1} parent=51 // pred_check
            _
          $region54: #{lstm_q_forward.1} parent=51 // pred_check_branch
            %288 = sbr.rel (0) target = $region56
          $region55: #{lstm_q_forward.1} parent=51 // pred_region
            // Predicated region
            $region57: #{lstm_q_forward.1} parent=55 // pred_check
              _
            $region58: #{lstm_q_forward.1} parent=55 // pred_check_branch
              %290 = sbr.rel (0) target = $region60
            $region59: #{lstm_q_forward.1} parent=55 // pred_region
              // Predicated region
              $region72: #{lstm_q_forward.1} parent=59 // pred_check
                _
              $region73: #{lstm_q_forward.1} parent=59 // pred_check_branch
                %319 = sbr.rel (0) target = $region75
              $region74: #{lstm_q_forward.1} parent=59 // pred_region
                loop: start=0, step=1, limit=1
                $region76: #{lstm_q_forward.1} parent=74 // loop_pre_header
                  _
                $region77: #{lstm_q_forward.1} parent=74 // loop_header
                  %s321 = sphi 0, %s325
                  %p322 = scmp.ge.s32.totalorder %s321, 1
                  %s326 = sphi %s286, %s286
                  %s327 = sphi %s284, %s284
                $region78: #{lstm_q_forward.1} parent=74 // loop_header_branch
                  %324 = sbr.rel (%p322) target = $region82
                $region79: #{lstm_q_forward.1} parent=74 // loop_body
                  %v328 = vld [vmem:[%s326] sm:$0xff]
                  %329 = vst [vmem:[%s327] sm:$0xff] %v328
                  %v330 = vld [vmem:[%s326 + $0x10] sm:$0xff]
                  %331 = vst [vmem:[%s327 + $0x8] sm:$0xff] %v330
                  %v332 = vld [vmem:[%s326 + $0x20] sm:$0xff]
                  %333 = vst [vmem:[%s327 + $0x10] sm:$0xff] %v332
                  %v334 = vld [vmem:[%s326 + $0x30] sm:$0xff]
                  %335 = vst [vmem:[%s327 + $0x18] sm:$0xff] %v334
                  %v336 = vld [vmem:[%s326 + $0x40] sm:$0xff]
                  %337 = vst [vmem:[%s327 + $0x20] sm:$0xff] %v336
                  %v338 = vld [vmem:[%s326 + $0x50] sm:$0xff]
                  %339 = vst [vmem:[%s327 + $0x28] sm:$0xff] %v338
                  %v340 = vld [vmem:[%s326 + $0x60] sm:$0xff]
                  %341 = vst [vmem:[%s327 + $0x30] sm:$0xff] %v340
                  %v342 = vld [vmem:[%s326 + $0x70] sm:$0xff]
                  %343 = vst [vmem:[%s327 + $0x38] sm:$0xff] %v342
                $region80: #{lstm_q_forward.1} parent=74 // loop_footer
                  %s325 = sadd.s32 1, %s321
                $region81: #{lstm_q_forward.1} parent=74 // loop_footer_branch
                  %320 = sbr.rel target = $region77
                $region82: #{lstm_q_forward.1} parent=74 // loop_exit
                  _
              $region75: #{lstm_q_forward.1} parent=59 // pred_fallthru
                _
              // Predicated region
              $region83: #{lstm_q_forward.1} parent=59 // pred_check
                _
              $region84: #{lstm_q_forward.1} parent=59 // pred_check_branch
                %345 = sbr.rel target = $region86
              $region85: #{lstm_q_forward.1} parent=59 // pred_region
                _
              $region86: #{lstm_q_forward.1} parent=59 // pred_fallthru
                _
            $region60: #{lstm_q_forward.1} parent=55 // pred_fallthru
              _
            // Predicated region
            $region61: #{lstm_q_forward.1} parent=55 // pred_check
              _
            $region62: #{lstm_q_forward.1} parent=55 // pred_check_branch
              %292 = sbr.rel target = $region64
            $region63: #{lstm_q_forward.1} parent=55 // pred_region
              loop: start=0, step=1, limit=1
              $region65: #{lstm_q_forward.1} parent=63 // loop_pre_header
                _
              $region66: #{lstm_q_forward.1} parent=63 // loop_header
                %s295 = sphi 0, %s299
                %p296 = scmp.ge.s32.totalorder %s295, 1
                %s300 = sphi %s286, %s286
                %s301 = sphi %s284, %s284
              $region67: #{lstm_q_forward.1} parent=63 // loop_header_branch
                %298 = sbr.rel (%p296) target = $region71
              $region68: #{lstm_q_forward.1} parent=63 // loop_body
                %v302 = vld [vmem:[%s300] sm:$0xff]
                %303 = vst [vmem:[%s301] sm:$0xff] %v302
                %v304 = vld [vmem:[%s300 + $0x10] sm:$0xff]
                %305 = vst [vmem:[%s301 + $0x8] sm:$0xff] %v304
                %v306 = vld [vmem:[%s300 + $0x20] sm:$0xff]
                %307 = vst [vmem:[%s301 + $0x10] sm:$0xff] %v306
                %v308 = vld [vmem:[%s300 + $0x30] sm:$0xff]
                %309 = vst [vmem:[%s301 + $0x18] sm:$0xff] %v308
                %v310 = vld [vmem:[%s300 + $0x40] sm:$0xff]
                %311 = vst [vmem:[%s301 + $0x20] sm:$0xff] %v310
                %v312 = vld [vmem:[%s300 + $0x50] sm:$0xff]
                %313 = vst [vmem:[%s301 + $0x28] sm:$0xff] %v312
                %v314 = vld [vmem:[%s300 + $0x60] sm:$0xff]
                %315 = vst [vmem:[%s301 + $0x30] sm:$0xff] %v314
                %v316 = vld [vmem:[%s300 + $0x70] sm:$0xff]
                %317 = vst [vmem:[%s301 + $0x38] sm:$0xff] %v316
              $region69: #{lstm_q_forward.1} parent=63 // loop_footer
                %s299 = sadd.s32 1, %s295
              $region70: #{lstm_q_forward.1} parent=63 // loop_footer_branch
                %294 = sbr.rel target = $region66
              $region71: #{lstm_q_forward.1} parent=63 // loop_exit
                _
            $region64: #{lstm_q_forward.1} parent=55 // pred_fallthru
              _
          $region56: #{lstm_q_forward.1} parent=51 // pred_fallthru
            _
          %346 = vnop
        $region52: #{lstm_q_forward.1} parent=47 // pred_fallthru
          _
      $region48: #{lstm_q_forward.1} parent=5 // pred_fallthru
        _
      %p347 = scmp.le.s32.totalorder 1, %s15
      %p348 = scmp.lt.s32.totalorder %s15, 3
      %p349 = pnand %p347, %p348
      %p350 = pneg %p349
      // Predicated region
      $region87: #{lstm_q_forward.1} parent=5 // pred_check
        _
      $region88: #{lstm_q_forward.1} parent=5 // pred_check_branch
        %352 = sbr.rel (%p349) target = $region90
      $region89: #{lstm_q_forward.1} parent=5 // pred_region
        %s353 = ssub.s32 %s15, 1
        %s354 = sand.u32 %s28, 1
        %s355 = sand.u32 %s28, 1
        %s356 = smul.addr %s355, 64
        %s357 = scalar_lea.vmem [#allocation3], %s356
        // Predicated region
        $region91: #{lstm_q_forward.1} parent=89 // pred_check
          %p358 = pneg %p41
        $region92: #{lstm_q_forward.1} parent=89 // pred_check_branch
          %360 = sbr.rel (%p358) target = $region94
        $region93: #{lstm_q_forward.1} parent=89 // pred_region
          _
        $region94: #{lstm_q_forward.1} parent=89 // pred_fallthru
          _
        %s361 = sand.u32 %s28, 1
        %s362 = sand.u32 %s28, 1
        %s363 = smul.addr %s362, 64
        %s364 = scalar_lea.vmem [#allocation3], %s363
        %p365 = pneg %p41
        %p366 = pneg %p38
        %p367 = pneg %p62
        %p368 = pneg %p59
        %p369 = pneg %p83
        %p370 = pneg %p80
        %p371 = pneg %p104
        %p372 = pneg %p101
        %p373 = pneg %p125
        %p374 = pneg %p122
        %p375 = pneg %p146
        %p376 = pneg %p143
        %p377 = pneg %p167
        %p378 = pneg %p164
        %p379 = pneg %p188
        %p380 = pneg %p185
        %p381 = pneg %p209
        %p382 = pneg %p206
        %p383 = pneg %p235
        %p384 = pneg %p232
        %s385 = sand.u32 %s222, 1
        %s386 = sand.u32 %s222, 1
        %s387 = smul.addr %s386, 64
        %s388 = scalar_lea.vmem [#allocation4], %s387
        %v390 = vld [vmem:[%s357] sm:$0xff]
        %v391 = vld [vmem:[%s357 + $0x8] sm:$0xff]
        %v392 = vld [vmem:[%s357 + $0x10] sm:$0xff]
        %v393 = vld [vmem:[%s357 + $0x18] sm:$0xff]
        %v394 = vld [vmem:[%s357 + $0x20] sm:$0xff]
        %v395 = vld [vmem:[%s357 + $0x28] sm:$0xff]
        %v396 = vld [vmem:[%s357 + $0x30] sm:$0xff]
        %v397 = vld [vmem:[%s357 + $0x38] sm:$0xff]
        %v398 = vpack.c.bf16 %v391, %v390
        %v399 = vpack.c.bf16 %v393, %v392
        %v400 = vpack.c.bf16 %v395, %v394
        %v401 = vpack.c.bf16 %v397, %v396
        %v402 = vld [vmem:[%s1] sm:$0xff]
        %v403 = vld [vmem:[%s1 + $0x8] sm:$0xff]
        %v404 = vld [vmem:[%s1 + $0x10] sm:$0xff]
        %v405 = vld [vmem:[%s1 + $0x18] sm:$0xff]
        %v406 = vld [vmem:[%s1 + $0x20] sm:$0x33]
        %v407 = vld [vmem:[%s1 + $0x28] sm:$0x33]
        %v408 = vld [vmem:[%s2] sm:$0xf]
        %v410 = vlaneseq
        %v411 = vshrl.u32 %v410, 7
        %v412 = vsub.s32 0, %v411
        %v413 = vrot.slane %v408, %v412
        %v414 = vlaneseq
        %v415 = vshrl.u32 %v414, 7
        %v416 = vsub.s32 1, %v415
        %v417 = vrot.slane %v408, %v416
        %v418 = vlaneseq
        %v419 = vshrl.u32 %v418, 7
        %v420 = vsub.s32 2, %v419
        %v421 = vrot.slane %v408, %v420
        %v422 = vlaneseq
        %v423 = vshrl.u32 %v422, 7
        %v424 = vsub.s32 3, %v423
        %v425 = vrot.slane %v408, %v424
        %v436 = vunpack.c.l.b16 %v402
        %v437 = vunpack.c.h.b16 %v402
        %v438 = vunpack.c.l.b16 %v403
        %v439 = vunpack.c.h.b16 %v403
        %v440 = vunpack.c.l.b16 %v404
        %v441 = vunpack.c.h.b16 %v404
        %v442 = vunpack.c.l.b16 %v405
        %v443 = vunpack.c.h.b16 %v405
        %v444 = vunpack.c.l.b16 %v406
        %v445 = vunpack.c.h.b16 %v406
        %v446 = vunpack.c.l.b16 %v407
        %v447 = vunpack.c.h.b16 %v407
        %v448 = vpack.c.b16 %v440, %v436
        %v449 = vpack.c.b16 %v441, %v437
        %v450 = vpack.c.b16 %v442, %v438
        %v451 = vpack.c.b16 %v443, %v439
        %v452 = vpack.c.b16 %v444, %v444
        %v453 = vpack.c.b16 %v445, %v445
        %v454 = vpack.c.b16 %v446, %v446
        %v455 = vpack.c.b16 %v447, %v447
        %vm460 = vcmask 162816
        %v462 = vsel %vm460, %v398, 0
        %v465 = vsel %vm460, %v399, 0
        %v468 = vsel %vm460, %v400, 0
        %v471 = vsel %vm460, %v401, 0
        %vm473 = vcmask 1041408
        %v475 = vsel %vm473, %v452, 0
        %v478 = vsel %vm473, %v453, 0
        %v481 = vsel %vm473, %v454, 0
        %v484 = vsel %vm473, %v455, 0
        %486 = vmatprep.subr.bf16.mxu0 %v449
        %487 = vmatpush1.bf16.msra.mxu0 %v448
        %488 = vmatprep.subr.bf16.mxu0 %v478
        %489 = vmatpush1.bf16.msra.mxu0 %v475
        %490 = vmatprep.subr.bf16.mxu0 0
        %491 = vmatpush1.bf16.msra.mxu0 0
        %492 = vmatprep.subr.bf16.mxu0 0
        %493 = vmatpush1.bf16.msra.mxu0 0
        %494 = vmatprep.subr.bf16.mxu0 0
        %495 = vmatpush1.bf16.msra.mxu0 0
        %496 = vmatprep.subr.bf16.mxu0 0
        %497 = vmatpush1.bf16.msra.mxu0 0
        %498 = vmatprep.subr.bf16.mxu0 0
        %499 = vmatpush1.bf16.msra.mxu0 0
        %500 = vmatprep.subr.bf16.mxu0 0
        %501 = vmatpush1.bf16.msra.mxu0 0
        %502 = vmatprep.subr.bf16.mxu0 0
        %503 = vmatpush1.bf16.msra.mxu0 0
        %504 = vmatprep.subr.bf16.mxu0 0
        %505 = vmatpush1.bf16.msra.mxu0 0
        %506 = vmatprep.subr.bf16.mxu0 0
        %507 = vmatpush1.bf16.msra.mxu0 0
        %508 = vmatprep.subr.bf16.mxu0 0
        %509 = vmatpush1.bf16.msra.mxu0 0
        %510 = vmatprep.subr.bf16.mxu0 0
        %511 = vmatpush1.bf16.msra.mxu0 0
        %512 = vmatprep.subr.bf16.mxu0 0
        %513 = vmatpush1.bf16.msra.mxu0 0
        %514 = vmatprep.subr.bf16.mxu0 0
        %515 = vmatpush1.bf16.msra.mxu0 0
        %516 = vmatprep.subr.bf16.mxu0 0
        %517 = vmatpush1.bf16.msra.mxu0 0
        %518 = vmatprep.mubr.bf16.mxu0 0
        %519 = vmatmul.mubr.bf16.gmra.mrb[0].mxu0 %v462
        %v520 = vpop.f32.mrb[0].mxu0
        %v521 = vadd.f32 %v413, %v520
        %v522 = vpop.f32.mrb[0].mxu0
        %v523 = vadd.f32 %v417, %v522
        %v524 = vpop.f32.mrb[0].mxu0
        %v525 = vadd.f32 %v413, %v524
        %v526 = vpop.f32.mrb[0].mxu0
        %v527 = vadd.f32 %v417, %v526
        %528 = vmatprep.mubr.bf16.mxu0 0
        %529 = vmatmul.mubr.bf16.gmra.mrb[0].mxu0 %v465
        %v530 = vpop.f32.mrb[0].mxu0
        %v531 = vadd.f32 %v413, %v530
        %v532 = vpop.f32.mrb[0].mxu0
        %v533 = vadd.f32 %v417, %v532
        %v534 = vpop.f32.mrb[0].mxu0
        %v535 = vadd.f32 %v413, %v534
        %v536 = vpop.f32.mrb[0].mxu0
        %v537 = vadd.f32 %v417, %v536
        %538 = vmatprep.mubr.bf16.mxu0 0
        %539 = vmatmul.mubr.bf16.gmra.mrb[0].mxu0 %v468
        %v540 = vpop.f32.mrb[0].mxu0
        %v541 = vadd.f32 %v413, %v540
        %v542 = vpop.f32.mrb[0].mxu0
        %v543 = vadd.f32 %v417, %v542
        %v544 = vpop.f32.mrb[0].mxu0
        %v545 = vadd.f32 %v413, %v544
        %v546 = vpop.f32.mrb[0].mxu0
        %v547 = vadd.f32 %v417, %v546
        %548 = vmatprep.mubr.bf16.mxu0 0
        %549 = vmatmul.mubr.bf16.gmra.mrb[0].mxu0 %v471
        %v550 = vpop.f32.mrb[0].mxu0
        %v551 = vadd.f32 %v413, %v550
        %v552 = vpop.f32.mrb[0].mxu0
        %v553 = vadd.f32 %v417, %v552
        %v554 = vpop.f32.mrb[0].mxu0
        %v555 = vadd.f32 %v413, %v554
        %v556 = vpop.f32.mrb[0].mxu0
        %v557 = vadd.f32 %v417, %v556
        %558 = vdwg.mxu0
        %559 = vmatprep.subr.bf16.mxu0 %v451
        %560 = vmatpush1.bf16.msra.mxu0 %v450
        %561 = vmatprep.subr.bf16.mxu0 %v484
        %562 = vmatpush1.bf16.msra.mxu0 %v481
        %563 = vmatprep.subr.bf16.mxu0 0
        %564 = vmatpush1.bf16.msra.mxu0 0
        %565 = vmatprep.subr.bf16.mxu0 0
        %566 = vmatpush1.bf16.msra.mxu0 0
        %567 = vmatprep.subr.bf16.mxu0 0
        %568 = vmatpush1.bf16.msra.mxu0 0
        %569 = vmatprep.subr.bf16.mxu0 0
        %570 = vmatpush1.bf16.msra.mxu0 0
        %571 = vmatprep.subr.bf16.mxu0 0
        %572 = vmatpush1.bf16.msra.mxu0 0
        %573 = vmatprep.subr.bf16.mxu0 0
        %574 = vmatpush1.bf16.msra.mxu0 0
        %575 = vmatprep.subr.bf16.mxu0 0
        %576 = vmatpush1.bf16.msra.mxu0 0
        %577 = vmatprep.subr.bf16.mxu0 0
        %578 = vmatpush1.bf16.msra.mxu0 0
        %579 = vmatprep.subr.bf16.mxu0 0
        %580 = vmatpush1.bf16.msra.mxu0 0
        %581 = vmatprep.subr.bf16.mxu0 0
        %582 = vmatpush1.bf16.msra.mxu0 0
        %583 = vmatprep.subr.bf16.mxu0 0
        %584 = vmatpush1.bf16.msra.mxu0 0
        %585 = vmatprep.subr.bf16.mxu0 0
        %586 = vmatpush1.bf16.msra.mxu0 0
        %587 = vmatprep.subr.bf16.mxu0 0
        %588 = vmatpush1.bf16.msra.mxu0 0
        %589 = vmatprep.subr.bf16.mxu0 0
        %590 = vmatpush1.bf16.msra.mxu0 0
        %591 = vmatprep.mubr.bf16.mxu0 0
        %592 = vmatmul.mubr.bf16.gmra.mrb[0].mxu0 %v462
        %v593 = vpop.f32.mrb[0].mxu0
        %v594 = vadd.f32 %v421, %v593
        %v595 = vpop.f32.mrb[0].mxu0
        %v596 = vadd.f32 %v425, %v595
        %v597 = vpop.f32.mrb[0].mxu0
        %v598 = vadd.f32 %v421, %v597
        %v599 = vpop.f32.mrb[0].mxu0
        %v600 = vadd.f32 %v425, %v599
        %601 = vmatprep.mubr.bf16.mxu0 0
        %602 = vmatmul.mubr.bf16.gmra.mrb[0].mxu0 %v465
        %v603 = vpop.f32.mrb[0].mxu0
        %v604 = vadd.f32 %v421, %v603
        %v605 = vpop.f32.mrb[0].mxu0
        %v606 = vadd.f32 %v425, %v605
        %v607 = vpop.f32.mrb[0].mxu0
        %v608 = vadd.f32 %v421, %v607
        %v609 = vpop.f32.mrb[0].mxu0
        %v610 = vadd.f32 %v425, %v609
        %611 = vmatprep.mubr.bf16.mxu0 0
        %612 = vmatmul.mubr.bf16.gmra.mrb[0].mxu0 %v468
        %v613 = vpop.f32.mrb[0].mxu0
        %v614 = vadd.f32 %v421, %v613
        %v615 = vpop.f32.mrb[0].mxu0
        %v616 = vadd.f32 %v425, %v615
        %v617 = vpop.f32.mrb[0].mxu0
        %v618 = vadd.f32 %v421, %v617
        %v619 = vpop.f32.mrb[0].mxu0
        %v620 = vadd.f32 %v425, %v619
        %621 = vmatprep.mubr.bf16.mxu0 0
        %622 = vmatmul.mubr.bf16.gmra.mrb[0].mxu0 %v471
        %v623 = vpop.f32.mrb[0].mxu0
        %v624 = vadd.f32 %v421, %v623
        %v625 = vpop.f32.mrb[0].mxu0
        %v626 = vadd.f32 %v425, %v625
        %v627 = vpop.f32.mrb[0].mxu0
        %v628 = vadd.f32 %v421, %v627
        %v629 = vpop.f32.mrb[0].mxu0
        %v630 = vadd.f32 %v425, %v629
        %631 = vdwg.mxu0
        %v632 = vld [vmem:[%s4] sm:$0xf]
        %v633 = vld [vmem:[%s3] sm:$0xff]
        %v634 = vld [vmem:[%s3 + $0x8] sm:$0xff]
        %v635 = vld [vmem:[%s3 + $0x10] sm:$0xff]
        %v636 = vld [vmem:[%s3 + $0x18] sm:$0xff]
        %v637 = vld [vmem:[%s3 + $0x20] sm:$0xff]
        %v638 = vld [vmem:[%s3 + $0x28] sm:$0xff]
        %v639 = vld [vmem:[%s3 + $0x30] sm:$0xff]
        %v640 = vld [vmem:[%s3 + $0x38] sm:$0xff]
        %v641 = vld [vmem:[%s3 + $0x40] sm:$0xff]
        %v642 = vld [vmem:[%s3 + $0x48] sm:$0xff]
        %v643 = vld [vmem:[%s3 + $0x50] sm:$0xff]
        %v644 = vld [vmem:[%s3 + $0x58] sm:$0xff]
        %v645 = vld [vmem:[%s3 + $0x60] sm:$0xff]
        %v646 = vld [vmem:[%s3 + $0x68] sm:$0xff]
        %v647 = vld [vmem:[%s3 + $0x70] sm:$0xff]
        %v648 = vld [vmem:[%s3 + $0x78] sm:$0xff]
        %v649 = vld [vmem:[%s3 + $0x80] sm:$0xff]
        %v650 = vld [vmem:[%s3 + $0x88] sm:$0xff]
        %v651 = vld [vmem:[%s3 + $0x90] sm:$0xff]
        %v652 = vld [vmem:[%s3 + $0x98] sm:$0xff]
        %v653 = vld [vmem:[%s3 + $0xa0] sm:$0xff]
        %v654 = vld [vmem:[%s3 + $0xa8] sm:$0xff]
        %v655 = vld [vmem:[%s3 + $0xb0] sm:$0xff]
        %v656 = vld [vmem:[%s3 + $0xb8] sm:$0xff]
        %v657 = vld [vmem:[%s3 + $0xc0] sm:$0xff]
        %v658 = vld [vmem:[%s3 + $0xc8] sm:$0xff]
        %v659 = vld [vmem:[%s3 + $0xd0] sm:$0xff]
        %v660 = vld [vmem:[%s3 + $0xd8] sm:$0xff]
        %v661 = vld [vmem:[%s3 + $0xe0] sm:$0xff]
        %v662 = vld [vmem:[%s3 + $0xe8] sm:$0xff]
        %v663 = vld [vmem:[%s3 + $0xf0] sm:$0xff]
        %v664 = vld [vmem:[%s3 + $0xf8] sm:$0xff]
        %v665 = vld [vmem:[%s3 + $0x100] sm:$0xff]
        %v666 = vld [vmem:[%s3 + $0x108] sm:$0xff]
        %v667 = vld [vmem:[%s3 + $0x110] sm:$0xff]
        %v668 = vld [vmem:[%s3 + $0x118] sm:$0xff]
        %v669 = vld [vmem:[%s3 + $0x120] sm:$0xff]
        %v670 = vld [vmem:[%s3 + $0x128] sm:$0xff]
        %v671 = vld [vmem:[%s3 + $0x130] sm:$0xff]
        %v672 = vld [vmem:[%s3 + $0x138] sm:$0xff]
        %v673 = vld [vmem:[%s3 + $0x140] sm:$0xff]
        %v674 = vld [vmem:[%s3 + $0x148] sm:$0xff]
        %v675 = vld [vmem:[%s3 + $0x150] sm:$0xff]
        %v676 = vld [vmem:[%s3 + $0x158] sm:$0xff]
        %v677 = vld [vmem:[%s3 + $0x160] sm:$0xff]
        %v678 = vld [vmem:[%s3 + $0x168] sm:$0xff]
        %v679 = vld [vmem:[%s3 + $0x170] sm:$0xff]
        %v680 = vld [vmem:[%s3 + $0x178] sm:$0xff]
        %v681 = vld [vmem:[%s3 + $0x180] sm:$0xff]
        %v682 = vld [vmem:[%s3 + $0x188] sm:$0xff]
        %v683 = vld [vmem:[%s3 + $0x190] sm:$0xff]
        %v684 = vld [vmem:[%s3 + $0x198] sm:$0xff]
        %v685 = vld [vmem:[%s3 + $0x1a0] sm:$0xff]
        %v686 = vld [vmem:[%s3 + $0x1a8] sm:$0xff]
        %v687 = vld [vmem:[%s3 + $0x1b0] sm:$0xff]
        %v688 = vld [vmem:[%s3 + $0x1b8] sm:$0xff]
        %v689 = vld [vmem:[%s3 + $0x1c0] sm:$0xff]
        %v690 = vld [vmem:[%s3 + $0x1c8] sm:$0xff]
        %v691 = vld [vmem:[%s3 + $0x1d0] sm:$0xff]
        %v692 = vld [vmem:[%s3 + $0x1d8] sm:$0xff]
        %v693 = vld [vmem:[%s3 + $0x1e0] sm:$0xff]
        %v694 = vld [vmem:[%s3 + $0x1e8] sm:$0xff]
        %v695 = vld [vmem:[%s3 + $0x1f0] sm:$0xff]
        %v696 = vld [vmem:[%s3 + $0x1f8] sm:$0xff]
        %v697 = vld [vmem:[%s3 + $0x200] sm:$0xff]
        %v698 = vld [vmem:[%s3 + $0x208] sm:$0xff]
        %v699 = vld [vmem:[%s3 + $0x210] sm:$0xff]
        %v700 = vld [vmem:[%s3 + $0x218] sm:$0xff]
        %v701 = vld [vmem:[%s3 + $0x220] sm:$0xff]
        %v702 = vld [vmem:[%s3 + $0x228] sm:$0xff]
        %v703 = vld [vmem:[%s3 + $0x230] sm:$0xff]
        %v704 = vld [vmem:[%s3 + $0x238] sm:$0xff]
        %v705 = vld [vmem:[%s3 + $0x240] sm:$0xff]
        %v706 = vld [vmem:[%s3 + $0x248] sm:$0xff]
        %v707 = vld [vmem:[%s3 + $0x250] sm:$0xff]
        %v708 = vld [vmem:[%s3 + $0x258] sm:$0xff]
        %v709 = vld [vmem:[%s3 + $0x260] sm:$0xff]
        %v710 = vld [vmem:[%s3 + $0x268] sm:$0xff]
        %v711 = vld [vmem:[%s3 + $0x270] sm:$0xff]
        %v712 = vld [vmem:[%s3 + $0x278] sm:$0xff]
        %v713 = vld [vmem:[%s3 + $0x280] sm:$0xff]
        %v714 = vld [vmem:[%s3 + $0x288] sm:$0xff]
        %v715 = vld [vmem:[%s3 + $0x290] sm:$0xff]
        %v716 = vld [vmem:[%s3 + $0x298] sm:$0xff]
        %v717 = vld [vmem:[%s3 + $0x2a0] sm:$0xff]
        %v718 = vld [vmem:[%s3 + $0x2a8] sm:$0xff]
        %v719 = vld [vmem:[%s3 + $0x2b0] sm:$0xff]
        %v720 = vld [vmem:[%s3 + $0x2b8] sm:$0xff]
        %v721 = vld [vmem:[%s3 + $0x2c0] sm:$0xff]
        %v722 = vld [vmem:[%s3 + $0x2c8] sm:$0xff]
        %v723 = vld [vmem:[%s3 + $0x2d0] sm:$0xff]
        %v724 = vld [vmem:[%s3 + $0x2d8] sm:$0xff]
        %v725 = vld [vmem:[%s3 + $0x2e0] sm:$0xff]
        %v726 = vld [vmem:[%s3 + $0x2e8] sm:$0xff]
        %v727 = vld [vmem:[%s3 + $0x2f0] sm:$0xff]
        %v728 = vld [vmem:[%s3 + $0x2f8] sm:$0xff]
        %v729 = vld [vmem:[%s3 + $0x300] sm:$0xff]
        %v730 = vld [vmem:[%s3 + $0x308] sm:$0xff]
        %v731 = vld [vmem:[%s3 + $0x310] sm:$0xff]
        %v732 = vld [vmem:[%s3 + $0x318] sm:$0xff]
        %v733 = vld [vmem:[%s3 + $0x320] sm:$0xff]
        %v734 = vld [vmem:[%s3 + $0x328] sm:$0xff]
        %v735 = vld [vmem:[%s3 + $0x330] sm:$0xff]
        %v736 = vld [vmem:[%s3 + $0x338] sm:$0xff]
        %v737 = vld [vmem:[%s3 + $0x340] sm:$0xff]
        %v738 = vld [vmem:[%s3 + $0x348] sm:$0xff]
        %v739 = vld [vmem:[%s3 + $0x350] sm:$0xff]
        %v740 = vld [vmem:[%s3 + $0x358] sm:$0xff]
        %v741 = vld [vmem:[%s3 + $0x360] sm:$0xff]
        %v742 = vld [vmem:[%s3 + $0x368] sm:$0xff]
        %v743 = vld [vmem:[%s3 + $0x370] sm:$0xff]
        %v744 = vld [vmem:[%s3 + $0x378] sm:$0xff]
        %v745 = vld [vmem:[%s3 + $0x380] sm:$0xff]
        %v746 = vld [vmem:[%s3 + $0x388] sm:$0xff]
        %v747 = vld [vmem:[%s3 + $0x390] sm:$0xff]
        %v748 = vld [vmem:[%s3 + $0x398] sm:$0xff]
        %v749 = vld [vmem:[%s3 + $0x3a0] sm:$0xff]
        %v750 = vld [vmem:[%s3 + $0x3a8] sm:$0xff]
        %v751 = vld [vmem:[%s3 + $0x3b0] sm:$0xff]
        %v752 = vld [vmem:[%s3 + $0x3b8] sm:$0xff]
        %v753 = vld [vmem:[%s3 + $0x3c0] sm:$0xff]
        %v754 = vld [vmem:[%s3 + $0x3c8] sm:$0xff]
        %v755 = vld [vmem:[%s3 + $0x3d0] sm:$0xff]
        %v756 = vld [vmem:[%s3 + $0x3d8] sm:$0xff]
        %v757 = vld [vmem:[%s3 + $0x3e0] sm:$0xff]
        %v758 = vld [vmem:[%s3 + $0x3e8] sm:$0xff]
        %v759 = vld [vmem:[%s3 + $0x3f0] sm:$0xff]
        %v760 = vld [vmem:[%s3 + $0x3f8] sm:$0xff]
        %v761 = vxor.u32 %v521, 2147483648
        %v762 = vxor.u32 %v523, 2147483648
        %v763 = vxor.u32 %v594, 2147483648
        %v764 = vmul.f32 %v761, 1.442695
        %v765 = vpow.pop %v764
        %v766 = vmul.f32 %v762, 1.442695
        %v767 = vpow.pop %v766
        %v768 = vmul.f32 %v763, 1.442695
        %v769 = vpow.pop %v768
        %v770 = vadd.f32 %v765, 1.0
        %v771 = vadd.f32 %v767, 1.0
        %v772 = vadd.f32 %v769, 1.0
        %v773 = vrcp.pop %v770
        %v774 = vmul.f32 1.0, %v773
        %v775 = vrcp.pop %v771
        %v776 = vmul.f32 1.0, %v775
        %v777 = vrcp.pop %v772
        %v778 = vmul.f32 1.0, %v777
        %v779 = vtanh.pop %v596
        %v780 = vmul.f32 %v776, 0.0
        %v781 = vmul.f32 %v774, %v779
        %v782 = vadd.f32 %v780, %v781
        %v783 = vtanh.pop %v782
        %v784 = vmul.f32 %v778, %v783
        %v785 = vpack.c.bf16 %v784, %v784
        %v786 = vpack.c.bf16 0.0, 0.0
        %v915 = vunpack.c.l.b16 %v633
        %v916 = vunpack.c.h.b16 %v633
        %v917 = vunpack.c.l.b16 %v634
        %v918 = vunpack.c.h.b16 %v634
        %v919 = vunpack.c.l.b16 %v635
        %v920 = vunpack.c.h.b16 %v635
        %v921 = vunpack.c.l.b16 %v636
        %v922 = vunpack.c.h.b16 %v636
        %v923 = vunpack.c.l.b16 %v637
        %v924 = vunpack.c.h.b16 %v637
        %v925 = vunpack.c.l.b16 %v638
        %v926 = vunpack.c.h.b16 %v638
        %v927 = vunpack.c.l.b16 %v639
        %v928 = vunpack.c.h.b16 %v639
        %v929 = vunpack.c.l.b16 %v640
        %v930 = vunpack.c.h.b16 %v640
        %v931 = vunpack.c.l.b16 %v641
        %v932 = vunpack.c.h.b16 %v641
        %v933 = vunpack.c.l.b16 %v642
        %v934 = vunpack.c.h.b16 %v642
        %v935 = vunpack.c.l.b16 %v643
        %v936 = vunpack.c.h.b16 %v643
        %v937 = vunpack.c.l.b16 %v644
        %v938 = vunpack.c.h.b16 %v644
        %v939 = vunpack.c.l.b16 %v645
        %v940 = vunpack.c.h.b16 %v645
        %v941 = vunpack.c.l.b16 %v646
        %v942 = vunpack.c.h.b16 %v646
        %v943 = vunpack.c.l.b16 %v647
        %v944 = vunpack.c.h.b16 %v647
        %v945 = vunpack.c.l.b16 %v648
        %v946 = vunpack.c.h.b16 %v648
        %v947 = vunpack.c.l.b16 %v649
        %v948 = vunpack.c.h.b16 %v649
        %v949 = vunpack.c.l.b16 %v650
        %v950 = vunpack.c.h.b16 %v650
        %v951 = vunpack.c.l.b16 %v651
        %v952 = vunpack.c.h.b16 %v651
        %v953 = vunpack.c.l.b16 %v652
        %v954 = vunpack.c.h.b16 %v652
        %v955 = vunpack.c.l.b16 %v653
        %v956 = vunpack.c.h.b16 %v653
        %v957 = vunpack.c.l.b16 %v654
        %v958 = vunpack.c.h.b16 %v654
        %v959 = vunpack.c.l.b16 %v655
        %v960 = vunpack.c.h.b16 %v655
        %v961 = vunpack.c.l.b16 %v656
        %v962 = vunpack.c.h.b16 %v656
        %v963 = vunpack.c.l.b16 %v657
        %v964 = vunpack.c.h.b16 %v657
        %v965 = vunpack.c.l.b16 %v658
        %v966 = vunpack.c.h.b16 %v658
        %v967 = vunpack.c.l.b16 %v659
        %v968 = vunpack.c.h.b16 %v659
        %v969 = vunpack.c.l.b16 %v660
        %v970 = vunpack.c.h.b16 %v660
        %v971 = vunpack.c.l.b16 %v661
        %v972 = vunpack.c.h.b16 %v661
        %v973 = vunpack.c.l.b16 %v662
        %v974 = vunpack.c.h.b16 %v662
        %v975 = vunpack.c.l.b16 %v663
        %v976 = vunpack.c.h.b16 %v663
        %v977 = vunpack.c.l.b16 %v664
        %v978 = vunpack.c.h.b16 %v664
        %v979 = vunpack.c.l.b16 %v665
        %v980 = vunpack.c.h.b16 %v665
        %v981 = vunpack.c.l.b16 %v666
        %v982 = vunpack.c.h.b16 %v666
        %v983 = vunpack.c.l.b16 %v667
        %v984 = vunpack.c.h.b16 %v667
        %v985 = vunpack.c.l.b16 %v668
        %v986 = vunpack.c.h.b16 %v668
        %v987 = vunpack.c.l.b16 %v669
        %v988 = vunpack.c.h.b16 %v669
        %v989 = vunpack.c.l.b16 %v670
        %v990 = vunpack.c.h.b16 %v670
        %v991 = vunpack.c.l.b16 %v671
        %v992 = vunpack.c.h.b16 %v671
        %v993 = vunpack.c.l.b16 %v672
        %v994 = vunpack.c.h.b16 %v672
        %v995 = vunpack.c.l.b16 %v673
        %v996 = vunpack.c.h.b16 %v673
        %v997 = vunpack.c.l.b16 %v674
        %v998 = vunpack.c.h.b16 %v674
        %v999 = vunpack.c.l.b16 %v675
        %v1000 = vunpack.c.h.b16 %v675
        %v1001 = vunpack.c.l.b16 %v676
        %v1002 = vunpack.c.h.b16 %v676
        %v1003 = vunpack.c.l.b16 %v677
        %v1004 = vunpack.c.h.b16 %v677
        %v1005 = vunpack.c.l.b16 %v678
        %v1006 = vunpack.c.h.b16 %v678
        %v1007 = vunpack.c.l.b16 %v679
        %v1008 = vunpack.c.h.b16 %v679
        %v1009 = vunpack.c.l.b16 %v680
        %v1010 = vunpack.c.h.b16 %v680
        %v1011 = vunpack.c.l.b16 %v681
        %v1012 = vunpack.c.h.b16 %v681
        %v1013 = vunpack.c.l.b16 %v682
        %v1014 = vunpack.c.h.b16 %v682
        %v1015 = vunpack.c.l.b16 %v683
        %v1016 = vunpack.c.h.b16 %v683
        %v1017 = vunpack.c.l.b16 %v684
        %v1018 = vunpack.c.h.b16 %v684
        %v1019 = vunpack.c.l.b16 %v685
        %v1020 = vunpack.c.h.b16 %v685
        %v1021 = vunpack.c.l.b16 %v686
        %v1022 = vunpack.c.h.b16 %v686
        %v1023 = vunpack.c.l.b16 %v687
        %v1024 = vunpack.c.h.b16 %v687
        %v1025 = vunpack.c.l.b16 %v688
        %v1026 = vunpack.c.h.b16 %v688
        %v1027 = vunpack.c.l.b16 %v689
        %v1028 = vunpack.c.h.b16 %v689
        %v1029 = vunpack.c.l.b16 %v690
        %v1030 = vunpack.c.h.b16 %v690
        %v1031 = vunpack.c.l.b16 %v691
        %v1032 = vunpack.c.h.b16 %v691
        %v1033 = vunpack.c.l.b16 %v692
        %v1034 = vunpack.c.h.b16 %v692
        %v1035 = vunpack.c.l.b16 %v693
        %v1036 = vunpack.c.h.b16 %v693
        %v1037 = vunpack.c.l.b16 %v694
        %v1038 = vunpack.c.h.b16 %v694
        %v1039 = vunpack.c.l.b16 %v695
        %v1040 = vunpack.c.h.b16 %v695
        %v1041 = vunpack.c.l.b16 %v696
        %v1042 = vunpack.c.h.b16 %v696
        %v1043 = vunpack.c.l.b16 %v697
        %v1044 = vunpack.c.h.b16 %v697
        %v1045 = vunpack.c.l.b16 %v698
        %v1046 = vunpack.c.h.b16 %v698
        %v1047 = vunpack.c.l.b16 %v699
        %v1048 = vunpack.c.h.b16 %v699
        %v1049 = vunpack.c.l.b16 %v700
        %v1050 = vunpack.c.h.b16 %v700
        %v1051 = vunpack.c.l.b16 %v701
        %v1052 = vunpack.c.h.b16 %v701
        %v1053 = vunpack.c.l.b16 %v702
        %v1054 = vunpack.c.h.b16 %v702
        %v1055 = vunpack.c.l.b16 %v703
        %v1056 = vunpack.c.h.b16 %v703
        %v1057 = vunpack.c.l.b16 %v704
        %v1058 = vunpack.c.h.b16 %v704
        %v1059 = vunpack.c.l.b16 %v705
        %v1060 = vunpack.c.h.b16 %v705
        %v1061 = vunpack.c.l.b16 %v706
        %v1062 = vunpack.c.h.b16 %v706
        %v1063 = vunpack.c.l.b16 %v707
        %v1064 = vunpack.c.h.b16 %v707
        %v1065 = vunpack.c.l.b16 %v708
        %v1066 = vunpack.c.h.b16 %v708
        %v1067 = vunpack.c.l.b16 %v709
        %v1068 = vunpack.c.h.b16 %v709
        %v1069 = vunpack.c.l.b16 %v710
        %v1070 = vunpack.c.h.b16 %v710
        %v1071 = vunpack.c.l.b16 %v711
        %v1072 = vunpack.c.h.b16 %v711
        %v1073 = vunpack.c.l.b16 %v712
        %v1074 = vunpack.c.h.b16 %v712
        %v1075 = vunpack.c.l.b16 %v713
        %v1076 = vunpack.c.h.b16 %v713
        %v1077 = vunpack.c.l.b16 %v714
        %v1078 = vunpack.c.h.b16 %v714
        %v1079 = vunpack.c.l.b16 %v715
        %v1080 = vunpack.c.h.b16 %v715
        %v1081 = vunpack.c.l.b16 %v716
        %v1082 = vunpack.c.h.b16 %v716
        %v1083 = vunpack.c.l.b16 %v717
        %v1084 = vunpack.c.h.b16 %v717
        %v1085 = vunpack.c.l.b16 %v718
        %v1086 = vunpack.c.h.b16 %v718
        %v1087 = vunpack.c.l.b16 %v719
        %v1088 = vunpack.c.h.b16 %v719
        %v1089 = vunpack.c.l.b16 %v720
        %v1090 = vunpack.c.h.b16 %v720
        %v1091 = vunpack.c.l.b16 %v721
        %v1092 = vunpack.c.h.b16 %v721
        %v1093 = vunpack.c.l.b16 %v722
        %v1094 = vunpack.c.h.b16 %v722
        %v1095 = vunpack.c.l.b16 %v723
        %v1096 = vunpack.c.h.b16 %v723
        %v1097 = vunpack.c.l.b16 %v724
        %v1098 = vunpack.c.h.b16 %v724
        %v1099 = vunpack.c.l.b16 %v725
        %v1100 = vunpack.c.h.b16 %v725
        %v1101 = vunpack.c.l.b16 %v726
        %v1102 = vunpack.c.h.b16 %v726
        %v1103 = vunpack.c.l.b16 %v727
        %v1104 = vunpack.c.h.b16 %v727
        %v1105 = vunpack.c.l.b16 %v728
        %v1106 = vunpack.c.h.b16 %v728
        %v1107 = vunpack.c.l.b16 %v729
        %v1108 = vunpack.c.h.b16 %v729
        %v1109 = vunpack.c.l.b16 %v730
        %v1110 = vunpack.c.h.b16 %v730
        %v1111 = vunpack.c.l.b16 %v731
        %v1112 = vunpack.c.h.b16 %v731
        %v1113 = vunpack.c.l.b16 %v732
        %v1114 = vunpack.c.h.b16 %v732
        %v1115 = vunpack.c.l.b16 %v733
        %v1116 = vunpack.c.h.b16 %v733
        %v1117 = vunpack.c.l.b16 %v734
        %v1118 = vunpack.c.h.b16 %v734
        %v1119 = vunpack.c.l.b16 %v735
        %v1120 = vunpack.c.h.b16 %v735
        %v1121 = vunpack.c.l.b16 %v736
        %v1122 = vunpack.c.h.b16 %v736
        %v1123 = vunpack.c.l.b16 %v737
        %v1124 = vunpack.c.h.b16 %v737
        %v1125 = vunpack.c.l.b16 %v738
        %v1126 = vunpack.c.h.b16 %v738
        %v1127 = vunpack.c.l.b16 %v739
        %v1128 = vunpack.c.h.b16 %v739
        %v1129 = vunpack.c.l.b16 %v740
        %v1130 = vunpack.c.h.b16 %v740
        %v1131 = vunpack.c.l.b16 %v741
        %v1132 = vunpack.c.h.b16 %v741
        %v1133 = vunpack.c.l.b16 %v742
        %v1134 = vunpack.c.h.b16 %v742
        %v1135 = vunpack.c.l.b16 %v743
        %v1136 = vunpack.c.h.b16 %v743
        %v1137 = vunpack.c.l.b16 %v744
        %v1138 = vunpack.c.h.b16 %v744
        %v1139 = vunpack.c.l.b16 %v745
        %v1140 = vunpack.c.h.b16 %v745
        %v1141 = vunpack.c.l.b16 %v746
        %v1142 = vunpack.c.h.b16 %v746
        %v1143 = vunpack.c.l.b16 %v747
        %v1144 = vunpack.c.h.b16 %v747
        %v1145 = vunpack.c.l.b16 %v748
        %v1146 = vunpack.c.h.b16 %v748
        %v1147 = vunpack.c.l.b16 %v749
        %v1148 = vunpack.c.h.b16 %v749
        %v1149 = vunpack.c.l.b16 %v750
        %v1150 = vunpack.c.h.b16 %v750
        %v1151 = vunpack.c.l.b16 %v751
        %v1152 = vunpack.c.h.b16 %v751
        %v1153 = vunpack.c.l.b16 %v752
        %v1154 = vunpack.c.h.b16 %v752
        %v1155 = vunpack.c.l.b16 %v753
        %v1156 = vunpack.c.h.b16 %v753
        %v1157 = vunpack.c.l.b16 %v754
        %v1158 = vunpack.c.h.b16 %v754
        %v1159 = vunpack.c.l.b16 %v755
        %v1160 = vunpack.c.h.b16 %v755
        %v1161 = vunpack.c.l.b16 %v756
        %v1162 = vunpack.c.h.b16 %v756
        %v1163 = vunpack.c.l.b16 %v757
        %v1164 = vunpack.c.h.b16 %v757
        %v1165 = vunpack.c.l.b16 %v758
        %v1166 = vunpack.c.h.b16 %v758
        %v1167 = vunpack.c.l.b16 %v759
        %v1168 = vunpack.c.h.b16 %v759
        %v1169 = vunpack.c.l.b16 %v760
        %v1170 = vunpack.c.h.b16 %v760
        %v1171 = vpack.c.b16 %v923, %v915
        %v1172 = vpack.c.b16 %v924, %v916
        %v1173 = vpack.c.b16 %v925, %v917
        %v1174 = vpack.c.b16 %v926, %v918
        %v1175 = vpack.c.b16 %v927, %v919
        %v1176 = vpack.c.b16 %v928, %v920
        %v1177 = vpack.c.b16 %v929, %v921
        %v1178 = vpack.c.b16 %v930, %v922
        %v1179 = vpack.c.b16 %v939, %v931
        %v1180 = vpack.c.b16 %v940, %v932
        %v1181 = vpack.c.b16 %v941, %v933
        %v1182 = vpack.c.b16 %v942, %v934
        %v1183 = vpack.c.b16 %v943, %v935
        %v1184 = vpack.c.b16 %v944, %v936
        %v1185 = vpack.c.b16 %v945, %v937
        %v1186 = vpack.c.b16 %v946, %v938
        %v1187 = vpack.c.b16 %v955, %v947
        %v1188 = vpack.c.b16 %v956, %v948
        %v1189 = vpack.c.b16 %v957, %v949
        %v1190 = vpack.c.b16 %v958, %v950
        %v1191 = vpack.c.b16 %v959, %v951
        %v1192 = vpack.c.b16 %v960, %v952
        %v1193 = vpack.c.b16 %v961, %v953
        %v1194 = vpack.c.b16 %v962, %v954
        %v1195 = vpack.c.b16 %v971, %v963
        %v1196 = vpack.c.b16 %v972, %v964
        %v1197 = vpack.c.b16 %v973, %v965
        %v1198 = vpack.c.b16 %v974, %v966
        %v1199 = vpack.c.b16 %v975, %v967
        %v1200 = vpack.c.b16 %v976, %v968
        %v1201 = vpack.c.b16 %v977, %v969
        %v1202 = vpack.c.b16 %v978, %v970
        %v1203 = vpack.c.b16 %v987, %v979
        %v1204 = vpack.c.b16 %v988, %v980
        %v1205 = vpack.c.b16 %v989, %v981
        %v1206 = vpack.c.b16 %v990, %v982
        %v1207 = vpack.c.b16 %v991, %v983
        %v1208 = vpack.c.b16 %v992, %v984
        %v1209 = vpack.c.b16 %v993, %v985
        %v1210 = vpack.c.b16 %v994, %v986
        %v1211 = vpack.c.b16 %v1003, %v995
        %v1212 = vpack.c.b16 %v1004, %v996
        %v1213 = vpack.c.b16 %v1005, %v997
        %v1214 = vpack.c.b16 %v1006, %v998
        %v1215 = vpack.c.b16 %v1007, %v999
        %v1216 = vpack.c.b16 %v1008, %v1000
        %v1217 = vpack.c.b16 %v1009, %v1001
        %v1218 = vpack.c.b16 %v1010, %v1002
        %v1219 = vpack.c.b16 %v1019, %v1011
        %v1220 = vpack.c.b16 %v1020, %v1012
        %v1221 = vpack.c.b16 %v1021, %v1013
        %v1222 = vpack.c.b16 %v1022, %v1014
        %v1223 = vpack.c.b16 %v1023, %v1015
        %v1224 = vpack.c.b16 %v1024, %v1016
        %v1225 = vpack.c.b16 %v1025, %v1017
        %v1226 = vpack.c.b16 %v1026, %v1018
        %v1227 = vpack.c.b16 %v1035, %v1027
        %v1228 = vpack.c.b16 %v1036, %v1028
        %v1229 = vpack.c.b16 %v1037, %v1029
        %v1230 = vpack.c.b16 %v1038, %v1030
        %v1231 = vpack.c.b16 %v1039, %v1031
        %v1232 = vpack.c.b16 %v1040, %v1032
        %v1233 = vpack.c.b16 %v1041, %v1033
        %v1234 = vpack.c.b16 %v1042, %v1034
        %v1235 = vpack.c.b16 %v1051, %v1043
        %v1236 = vpack.c.b16 %v1052, %v1044
        %v1237 = vpack.c.b16 %v1053, %v1045
        %v1238 = vpack.c.b16 %v1054, %v1046
        %v1239 = vpack.c.b16 %v1055, %v1047
        %v1240 = vpack.c.b16 %v1056, %v1048
        %v1241 = vpack.c.b16 %v1057, %v1049
        %v1242 = vpack.c.b16 %v1058, %v1050
        %v1243 = vpack.c.b16 %v1067, %v1059
        %v1244 = vpack.c.b16 %v1068, %v1060
        %v1245 = vpack.c.b16 %v1069, %v1061
        %v1246 = vpack.c.b16 %v1070, %v1062
        %v1247 = vpack.c.b16 %v1071, %v1063
        %v1248 = vpack.c.b16 %v1072, %v1064
        %v1249 = vpack.c.b16 %v1073, %v1065
        %v1250 = vpack.c.b16 %v1074, %v1066
        %v1251 = vpack.c.b16 %v1083, %v1075
        %v1252 = vpack.c.b16 %v1084, %v1076
        %v1253 = vpack.c.b16 %v1085, %v1077
        %v1254 = vpack.c.b16 %v1086, %v1078
        %v1255 = vpack.c.b16 %v1087, %v1079
        %v1256 = vpack.c.b16 %v1088, %v1080
        %v1257 = vpack.c.b16 %v1089, %v1081
        %v1258 = vpack.c.b16 %v1090, %v1082
        %v1259 = vpack.c.b16 %v1099, %v1091
        %v1260 = vpack.c.b16 %v1100, %v1092
        %v1261 = vpack.c.b16 %v1101, %v1093
        %v1262 = vpack.c.b16 %v1102, %v1094
        %v1263 = vpack.c.b16 %v1103, %v1095
        %v1264 = vpack.c.b16 %v1104, %v1096
        %v1265 = vpack.c.b16 %v1105, %v1097
        %v1266 = vpack.c.b16 %v1106, %v1098
        %v1267 = vpack.c.b16 %v1115, %v1107
        %v1268 = vpack.c.b16 %v1116, %v1108
        %v1269 = vpack.c.b16 %v1117, %v1109
        %v1270 = vpack.c.b16 %v1118, %v1110
        %v1271 = vpack.c.b16 %v1119, %v1111
        %v1272 = vpack.c.b16 %v1120, %v1112
        %v1273 = vpack.c.b16 %v1121, %v1113
        %v1274 = vpack.c.b16 %v1122, %v1114
        %v1275 = vpack.c.b16 %v1131, %v1123
        %v1276 = vpack.c.b16 %v1132, %v1124
        %v1277 = vpack.c.b16 %v1133, %v1125
        %v1278 = vpack.c.b16 %v1134, %v1126
        %v1279 = vpack.c.b16 %v1135, %v1127
        %v1280 = vpack.c.b16 %v1136, %v1128
        %v1281 = vpack.c.b16 %v1137, %v1129
        %v1282 = vpack.c.b16 %v1138, %v1130
        %v1283 = vpack.c.b16 %v1147, %v1139
        %v1284 = vpack.c.b16 %v1148, %v1140
        %v1285 = vpack.c.b16 %v1149, %v1141
        %v1286 = vpack.c.b16 %v1150, %v1142
        %v1287 = vpack.c.b16 %v1151, %v1143
        %v1288 = vpack.c.b16 %v1152, %v1144
        %v1289 = vpack.c.b16 %v1153, %v1145
        %v1290 = vpack.c.b16 %v1154, %v1146
        %v1291 = vpack.c.b16 %v1163, %v1155
        %v1292 = vpack.c.b16 %v1164, %v1156
        %v1293 = vpack.c.b16 %v1165, %v1157
        %v1294 = vpack.c.b16 %v1166, %v1158
        %v1295 = vpack.c.b16 %v1167, %v1159
        %v1296 = vpack.c.b16 %v1168, %v1160
        %v1297 = vpack.c.b16 %v1169, %v1161
        %v1298 = vpack.c.b16 %v1170, %v1162
        %1427 = vmatprep.subr.bf16.mxu0 %v1172
        %1428 = vmatpush1.bf16.msra.mxu0 %v1171
        %1429 = vmatprep.subr.bf16.mxu0 %v1180
        %1430 = vmatpush1.bf16.msra.mxu0 %v1179
        %1431 = vmatprep.subr.bf16.mxu0 %v1188
        %1432 = vmatpush1.bf16.msra.mxu0 %v1187
        %1433 = vmatprep.subr.bf16.mxu0 %v1196
        %1434 = vmatpush1.bf16.msra.mxu0 %v1195
        %1435 = vmatprep.subr.bf16.mxu0 %v1204
        %1436 = vmatpush1.bf16.msra.mxu0 %v1203
        %1437 = vmatprep.subr.bf16.mxu0 %v1212
        %1438 = vmatpush1.bf16.msra.mxu0 %v1211
        %1439 = vmatprep.subr.bf16.mxu0 %v1220
        %1440 = vmatpush1.bf16.msra.mxu0 %v1219
        %1441 = vmatprep.subr.bf16.mxu0 %v1228
        %1442 = vmatpush1.bf16.msra.mxu0 %v1227
        %1443 = vmatprep.subr.bf16.mxu0 %v1236
        %1444 = vmatpush1.bf16.msra.mxu0 %v1235
        %1445 = vmatprep.subr.bf16.mxu0 %v1244
        %1446 = vmatpush1.bf16.msra.mxu0 %v1243
        %1447 = vmatprep.subr.bf16.mxu0 %v1252
        %1448 = vmatpush1.bf16.msra.mxu0 %v1251
        %1449 = vmatprep.subr.bf16.mxu0 %v1260
        %1450 = vmatpush1.bf16.msra.mxu0 %v1259
        %1451 = vmatprep.subr.bf16.mxu0 %v1268
        %1452 = vmatpush1.bf16.msra.mxu0 %v1267
        %1453 = vmatprep.subr.bf16.mxu0 %v1276
        %1454 = vmatpush1.bf16.msra.mxu0 %v1275
        %1455 = vmatprep.subr.bf16.mxu0 %v1284
        %1456 = vmatpush1.bf16.msra.mxu0 %v1283
        %1457 = vmatprep.subr.bf16.mxu0 %v1292
        %1458 = vmatpush1.bf16.msra.mxu0 %v1291
        %1459 = vmatprep.mubr.bf16.mxu0 %v786
        %1460 = vmatmul.mubr.bf16.gmra.mrb[0].mxu0 %v785
        %v1461 = vpop.f32.mrb[0].mxu0
        %v1462 = vadd.f32 0.0, %v1461
        %v1463 = vpop.f32.mrb[0].mxu0
        %v1464 = vadd.f32 0.0, %v1463
        %v1465 = vpop.f32.mrb[0].mxu0
        %v1466 = vpop.f32.mrb[0].mxu0
        %1467 = vdwg.mxu0
        %1468 = vmatprep.subr.bf16.mxu0 %v1174
        %1469 = vmatpush1.bf16.msra.mxu0 %v1173
        %1470 = vmatprep.subr.bf16.mxu0 %v1182
        %1471 = vmatpush1.bf16.msra.mxu0 %v1181
        %1472 = vmatprep.subr.bf16.mxu0 %v1190
        %1473 = vmatpush1.bf16.msra.mxu0 %v1189
        %1474 = vmatprep.subr.bf16.mxu0 %v1198
        %1475 = vmatpush1.bf16.msra.mxu0 %v1197
        %1476 = vmatprep.subr.bf16.mxu0 %v1206
        %1477 = vmatpush1.bf16.msra.mxu0 %v1205
        %1478 = vmatprep.subr.bf16.mxu0 %v1214
        %1479 = vmatpush1.bf16.msra.mxu0 %v1213
        %1480 = vmatprep.subr.bf16.mxu0 %v1222
        %1481 = vmatpush1.bf16.msra.mxu0 %v1221
        %1482 = vmatprep.subr.bf16.mxu0 %v1230
        %1483 = vmatpush1.bf16.msra.mxu0 %v1229
        %1484 = vmatprep.subr.bf16.mxu0 %v1238
        %1485 = vmatpush1.bf16.msra.mxu0 %v1237
        %1486 = vmatprep.subr.bf16.mxu0 %v1246
        %1487 = vmatpush1.bf16.msra.mxu0 %v1245
        %1488 = vmatprep.subr.bf16.mxu0 %v1254
        %1489 = vmatpush1.bf16.msra.mxu0 %v1253
        %1490 = vmatprep.subr.bf16.mxu0 %v1262
        %1491 = vmatpush1.bf16.msra.mxu0 %v1261
        %1492 = vmatprep.subr.bf16.mxu0 %v1270
        %1493 = vmatpush1.bf16.msra.mxu0 %v1269
        %1494 = vmatprep.subr.bf16.mxu0 %v1278
        %1495 = vmatpush1.bf16.msra.mxu0 %v1277
        %1496 = vmatprep.subr.bf16.mxu0 %v1286
        %1497 = vmatpush1.bf16.msra.mxu0 %v1285
        %1498 = vmatprep.subr.bf16.mxu0 %v1294
        %1499 = vmatpush1.bf16.msra.mxu0 %v1293
        %1500 = vmatprep.mubr.bf16.mxu0 %v786
        %1501 = vmatmul.mubr.bf16.gmra.mrb[0].mxu0 %v785
        %v1502 = vpop.f32.mrb[0].mxu0
        %v1503 = vadd.f32 0.0, %v1502
        %v1504 = vpop.f32.mrb[0].mxu0
        %v1505 = vadd.f32 0.0, %v1504
        %v1506 = vpop.f32.mrb[0].mxu0
        %v1507 = vpop.f32.mrb[0].mxu0
        %1508 = vdwg.mxu0
        %1509 = vmatprep.subr.bf16.mxu0 %v1176
        %1510 = vmatpush1.bf16.msra.mxu0 %v1175
        %1511 = vmatprep.subr.bf16.mxu0 %v1184
        %1512 = vmatpush1.bf16.msra.mxu0 %v1183
        %1513 = vmatprep.subr.bf16.mxu0 %v1192
        %1514 = vmatpush1.bf16.msra.mxu0 %v1191
        %1515 = vmatprep.subr.bf16.mxu0 %v1200
        %1516 = vmatpush1.bf16.msra.mxu0 %v1199
        %1517 = vmatprep.subr.bf16.mxu0 %v1208
        %1518 = vmatpush1.bf16.msra.mxu0 %v1207
        %1519 = vmatprep.subr.bf16.mxu0 %v1216
        %1520 = vmatpush1.bf16.msra.mxu0 %v1215
        %1521 = vmatprep.subr.bf16.mxu0 %v1224
        %1522 = vmatpush1.bf16.msra.mxu0 %v1223
        %1523 = vmatprep.subr.bf16.mxu0 %v1232
        %1524 = vmatpush1.bf16.msra.mxu0 %v1231
        %1525 = vmatprep.subr.bf16.mxu0 %v1240
        %1526 = vmatpush1.bf16.msra.mxu0 %v1239
        %1527 = vmatprep.subr.bf16.mxu0 %v1248
        %1528 = vmatpush1.bf16.msra.mxu0 %v1247
        %1529 = vmatprep.subr.bf16.mxu0 %v1256
        %1530 = vmatpush1.bf16.msra.mxu0 %v1255
        %1531 = vmatprep.subr.bf16.mxu0 %v1264
        %1532 = vmatpush1.bf16.msra.mxu0 %v1263
        %1533 = vmatprep.subr.bf16.mxu0 %v1272
        %1534 = vmatpush1.bf16.msra.mxu0 %v1271
        %1535 = vmatprep.subr.bf16.mxu0 %v1280
        %1536 = vmatpush1.bf16.msra.mxu0 %v1279
        %1537 = vmatprep.subr.bf16.mxu0 %v1288
        %1538 = vmatpush1.bf16.msra.mxu0 %v1287
        %1539 = vmatprep.subr.bf16.mxu0 %v1296
        %1540 = vmatpush1.bf16.msra.mxu0 %v1295
        %1541 = vmatprep.mubr.bf16.mxu0 %v786
        %1542 = vmatmul.mubr.bf16.gmra.mrb[0].mxu0 %v785
        %v1543 = vpop.f32.mrb[0].mxu0
        %v1544 = vadd.f32 0.0, %v1543
        %v1545 = vpop.f32.mrb[0].mxu0
        %v1546 = vadd.f32 0.0, %v1545
        %v1547 = vpop.f32.mrb[0].mxu0
        %v1548 = vpop.f32.mrb[0].mxu0
        %1549 = vdwg.mxu0
        %1550 = vmatprep.subr.bf16.mxu0 %v1178
        %1551 = vmatpush1.bf16.msra.mxu0 %v1177
        %1552 = vmatprep.subr.bf16.mxu0 %v1186
        %1553 = vmatpush1.bf16.msra.mxu0 %v1185
        %1554 = vmatprep.subr.bf16.mxu0 %v1194
        %1555 = vmatpush1.bf16.msra.mxu0 %v1193
        %1556 = vmatprep.subr.bf16.mxu0 %v1202
        %1557 = vmatpush1.bf16.msra.mxu0 %v1201
        %1558 = vmatprep.subr.bf16.mxu0 %v1210
        %1559 = vmatpush1.bf16.msra.mxu0 %v1209
        %1560 = vmatprep.subr.bf16.mxu0 %v1218
        %1561 = vmatpush1.bf16.msra.mxu0 %v1217
        %1562 = vmatprep.subr.bf16.mxu0 %v1226
        %1563 = vmatpush1.bf16.msra.mxu0 %v1225
        %1564 = vmatprep.subr.bf16.mxu0 %v1234
        %1565 = vmatpush1.bf16.msra.mxu0 %v1233
        %1566 = vmatprep.subr.bf16.mxu0 %v1242
        %1567 = vmatpush1.bf16.msra.mxu0 %v1241
        %1568 = vmatprep.subr.bf16.mxu0 %v1250
        %1569 = vmatpush1.bf16.msra.mxu0 %v1249
        %1570 = vmatprep.subr.bf16.mxu0 %v1258
        %1571 = vmatpush1.bf16.msra.mxu0 %v1257
        %1572 = vmatprep.subr.bf16.mxu0 %v1266
        %1573 = vmatpush1.bf16.msra.mxu0 %v1265
        %1574 = vmatprep.subr.bf16.mxu0 %v1274
        %1575 = vmatpush1.bf16.msra.mxu0 %v1273
        %1576 = vmatprep.subr.bf16.mxu0 %v1282
        %1577 = vmatpush1.bf16.msra.mxu0 %v1281
        %1578 = vmatprep.subr.bf16.mxu0 %v1290
        %1579 = vmatpush1.bf16.msra.mxu0 %v1289
        %1580 = vmatprep.subr.bf16.mxu0 %v1298
        %1581 = vmatpush1.bf16.msra.mxu0 %v1297
        %1582 = vmatprep.mubr.bf16.mxu0 %v786
        %1583 = vmatmul.mubr.bf16.gmra.mrb[0].mxu0 %v785
        %v1584 = vpop.f32.mrb[0].mxu0
        %v1585 = vadd.f32 0.0, %v1584
        %v1586 = vpop.f32.mrb[0].mxu0
        %v1587 = vadd.f32 0.0, %v1586
        %v1588 = vpop.f32.mrb[0].mxu0
        %v1589 = vpop.f32.mrb[0].mxu0
        %1590 = vdwg.mxu0
        %v1592 = vlaneseq
        %v1593 = vshrl.u32 %v1592, 7
        %v1594 = vsub.s32 0, %v1593
        %v1595 = vrot.slane %v632, %v1594
        %v1596 = vlaneseq
        %v1597 = vshrl.u32 %v1596, 7
        %v1598 = vsub.s32 1, %v1597
        %v1599 = vrot.slane %v632, %v1598
        %v1600 = vlaneseq
        %v1601 = vshrl.u32 %v1600, 7
        %v1602 = vsub.s32 2, %v1601
        %v1603 = vrot.slane %v632, %v1602
        %v1604 = vlaneseq
        %v1605 = vshrl.u32 %v1604, 7
        %v1606 = vsub.s32 3, %v1605
        %v1607 = vrot.slane %v632, %v1606
        %v1612 = vadd.f32 %v1544, %v1595
        %v1613 = vadd.f32 %v1546, %v1599
        %v1614 = vadd.f32 %v1585, %v1603
        %v1615 = vadd.f32 %v1587, %v1607
        %v1616 = vxor.u32 %v1612, 2147483648
        %v1617 = vxor.u32 %v1613, 2147483648
        %v1618 = vxor.u32 %v1614, 2147483648
        %v1619 = vmul.f32 %v1616, 1.442695
        %v1620 = vpow.pop %v1619
        %v1621 = vmul.f32 %v1617, 1.442695
        %v1622 = vpow.pop %v1621
        %v1623 = vmul.f32 %v1618, 1.442695
        %v1624 = vpow.pop %v1623
        %v1625 = vadd.f32 %v1620, 1.0
        %v1626 = vadd.f32 %v1622, 1.0
        %v1627 = vadd.f32 %v1624, 1.0
        %v1628 = vrcp.pop %v1625
        %v1629 = vmul.f32 1.0, %v1628
        %v1630 = vrcp.pop %v1626
        %v1631 = vmul.f32 1.0, %v1630
        %v1632 = vrcp.pop %v1627
        %v1633 = vmul.f32 1.0, %v1632
        %v1634 = vtanh.pop %v1615
        %v1635 = vmul.f32 %v1631, 0.0
        %v1636 = vmul.f32 %v1629, %v1634
        %v1637 = vadd.f32 %v1635, %v1636
        %v1638 = vtanh.pop %v1637
        %v1639 = vmul.f32 %v1633, %v1638
        %1640 = vst [vmem:[#allocation2] sm:$0xff] %v1639
        %v1641 = vadd.f32 %v525, %v1462
        %v1642 = vadd.f32 %v527, %v1464
        %v1643 = vadd.f32 %v598, %v1503
        %v1644 = vadd.f32 %v600, %v1505
        %v1645 = vxor.u32 %v1641, 2147483648
        %v1646 = vxor.u32 %v1642, 2147483648
        %v1647 = vxor.u32 %v1643, 2147483648
        %v1648 = vmul.f32 %v1645, 1.442695
        %v1649 = vpow.pop %v1648
        %v1650 = vmul.f32 %v1646, 1.442695
        %v1651 = vpow.pop %v1650
        %v1652 = vmul.f32 %v1647, 1.442695
        %v1653 = vpow.pop %v1652
        %v1654 = vadd.f32 %v1649, 1.0
        %v1655 = vadd.f32 %v1651, 1.0
        %v1656 = vadd.f32 %v1653, 1.0
        %v1657 = vrcp.pop %v1654
        %v1658 = vmul.f32 1.0, %v1657
        %v1659 = vrcp.pop %v1655
        %v1660 = vmul.f32 1.0, %v1659
        %v1661 = vrcp.pop %v1656
        %v1662 = vmul.f32 1.0, %v1661
        %v1663 = vtanh.pop %v1644
        %v1664 = vmul.f32 %v1660, %v782
        %v1665 = vmul.f32 %v1658, %v1663
        %v1666 = vadd.f32 %v1664, %v1665
        %v1667 = vtanh.pop %v1666
        %v1668 = vmul.f32 %v1662, %v1667
        %v1669 = vpack.c.bf16 %v1668, %v1668
        %v1670 = vpack.c.bf16 %v1639, %v1639
        %1671 = vmatprep.subr.bf16.mxu0 %v1172
        %1672 = vmatpush1.bf16.msra.mxu0 %v1171
        %1673 = vmatprep.subr.bf16.mxu0 %v1180
        %1674 = vmatpush1.bf16.msra.mxu0 %v1179
        %1675 = vmatprep.subr.bf16.mxu0 %v1188
        %1676 = vmatpush1.bf16.msra.mxu0 %v1187
        %1677 = vmatprep.subr.bf16.mxu0 %v1196
        %1678 = vmatpush1.bf16.msra.mxu0 %v1195
        %1679 = vmatprep.subr.bf16.mxu0 %v1204
        %1680 = vmatpush1.bf16.msra.mxu0 %v1203
        %1681 = vmatprep.subr.bf16.mxu0 %v1212
        %1682 = vmatpush1.bf16.msra.mxu0 %v1211
        %1683 = vmatprep.subr.bf16.mxu0 %v1220
        %1684 = vmatpush1.bf16.msra.mxu0 %v1219
        %1685 = vmatprep.subr.bf16.mxu0 %v1228
        %1686 = vmatpush1.bf16.msra.mxu0 %v1227
        %1687 = vmatprep.subr.bf16.mxu0 %v1236
        %1688 = vmatpush1.bf16.msra.mxu0 %v1235
        %1689 = vmatprep.subr.bf16.mxu0 %v1244
        %1690 = vmatpush1.bf16.msra.mxu0 %v1243
        %1691 = vmatprep.subr.bf16.mxu0 %v1252
        %1692 = vmatpush1.bf16.msra.mxu0 %v1251
        %1693 = vmatprep.subr.bf16.mxu0 %v1260
        %1694 = vmatpush1.bf16.msra.mxu0 %v1259
        %1695 = vmatprep.subr.bf16.mxu0 %v1268
        %1696 = vmatpush1.bf16.msra.mxu0 %v1267
        %1697 = vmatprep.subr.bf16.mxu0 %v1276
        %1698 = vmatpush1.bf16.msra.mxu0 %v1275
        %1699 = vmatprep.subr.bf16.mxu0 %v1284
        %1700 = vmatpush1.bf16.msra.mxu0 %v1283
        %1701 = vmatprep.subr.bf16.mxu0 %v1292
        %1702 = vmatpush1.bf16.msra.mxu0 %v1291
        %1703 = vmatprep.mubr.bf16.mxu0 %v1670
        %1704 = vmatmul.mubr.bf16.gmra.mrb[0].mxu0 %v1669
        %v1705 = vpop.f32.mrb[0].mxu0
        %v1706 = vadd.f32 0.0, %v1705
        %v1707 = vpop.f32.mrb[0].mxu0
        %v1708 = vadd.f32 0.0, %v1707
        %v1709 = vpop.f32.mrb[0].mxu0
        %v1710 = vpop.f32.mrb[0].mxu0
        %1711 = vdwg.mxu0
        %1712 = vmatprep.subr.bf16.mxu0 %v1174
        %1713 = vmatpush1.bf16.msra.mxu0 %v1173
        %1714 = vmatprep.subr.bf16.mxu0 %v1182
        %1715 = vmatpush1.bf16.msra.mxu0 %v1181
        %1716 = vmatprep.subr.bf16.mxu0 %v1190
        %1717 = vmatpush1.bf16.msra.mxu0 %v1189
        %1718 = vmatprep.subr.bf16.mxu0 %v1198
        %1719 = vmatpush1.bf16.msra.mxu0 %v1197
        %1720 = vmatprep.subr.bf16.mxu0 %v1206
        %1721 = vmatpush1.bf16.msra.mxu0 %v1205
        %1722 = vmatprep.subr.bf16.mxu0 %v1214
        %1723 = vmatpush1.bf16.msra.mxu0 %v1213
        %1724 = vmatprep.subr.bf16.mxu0 %v1222
        %1725 = vmatpush1.bf16.msra.mxu0 %v1221
        %1726 = vmatprep.subr.bf16.mxu0 %v1230
        %1727 = vmatpush1.bf16.msra.mxu0 %v1229
        %1728 = vmatprep.subr.bf16.mxu0 %v1238
        %1729 = vmatpush1.bf16.msra.mxu0 %v1237
        %1730 = vmatprep.subr.bf16.mxu0 %v1246
        %1731 = vmatpush1.bf16.msra.mxu0 %v1245
        %1732 = vmatprep.subr.bf16.mxu0 %v1254
        %1733 = vmatpush1.bf16.msra.mxu0 %v1253
        %1734 = vmatprep.subr.bf16.mxu0 %v1262
        %1735 = vmatpush1.bf16.msra.mxu0 %v1261
        %1736 = vmatprep.subr.bf16.mxu0 %v1270
        %1737 = vmatpush1.bf16.msra.mxu0 %v1269
        %1738 = vmatprep.subr.bf16.mxu0 %v1278
        %1739 = vmatpush1.bf16.msra.mxu0 %v1277
        %1740 = vmatprep.subr.bf16.mxu0 %v1286
        %1741 = vmatpush1.bf16.msra.mxu0 %v1285
        %1742 = vmatprep.subr.bf16.mxu0 %v1294
        %1743 = vmatpush1.bf16.msra.mxu0 %v1293
        %1744 = vmatprep.mubr.bf16.mxu0 %v1670
        %1745 = vmatmul.mubr.bf16.gmra.mrb[0].mxu0 %v1669
        %v1746 = vpop.f32.mrb[0].mxu0
        %v1747 = vadd.f32 0.0, %v1746
        %v1748 = vpop.f32.mrb[0].mxu0
        %v1749 = vadd.f32 0.0, %v1748
        %v1750 = vpop.f32.mrb[0].mxu0
        %v1751 = vpop.f32.mrb[0].mxu0
        %1752 = vdwg.mxu0
        %1753 = vmatprep.subr.bf16.mxu0 %v1176
        %1754 = vmatpush1.bf16.msra.mxu0 %v1175
        %1755 = vmatprep.subr.bf16.mxu0 %v1184
        %1756 = vmatpush1.bf16.msra.mxu0 %v1183
        %1757 = vmatprep.subr.bf16.mxu0 %v1192
        %1758 = vmatpush1.bf16.msra.mxu0 %v1191
        %1759 = vmatprep.subr.bf16.mxu0 %v1200
        %1760 = vmatpush1.bf16.msra.mxu0 %v1199
        %1761 = vmatprep.subr.bf16.mxu0 %v1208
        %1762 = vmatpush1.bf16.msra.mxu0 %v1207
        %1763 = vmatprep.subr.bf16.mxu0 %v1216
        %1764 = vmatpush1.bf16.msra.mxu0 %v1215
        %1765 = vmatprep.subr.bf16.mxu0 %v1224
        %1766 = vmatpush1.bf16.msra.mxu0 %v1223
        %1767 = vmatprep.subr.bf16.mxu0 %v1232
        %1768 = vmatpush1.bf16.msra.mxu0 %v1231
        %1769 = vmatprep.subr.bf16.mxu0 %v1240
        %1770 = vmatpush1.bf16.msra.mxu0 %v1239
        %1771 = vmatprep.subr.bf16.mxu0 %v1248
        %1772 = vmatpush1.bf16.msra.mxu0 %v1247
        %1773 = vmatprep.subr.bf16.mxu0 %v1256
        %1774 = vmatpush1.bf16.msra.mxu0 %v1255
        %1775 = vmatprep.subr.bf16.mxu0 %v1264
        %1776 = vmatpush1.bf16.msra.mxu0 %v1263
        %1777 = vmatprep.subr.bf16.mxu0 %v1272
        %1778 = vmatpush1.bf16.msra.mxu0 %v1271
        %1779 = vmatprep.subr.bf16.mxu0 %v1280
        %1780 = vmatpush1.bf16.msra.mxu0 %v1279
        %1781 = vmatprep.subr.bf16.mxu0 %v1288
        %1782 = vmatpush1.bf16.msra.mxu0 %v1287
        %1783 = vmatprep.subr.bf16.mxu0 %v1296
        %1784 = vmatpush1.bf16.msra.mxu0 %v1295
        %1785 = vmatprep.mubr.bf16.mxu0 %v1670
        %1786 = vmatmul.mubr.bf16.gmra.mrb[0].mxu0 %v1669
        %v1787 = vpop.f32.mrb[0].mxu0
        %v1788 = vadd.f32 0.0, %v1787
        %v1789 = vpop.f32.mrb[0].mxu0
        %v1790 = vadd.f32 0.0, %v1789
        %v1791 = vpop.f32.mrb[0].mxu0
        %v1792 = vpop.f32.mrb[0].mxu0
        %1793 = vdwg.mxu0
        %1794 = vmatprep.subr.bf16.mxu0 %v1178
        %1795 = vmatpush1.bf16.msra.mxu0 %v1177
        %1796 = vmatprep.subr.bf16.mxu0 %v1186
        %1797 = vmatpush1.bf16.msra.mxu0 %v1185
        %1798 = vmatprep.subr.bf16.mxu0 %v1194
        %1799 = vmatpush1.bf16.msra.mxu0 %v1193
        %1800 = vmatprep.subr.bf16.mxu0 %v1202
        %1801 = vmatpush1.bf16.msra.mxu0 %v1201
        %1802 = vmatprep.subr.bf16.mxu0 %v1210
        %1803 = vmatpush1.bf16.msra.mxu0 %v1209
        %1804 = vmatprep.subr.bf16.mxu0 %v1218
        %1805 = vmatpush1.bf16.msra.mxu0 %v1217
        %1806 = vmatprep.subr.bf16.mxu0 %v1226
        %1807 = vmatpush1.bf16.msra.mxu0 %v1225
        %1808 = vmatprep.subr.bf16.mxu0 %v1234
        %1809 = vmatpush1.bf16.msra.mxu0 %v1233
        %1810 = vmatprep.subr.bf16.mxu0 %v1242
        %1811 = vmatpush1.bf16.msra.mxu0 %v1241
        %1812 = vmatprep.subr.bf16.mxu0 %v1250
        %1813 = vmatpush1.bf16.msra.mxu0 %v1249
        %1814 = vmatprep.subr.bf16.mxu0 %v1258
        %1815 = vmatpush1.bf16.msra.mxu0 %v1257
        %1816 = vmatprep.subr.bf16.mxu0 %v1266
        %1817 = vmatpush1.bf16.msra.mxu0 %v1265
        %1818 = vmatprep.subr.bf16.mxu0 %v1274
        %1819 = vmatpush1.bf16.msra.mxu0 %v1273
        %1820 = vmatprep.subr.bf16.mxu0 %v1282
        %1821 = vmatpush1.bf16.msra.mxu0 %v1281
        %1822 = vmatprep.subr.bf16.mxu0 %v1290
        %1823 = vmatpush1.bf16.msra.mxu0 %v1289
        %1824 = vmatprep.subr.bf16.mxu0 %v1298
        %1825 = vmatpush1.bf16.msra.mxu0 %v1297
        %1826 = vmatprep.mubr.bf16.mxu0 %v1670
        %1827 = vmatmul.mubr.bf16.gmra.mrb[0].mxu0 %v1669
        %v1828 = vpop.f32.mrb[0].mxu0
        %v1829 = vadd.f32 0.0, %v1828
        %v1830 = vpop.f32.mrb[0].mxu0
        %v1831 = vadd.f32 0.0, %v1830
        %v1832 = vpop.f32.mrb[0].mxu0
        %v1833 = vpop.f32.mrb[0].mxu0
        %1834 = vdwg.mxu0
        %v1835 = vadd.f32 %v1788, %v1595
        %v1836 = vadd.f32 %v1790, %v1599
        %v1837 = vadd.f32 %v1829, %v1603
        %v1838 = vadd.f32 %v1831, %v1607
        %v1839 = vxor.u32 %v1835, 2147483648
        %v1840 = vxor.u32 %v1836, 2147483648
        %v1841 = vxor.u32 %v1837, 2147483648
        %v1842 = vmul.f32 %v1839, 1.442695
        %v1843 = vpow.pop %v1842
        %v1844 = vmul.f32 %v1840, 1.442695
        %v1845 = vpow.pop %v1844
        %v1846 = vmul.f32 %v1841, 1.442695
        %v1847 = vpow.pop %v1846
        %v1848 = vadd.f32 %v1843, 1.0
        %v1849 = vadd.f32 %v1845, 1.0
        %v1850 = vadd.f32 %v1847, 1.0
        %v1851 = vrcp.pop %v1848
        %v1852 = vmul.f32 1.0, %v1851
        %v1853 = vrcp.pop %v1849
        %v1854 = vmul.f32 1.0, %v1853
        %v1855 = vrcp.pop %v1850
        %v1856 = vmul.f32 1.0, %v1855
        %v1857 = vtanh.pop %v1838
        %v1858 = vmul.f32 %v1854, %v1637
        %v1859 = vmul.f32 %v1852, %v1857
        %v1860 = vadd.f32 %v1858, %v1859
        %v1861 = vtanh.pop %v1860
        %v1862 = vmul.f32 %v1856, %v1861
        %1863 = vst [vmem:[#allocation2 + $0x8] sm:$0xff] %v1862
        %v1864 = vadd.f32 %v531, %v1706
        %v1865 = vadd.f32 %v533, %v1708
        %v1866 = vadd.f32 %v604, %v1747
        %v1867 = vadd.f32 %v606, %v1749
        %v1868 = vxor.u32 %v1864, 2147483648
        %v1869 = vxor.u32 %v1865, 2147483648
        %v1870 = vxor.u32 %v1866, 2147483648
        %v1871 = vmul.f32 %v1868, 1.442695
        %v1872 = vpow.pop %v1871
        %v1873 = vmul.f32 %v1869, 1.442695
        %v1874 = vpow.pop %v1873
        %v1875 = vmul.f32 %v1870, 1.442695
        %v1876 = vpow.pop %v1875
        %v1877 = vadd.f32 %v1872, 1.0
        %v1878 = vadd.f32 %v1874, 1.0
        %v1879 = vadd.f32 %v1876, 1.0
        %v1880 = vrcp.pop %v1877
        %v1881 = vmul.f32 1.0, %v1880
        %v1882 = vrcp.pop %v1878
        %v1883 = vmul.f32 1.0, %v1882
        %v1884 = vrcp.pop %v1879
        %v1885 = vmul.f32 1.0, %v1884
        %v1886 = vtanh.pop %v1867
        %v1887 = vmul.f32 %v1883, %v1666
        %v1888 = vmul.f32 %v1881, %v1886
        %v1889 = vadd.f32 %v1887, %v1888
        %v1890 = vtanh.pop %v1889
        %v1891 = vmul.f32 %v1885, %v1890
        %v1892 = vpack.c.bf16 %v1891, %v1891
        %v1893 = vpack.c.bf16 %v1862, %v1862
        %1894 = vmatprep.subr.bf16.mxu0 %v1172
        %1895 = vmatpush1.bf16.msra.mxu0 %v1171
        %1896 = vmatprep.subr.bf16.mxu0 %v1180
        %1897 = vmatpush1.bf16.msra.mxu0 %v1179
        %1898 = vmatprep.subr.bf16.mxu0 %v1188
        %1899 = vmatpush1.bf16.msra.mxu0 %v1187
        %1900 = vmatprep.subr.bf16.mxu0 %v1196
        %1901 = vmatpush1.bf16.msra.mxu0 %v1195
        %1902 = vmatprep.subr.bf16.mxu0 %v1204
        %1903 = vmatpush1.bf16.msra.mxu0 %v1203
        %1904 = vmatprep.subr.bf16.mxu0 %v1212
        %1905 = vmatpush1.bf16.msra.mxu0 %v1211
        %1906 = vmatprep.subr.bf16.mxu0 %v1220
        %1907 = vmatpush1.bf16.msra.mxu0 %v1219
        %1908 = vmatprep.subr.bf16.mxu0 %v1228
        %1909 = vmatpush1.bf16.msra.mxu0 %v1227
        %1910 = vmatprep.subr.bf16.mxu0 %v1236
        %1911 = vmatpush1.bf16.msra.mxu0 %v1235
        %1912 = vmatprep.subr.bf16.mxu0 %v1244
        %1913 = vmatpush1.bf16.msra.mxu0 %v1243
        %1914 = vmatprep.subr.bf16.mxu0 %v1252
        %1915 = vmatpush1.bf16.msra.mxu0 %v1251
        %1916 = vmatprep.subr.bf16.mxu0 %v1260
        %1917 = vmatpush1.bf16.msra.mxu0 %v1259
        %1918 = vmatprep.subr.bf16.mxu0 %v1268
        %1919 = vmatpush1.bf16.msra.mxu0 %v1267
        %1920 = vmatprep.subr.bf16.mxu0 %v1276
        %1921 = vmatpush1.bf16.msra.mxu0 %v1275
        %1922 = vmatprep.subr.bf16.mxu0 %v1284
        %1923 = vmatpush1.bf16.msra.mxu0 %v1283
        %1924 = vmatprep.subr.bf16.mxu0 %v1292
        %1925 = vmatpush1.bf16.msra.mxu0 %v1291
        %1926 = vmatprep.mubr.bf16.mxu0 %v1893
        %1927 = vmatmul.mubr.bf16.gmra.mrb[0].mxu0 %v1892
        %v1928 = vpop.f32.mrb[0].mxu0
        %v1929 = vadd.f32 0.0, %v1928
        %v1930 = vpop.f32.mrb[0].mxu0
        %v1931 = vadd.f32 0.0, %v1930
        %v1932 = vpop.f32.mrb[0].mxu0
        %v1933 = vpop.f32.mrb[0].mxu0
        %1934 = vdwg.mxu0
        %1935 = vmatprep.subr.bf16.mxu0 %v1174
        %1936 = vmatpush1.bf16.msra.mxu0 %v1173
        %1937 = vmatprep.subr.bf16.mxu0 %v1182
        %1938 = vmatpush1.bf16.msra.mxu0 %v1181
        %1939 = vmatprep.subr.bf16.mxu0 %v1190
        %1940 = vmatpush1.bf16.msra.mxu0 %v1189
        %1941 = vmatprep.subr.bf16.mxu0 %v1198
        %1942 = vmatpush1.bf16.msra.mxu0 %v1197
        %1943 = vmatprep.subr.bf16.mxu0 %v1206
        %1944 = vmatpush1.bf16.msra.mxu0 %v1205
        %1945 = vmatprep.subr.bf16.mxu0 %v1214
        %1946 = vmatpush1.bf16.msra.mxu0 %v1213
        %1947 = vmatprep.subr.bf16.mxu0 %v1222
        %1948 = vmatpush1.bf16.msra.mxu0 %v1221
        %1949 = vmatprep.subr.bf16.mxu0 %v1230
        %1950 = vmatpush1.bf16.msra.mxu0 %v1229
        %1951 = vmatprep.subr.bf16.mxu0 %v1238
        %1952 = vmatpush1.bf16.msra.mxu0 %v1237
        %1953 = vmatprep.subr.bf16.mxu0 %v1246
        %1954 = vmatpush1.bf16.msra.mxu0 %v1245
        %1955 = vmatprep.subr.bf16.mxu0 %v1254
        %1956 = vmatpush1.bf16.msra.mxu0 %v1253
        %1957 = vmatprep.subr.bf16.mxu0 %v1262
        %1958 = vmatpush1.bf16.msra.mxu0 %v1261
        %1959 = vmatprep.subr.bf16.mxu0 %v1270
        %1960 = vmatpush1.bf16.msra.mxu0 %v1269
        %1961 = vmatprep.subr.bf16.mxu0 %v1278
        %1962 = vmatpush1.bf16.msra.mxu0 %v1277
        %1963 = vmatprep.subr.bf16.mxu0 %v1286
        %1964 = vmatpush1.bf16.msra.mxu0 %v1285
        %1965 = vmatprep.subr.bf16.mxu0 %v1294
        %1966 = vmatpush1.bf16.msra.mxu0 %v1293
        %1967 = vmatprep.mubr.bf16.mxu0 %v1893
        %1968 = vmatmul.mubr.bf16.gmra.mrb[0].mxu0 %v1892
        %v1969 = vpop.f32.mrb[0].mxu0
        %v1970 = vadd.f32 0.0, %v1969
        %v1971 = vpop.f32.mrb[0].mxu0
        %v1972 = vadd.f32 0.0, %v1971
        %v1973 = vpop.f32.mrb[0].mxu0
        %v1974 = vpop.f32.mrb[0].mxu0
        %1975 = vdwg.mxu0
        %1976 = vmatprep.subr.bf16.mxu0 %v1176
        %1977 = vmatpush1.bf16.msra.mxu0 %v1175
        %1978 = vmatprep.subr.bf16.mxu0 %v1184
        %1979 = vmatpush1.bf16.msra.mxu0 %v1183
        %1980 = vmatprep.subr.bf16.mxu0 %v1192
        %1981 = vmatpush1.bf16.msra.mxu0 %v1191
        %1982 = vmatprep.subr.bf16.mxu0 %v1200
        %1983 = vmatpush1.bf16.msra.mxu0 %v1199
        %1984 = vmatprep.subr.bf16.mxu0 %v1208
        %1985 = vmatpush1.bf16.msra.mxu0 %v1207
        %1986 = vmatprep.subr.bf16.mxu0 %v1216
        %1987 = vmatpush1.bf16.msra.mxu0 %v1215
        %1988 = vmatprep.subr.bf16.mxu0 %v1224
        %1989 = vmatpush1.bf16.msra.mxu0 %v1223
        %1990 = vmatprep.subr.bf16.mxu0 %v1232
        %1991 = vmatpush1.bf16.msra.mxu0 %v1231
        %1992 = vmatprep.subr.bf16.mxu0 %v1240
        %1993 = vmatpush1.bf16.msra.mxu0 %v1239
        %1994 = vmatprep.subr.bf16.mxu0 %v1248
        %1995 = vmatpush1.bf16.msra.mxu0 %v1247
        %1996 = vmatprep.subr.bf16.mxu0 %v1256
        %1997 = vmatpush1.bf16.msra.mxu0 %v1255
        %1998 = vmatprep.subr.bf16.mxu0 %v1264
        %1999 = vmatpush1.bf16.msra.mxu0 %v1263
        %2000 = vmatprep.subr.bf16.mxu0 %v1272
        %2001 = vmatpush1.bf16.msra.mxu0 %v1271
        %2002 = vmatprep.subr.bf16.mxu0 %v1280
        %2003 = vmatpush1.bf16.msra.mxu0 %v1279
        %2004 = vmatprep.subr.bf16.mxu0 %v1288
        %2005 = vmatpush1.bf16.msra.mxu0 %v1287
        %2006 = vmatprep.subr.bf16.mxu0 %v1296
        %2007 = vmatpush1.bf16.msra.mxu0 %v1295
        %2008 = vmatprep.mubr.bf16.mxu0 %v1893
        %2009 = vmatmul.mubr.bf16.gmra.mrb[0].mxu0 %v1892
        %v2010 = vpop.f32.mrb[0].mxu0
        %v2011 = vadd.f32 0.0, %v2010
        %v2012 = vpop.f32.mrb[0].mxu0
        %v2013 = vadd.f32 0.0, %v2012
        %v2014 = vpop.f32.mrb[0].mxu0
        %v2015 = vpop.f32.mrb[0].mxu0
        %2016 = vdwg.mxu0
        %2017 = vmatprep.subr.bf16.mxu0 %v1178
        %2018 = vmatpush1.bf16.msra.mxu0 %v1177
        %2019 = vmatprep.subr.bf16.mxu0 %v1186
        %2020 = vmatpush1.bf16.msra.mxu0 %v1185
        %2021 = vmatprep.subr.bf16.mxu0 %v1194
        %2022 = vmatpush1.bf16.msra.mxu0 %v1193
        %2023 = vmatprep.subr.bf16.mxu0 %v1202
        %2024 = vmatpush1.bf16.msra.mxu0 %v1201
        %2025 = vmatprep.subr.bf16.mxu0 %v1210
        %2026 = vmatpush1.bf16.msra.mxu0 %v1209
        %2027 = vmatprep.subr.bf16.mxu0 %v1218
        %2028 = vmatpush1.bf16.msra.mxu0 %v1217
        %2029 = vmatprep.subr.bf16.mxu0 %v1226
        %2030 = vmatpush1.bf16.msra.mxu0 %v1225
        %2031 = vmatprep.subr.bf16.mxu0 %v1234
        %2032 = vmatpush1.bf16.msra.mxu0 %v1233
        %2033 = vmatprep.subr.bf16.mxu0 %v1242
        %2034 = vmatpush1.bf16.msra.mxu0 %v1241
        %2035 = vmatprep.subr.bf16.mxu0 %v1250
        %2036 = vmatpush1.bf16.msra.mxu0 %v1249
        %2037 = vmatprep.subr.bf16.mxu0 %v1258
        %2038 = vmatpush1.bf16.msra.mxu0 %v1257
        %2039 = vmatprep.subr.bf16.mxu0 %v1266
        %2040 = vmatpush1.bf16.msra.mxu0 %v1265
        %2041 = vmatprep.subr.bf16.mxu0 %v1274
        %2042 = vmatpush1.bf16.msra.mxu0 %v1273
        %2043 = vmatprep.subr.bf16.mxu0 %v1282
        %2044 = vmatpush1.bf16.msra.mxu0 %v1281
        %2045 = vmatprep.subr.bf16.mxu0 %v1290
        %2046 = vmatpush1.bf16.msra.mxu0 %v1289
        %2047 = vmatprep.subr.bf16.mxu0 %v1298
        %2048 = vmatpush1.bf16.msra.mxu0 %v1297
        %2049 = vmatprep.mubr.bf16.mxu0 %v1893
        %2050 = vmatmul.mubr.bf16.gmra.mrb[0].mxu0 %v1892
        %v2051 = vpop.f32.mrb[0].mxu0
        %v2052 = vadd.f32 0.0, %v2051
        %v2053 = vpop.f32.mrb[0].mxu0
        %v2054 = vadd.f32 0.0, %v2053
        %v2055 = vpop.f32.mrb[0].mxu0
        %v2056 = vpop.f32.mrb[0].mxu0
        %2057 = vdwg.mxu0
        %v2058 = vadd.f32 %v2011, %v1595
        %v2059 = vadd.f32 %v2013, %v1599
        %v2060 = vadd.f32 %v2052, %v1603
        %v2061 = vadd.f32 %v2054, %v1607
        %v2062 = vxor.u32 %v2058, 2147483648
        %v2063 = vxor.u32 %v2059, 2147483648
        %v2064 = vxor.u32 %v2060, 2147483648
        %v2065 = vmul.f32 %v2062, 1.442695
        %v2066 = vpow.pop %v2065
        %v2067 = vmul.f32 %v2063, 1.442695
        %v2068 = vpow.pop %v2067
        %v2069 = vmul.f32 %v2064, 1.442695
        %v2070 = vpow.pop %v2069
        %v2071 = vadd.f32 %v2066, 1.0
        %v2072 = vadd.f32 %v2068, 1.0
        %v2073 = vadd.f32 %v2070, 1.0
        %v2074 = vrcp.pop %v2071
        %v2075 = vmul.f32 1.0, %v2074
        %v2076 = vrcp.pop %v2072
        %v2077 = vmul.f32 1.0, %v2076
        %v2078 = vrcp.pop %v2073
        %v2079 = vmul.f32 1.0, %v2078
        %v2080 = vtanh.pop %v2061
        %v2081 = vmul.f32 %v2077, %v1860
        %v2082 = vmul.f32 %v2075, %v2080
        %v2083 = vadd.f32 %v2081, %v2082
        %v2084 = vtanh.pop %v2083
        %v2085 = vmul.f32 %v2079, %v2084
        %2086 = vst [vmem:[#allocation2 + $0x10] sm:$0xff] %v2085
        %v2087 = vadd.f32 %v535, %v1929
        %v2088 = vadd.f32 %v537, %v1931
        %v2089 = vadd.f32 %v608, %v1970
        %v2090 = vadd.f32 %v610, %v1972
        %v2091 = vxor.u32 %v2087, 2147483648
        %v2092 = vxor.u32 %v2088, 2147483648
        %v2093 = vxor.u32 %v2089, 2147483648
        %v2094 = vmul.f32 %v2091, 1.442695
        %v2095 = vpow.pop %v2094
        %v2096 = vmul.f32 %v2092, 1.442695
        %v2097 = vpow.pop %v2096
        %v2098 = vmul.f32 %v2093, 1.442695
        %v2099 = vpow.pop %v2098
        %v2100 = vadd.f32 %v2095, 1.0
        %v2101 = vadd.f32 %v2097, 1.0
        %v2102 = vadd.f32 %v2099, 1.0
        %v2103 = vrcp.pop %v2100
        %v2104 = vmul.f32 1.0, %v2103
        %v2105 = vrcp.pop %v2101
        %v2106 = vmul.f32 1.0, %v2105
        %v2107 = vrcp.pop %v2102
        %v2108 = vmul.f32 1.0, %v2107
        %v2109 = vtanh.pop %v2090
        %v2110 = vmul.f32 %v2106, %v1889
        %v2111 = vmul.f32 %v2104, %v2109
        %v2112 = vadd.f32 %v2110, %v2111
        %v2113 = vtanh.pop %v2112
        %v2114 = vmul.f32 %v2108, %v2113
        %v2115 = vpack.c.bf16 %v2114, %v2114
        %v2116 = vpack.c.bf16 %v2085, %v2085
        %2117 = vmatprep.subr.bf16.mxu0 %v1172
        %2118 = vmatpush1.bf16.msra.mxu0 %v1171
        %2119 = vmatprep.subr.bf16.mxu0 %v1180
        %2120 = vmatpush1.bf16.msra.mxu0 %v1179
        %2121 = vmatprep.subr.bf16.mxu0 %v1188
        %2122 = vmatpush1.bf16.msra.mxu0 %v1187
        %2123 = vmatprep.subr.bf16.mxu0 %v1196
        %2124 = vmatpush1.bf16.msra.mxu0 %v1195
        %2125 = vmatprep.subr.bf16.mxu0 %v1204
        %2126 = vmatpush1.bf16.msra.mxu0 %v1203
        %2127 = vmatprep.subr.bf16.mxu0 %v1212
        %2128 = vmatpush1.bf16.msra.mxu0 %v1211
        %2129 = vmatprep.subr.bf16.mxu0 %v1220
        %2130 = vmatpush1.bf16.msra.mxu0 %v1219
        %2131 = vmatprep.subr.bf16.mxu0 %v1228
        %2132 = vmatpush1.bf16.msra.mxu0 %v1227
        %2133 = vmatprep.subr.bf16.mxu0 %v1236
        %2134 = vmatpush1.bf16.msra.mxu0 %v1235
        %2135 = vmatprep.subr.bf16.mxu0 %v1244
        %2136 = vmatpush1.bf16.msra.mxu0 %v1243
        %2137 = vmatprep.subr.bf16.mxu0 %v1252
        %2138 = vmatpush1.bf16.msra.mxu0 %v1251
        %2139 = vmatprep.subr.bf16.mxu0 %v1260
        %2140 = vmatpush1.bf16.msra.mxu0 %v1259
        %2141 = vmatprep.subr.bf16.mxu0 %v1268
        %2142 = vmatpush1.bf16.msra.mxu0 %v1267
        %2143 = vmatprep.subr.bf16.mxu0 %v1276
        %2144 = vmatpush1.bf16.msra.mxu0 %v1275
        %2145 = vmatprep.subr.bf16.mxu0 %v1284
        %2146 = vmatpush1.bf16.msra.mxu0 %v1283
        %2147 = vmatprep.subr.bf16.mxu0 %v1292
        %2148 = vmatpush1.bf16.msra.mxu0 %v1291
        %2149 = vmatprep.mubr.bf16.mxu0 %v2116
        %2150 = vmatmul.mubr.bf16.gmra.mrb[0].mxu0 %v2115
        %v2151 = vpop.f32.mrb[0].mxu0
        %v2152 = vadd.f32 0.0, %v2151
        %v2153 = vpop.f32.mrb[0].mxu0
        %v2154 = vadd.f32 0.0, %v2153
        %v2155 = vpop.f32.mrb[0].mxu0
        %v2156 = vpop.f32.mrb[0].mxu0
        %2157 = vdwg.mxu0
        %2158 = vmatprep.subr.bf16.mxu0 %v1174
        %2159 = vmatpush1.bf16.msra.mxu0 %v1173
        %2160 = vmatprep.subr.bf16.mxu0 %v1182
        %2161 = vmatpush1.bf16.msra.mxu0 %v1181
        %2162 = vmatprep.subr.bf16.mxu0 %v1190
        %2163 = vmatpush1.bf16.msra.mxu0 %v1189
        %2164 = vmatprep.subr.bf16.mxu0 %v1198
        %2165 = vmatpush1.bf16.msra.mxu0 %v1197
        %2166 = vmatprep.subr.bf16.mxu0 %v1206
        %2167 = vmatpush1.bf16.msra.mxu0 %v1205
        %2168 = vmatprep.subr.bf16.mxu0 %v1214
        %2169 = vmatpush1.bf16.msra.mxu0 %v1213
        %2170 = vmatprep.subr.bf16.mxu0 %v1222
        %2171 = vmatpush1.bf16.msra.mxu0 %v1221
        %2172 = vmatprep.subr.bf16.mxu0 %v1230
        %2173 = vmatpush1.bf16.msra.mxu0 %v1229
        %2174 = vmatprep.subr.bf16.mxu0 %v1238
        %2175 = vmatpush1.bf16.msra.mxu0 %v1237
        %2176 = vmatprep.subr.bf16.mxu0 %v1246
        %2177 = vmatpush1.bf16.msra.mxu0 %v1245
        %2178 = vmatprep.subr.bf16.mxu0 %v1254
        %2179 = vmatpush1.bf16.msra.mxu0 %v1253
        %2180 = vmatprep.subr.bf16.mxu0 %v1262
        %2181 = vmatpush1.bf16.msra.mxu0 %v1261
        %2182 = vmatprep.subr.bf16.mxu0 %v1270
        %2183 = vmatpush1.bf16.msra.mxu0 %v1269
        %2184 = vmatprep.subr.bf16.mxu0 %v1278
        %2185 = vmatpush1.bf16.msra.mxu0 %v1277
        %2186 = vmatprep.subr.bf16.mxu0 %v1286
        %2187 = vmatpush1.bf16.msra.mxu0 %v1285
        %2188 = vmatprep.subr.bf16.mxu0 %v1294
        %2189 = vmatpush1.bf16.msra.mxu0 %v1293
        %2190 = vmatprep.mubr.bf16.mxu0 %v2116
        %2191 = vmatmul.mubr.bf16.gmra.mrb[0].mxu0 %v2115
        %v2192 = vpop.f32.mrb[0].mxu0
        %v2193 = vadd.f32 0.0, %v2192
        %v2194 = vpop.f32.mrb[0].mxu0
        %v2195 = vadd.f32 0.0, %v2194
        %v2196 = vpop.f32.mrb[0].mxu0
        %v2197 = vpop.f32.mrb[0].mxu0
        %2198 = vdwg.mxu0
        %2199 = vmatprep.subr.bf16.mxu0 %v1176
        %2200 = vmatpush1.bf16.msra.mxu0 %v1175
        %2201 = vmatprep.subr.bf16.mxu0 %v1184
        %2202 = vmatpush1.bf16.msra.mxu0 %v1183
        %2203 = vmatprep.subr.bf16.mxu0 %v1192
        %2204 = vmatpush1.bf16.msra.mxu0 %v1191
        %2205 = vmatprep.subr.bf16.mxu0 %v1200
        %2206 = vmatpush1.bf16.msra.mxu0 %v1199
        %2207 = vmatprep.subr.bf16.mxu0 %v1208
        %2208 = vmatpush1.bf16.msra.mxu0 %v1207
        %2209 = vmatprep.subr.bf16.mxu0 %v1216
        %2210 = vmatpush1.bf16.msra.mxu0 %v1215
        %2211 = vmatprep.subr.bf16.mxu0 %v1224
        %2212 = vmatpush1.bf16.msra.mxu0 %v1223
        %2213 = vmatprep.subr.bf16.mxu0 %v1232
        %2214 = vmatpush1.bf16.msra.mxu0 %v1231
        %2215 = vmatprep.subr.bf16.mxu0 %v1240
        %2216 = vmatpush1.bf16.msra.mxu0 %v1239
        %2217 = vmatprep.subr.bf16.mxu0 %v1248
        %2218 = vmatpush1.bf16.msra.mxu0 %v1247
        %2219 = vmatprep.subr.bf16.mxu0 %v1256
        %2220 = vmatpush1.bf16.msra.mxu0 %v1255
        %2221 = vmatprep.subr.bf16.mxu0 %v1264
        %2222 = vmatpush1.bf16.msra.mxu0 %v1263
        %2223 = vmatprep.subr.bf16.mxu0 %v1272
        %2224 = vmatpush1.bf16.msra.mxu0 %v1271
        %2225 = vmatprep.subr.bf16.mxu0 %v1280
        %2226 = vmatpush1.bf16.msra.mxu0 %v1279
        %2227 = vmatprep.subr.bf16.mxu0 %v1288
        %2228 = vmatpush1.bf16.msra.mxu0 %v1287
        %2229 = vmatprep.subr.bf16.mxu0 %v1296
        %2230 = vmatpush1.bf16.msra.mxu0 %v1295
        %2231 = vmatprep.mubr.bf16.mxu0 %v2116
        %2232 = vmatmul.mubr.bf16.gmra.mrb[0].mxu0 %v2115
        %v2233 = vpop.f32.mrb[0].mxu0
        %v2234 = vadd.f32 0.0, %v2233
        %v2235 = vpop.f32.mrb[0].mxu0
        %v2236 = vadd.f32 0.0, %v2235
        %v2237 = vpop.f32.mrb[0].mxu0
        %v2238 = vpop.f32.mrb[0].mxu0
        %2239 = vdwg.mxu0
        %2240 = vmatprep.subr.bf16.mxu0 %v1178
        %2241 = vmatpush1.bf16.msra.mxu0 %v1177
        %2242 = vmatprep.subr.bf16.mxu0 %v1186
        %2243 = vmatpush1.bf16.msra.mxu0 %v1185
        %2244 = vmatprep.subr.bf16.mxu0 %v1194
        %2245 = vmatpush1.bf16.msra.mxu0 %v1193
        %2246 = vmatprep.subr.bf16.mxu0 %v1202
        %2247 = vmatpush1.bf16.msra.mxu0 %v1201
        %2248 = vmatprep.subr.bf16.mxu0 %v1210
        %2249 = vmatpush1.bf16.msra.mxu0 %v1209
        %2250 = vmatprep.subr.bf16.mxu0 %v1218
        %2251 = vmatpush1.bf16.msra.mxu0 %v1217
        %2252 = vmatprep.subr.bf16.mxu0 %v1226
        %2253 = vmatpush1.bf16.msra.mxu0 %v1225
        %2254 = vmatprep.subr.bf16.mxu0 %v1234
        %2255 = vmatpush1.bf16.msra.mxu0 %v1233
        %2256 = vmatprep.subr.bf16.mxu0 %v1242
        %2257 = vmatpush1.bf16.msra.mxu0 %v1241
        %2258 = vmatprep.subr.bf16.mxu0 %v1250
        %2259 = vmatpush1.bf16.msra.mxu0 %v1249
        %2260 = vmatprep.subr.bf16.mxu0 %v1258
        %2261 = vmatpush1.bf16.msra.mxu0 %v1257
        %2262 = vmatprep.subr.bf16.mxu0 %v1266
        %2263 = vmatpush1.bf16.msra.mxu0 %v1265
        %2264 = vmatprep.subr.bf16.mxu0 %v1274
        %2265 = vmatpush1.bf16.msra.mxu0 %v1273
        %2266 = vmatprep.subr.bf16.mxu0 %v1282
        %2267 = vmatpush1.bf16.msra.mxu0 %v1281
        %2268 = vmatprep.subr.bf16.mxu0 %v1290
        %2269 = vmatpush1.bf16.msra.mxu0 %v1289
        %2270 = vmatprep.subr.bf16.mxu0 %v1298
        %2271 = vmatpush1.bf16.msra.mxu0 %v1297
        %2272 = vmatprep.mubr.bf16.mxu0 %v2116
        %2273 = vmatmul.mubr.bf16.gmra.mrb[0].mxu0 %v2115
        %v2274 = vpop.f32.mrb[0].mxu0
        %v2275 = vadd.f32 0.0, %v2274
        %v2276 = vpop.f32.mrb[0].mxu0
        %v2277 = vadd.f32 0.0, %v2276
        %v2278 = vpop.f32.mrb[0].mxu0
        %v2279 = vpop.f32.mrb[0].mxu0
        %2280 = vdwg.mxu0
        %v2281 = vadd.f32 %v2234, %v1595
        %v2282 = vadd.f32 %v2236, %v1599
        %v2283 = vadd.f32 %v2275, %v1603
        %v2284 = vadd.f32 %v2277, %v1607
        %v2285 = vxor.u32 %v2281, 2147483648
        %v2286 = vxor.u32 %v2282, 2147483648
        %v2287 = vxor.u32 %v2283, 2147483648
        %v2288 = vmul.f32 %v2285, 1.442695
        %v2289 = vpow.pop %v2288
        %v2290 = vmul.f32 %v2286, 1.442695
        %v2291 = vpow.pop %v2290
        %v2292 = vmul.f32 %v2287, 1.442695
        %v2293 = vpow.pop %v2292
        %v2294 = vadd.f32 %v2289, 1.0
        %v2295 = vadd.f32 %v2291, 1.0
        %v2296 = vadd.f32 %v2293, 1.0
        %v2297 = vrcp.pop %v2294
        %v2298 = vmul.f32 1.0, %v2297
        %v2299 = vrcp.pop %v2295
        %v2300 = vmul.f32 1.0, %v2299
        %v2301 = vrcp.pop %v2296
        %v2302 = vmul.f32 1.0, %v2301
        %v2303 = vtanh.pop %v2284
        %v2304 = vmul.f32 %v2300, %v2083
        %v2305 = vmul.f32 %v2298, %v2303
        %v2306 = vadd.f32 %v2304, %v2305
        %v2307 = vtanh.pop %v2306
        %v2308 = vmul.f32 %v2302, %v2307
        %2309 = vst [vmem:[#allocation2 + $0x18] sm:$0xff] %v2308
        %v2310 = vadd.f32 %v541, %v2152
        %v2311 = vadd.f32 %v543, %v2154
        %v2312 = vadd.f32 %v614, %v2193
        %v2313 = vadd.f32 %v616, %v2195
        %v2314 = vxor.u32 %v2310, 2147483648
        %v2315 = vxor.u32 %v2311, 2147483648
        %v2316 = vxor.u32 %v2312, 2147483648
        %v2317 = vmul.f32 %v2314, 1.442695
        %v2318 = vpow.pop %v2317
        %v2319 = vmul.f32 %v2315, 1.442695
        %v2320 = vpow.pop %v2319
        %v2321 = vmul.f32 %v2316, 1.442695
        %v2322 = vpow.pop %v2321
        %v2323 = vadd.f32 %v2318, 1.0
        %v2324 = vadd.f32 %v2320, 1.0
        %v2325 = vadd.f32 %v2322, 1.0
        %v2326 = vrcp.pop %v2323
        %v2327 = vmul.f32 1.0, %v2326
        %v2328 = vrcp.pop %v2324
        %v2329 = vmul.f32 1.0, %v2328
        %v2330 = vrcp.pop %v2325
        %v2331 = vmul.f32 1.0, %v2330
        %v2332 = vtanh.pop %v2313
        %v2333 = vmul.f32 %v2329, %v2112
        %v2334 = vmul.f32 %v2327, %v2332
        %v2335 = vadd.f32 %v2333, %v2334
        %v2336 = vtanh.pop %v2335
        %v2337 = vmul.f32 %v2331, %v2336
        %v2338 = vpack.c.bf16 %v2337, %v2337
        %v2339 = vpack.c.bf16 %v2308, %v2308
        %2340 = vmatprep.subr.bf16.mxu0 %v1172
        %2341 = vmatpush1.bf16.msra.mxu0 %v1171
        %2342 = vmatprep.subr.bf16.mxu0 %v1180
        %2343 = vmatpush1.bf16.msra.mxu0 %v1179
        %2344 = vmatprep.subr.bf16.mxu0 %v1188
        %2345 = vmatpush1.bf16.msra.mxu0 %v1187
        %2346 = vmatprep.subr.bf16.mxu0 %v1196
        %2347 = vmatpush1.bf16.msra.mxu0 %v1195
        %2348 = vmatprep.subr.bf16.mxu0 %v1204
        %2349 = vmatpush1.bf16.msra.mxu0 %v1203
        %2350 = vmatprep.subr.bf16.mxu0 %v1212
        %2351 = vmatpush1.bf16.msra.mxu0 %v1211
        %2352 = vmatprep.subr.bf16.mxu0 %v1220
        %2353 = vmatpush1.bf16.msra.mxu0 %v1219
        %2354 = vmatprep.subr.bf16.mxu0 %v1228
        %2355 = vmatpush1.bf16.msra.mxu0 %v1227
        %2356 = vmatprep.subr.bf16.mxu0 %v1236
        %2357 = vmatpush1.bf16.msra.mxu0 %v1235
        %2358 = vmatprep.subr.bf16.mxu0 %v1244
        %2359 = vmatpush1.bf16.msra.mxu0 %v1243
        %2360 = vmatprep.subr.bf16.mxu0 %v1252
        %2361 = vmatpush1.bf16.msra.mxu0 %v1251
        %2362 = vmatprep.subr.bf16.mxu0 %v1260
        %2363 = vmatpush1.bf16.msra.mxu0 %v1259
        %2364 = vmatprep.subr.bf16.mxu0 %v1268
        %2365 = vmatpush1.bf16.msra.mxu0 %v1267
        %2366 = vmatprep.subr.bf16.mxu0 %v1276
        %2367 = vmatpush1.bf16.msra.mxu0 %v1275
        %2368 = vmatprep.subr.bf16.mxu0 %v1284
        %2369 = vmatpush1.bf16.msra.mxu0 %v1283
        %2370 = vmatprep.subr.bf16.mxu0 %v1292
        %2371 = vmatpush1.bf16.msra.mxu0 %v1291
        %2372 = vmatprep.mubr.bf16.mxu0 %v2339
        %2373 = vmatmul.mubr.bf16.gmra.mrb[0].mxu0 %v2338
        %v2374 = vpop.f32.mrb[0].mxu0
        %v2375 = vadd.f32 0.0, %v2374
        %v2376 = vpop.f32.mrb[0].mxu0
        %v2377 = vadd.f32 0.0, %v2376
        %v2378 = vpop.f32.mrb[0].mxu0
        %v2379 = vpop.f32.mrb[0].mxu0
        %2380 = vdwg.mxu0
        %2381 = vmatprep.subr.bf16.mxu0 %v1174
        %2382 = vmatpush1.bf16.msra.mxu0 %v1173
        %2383 = vmatprep.subr.bf16.mxu0 %v1182
        %2384 = vmatpush1.bf16.msra.mxu0 %v1181
        %2385 = vmatprep.subr.bf16.mxu0 %v1190
        %2386 = vmatpush1.bf16.msra.mxu0 %v1189
        %2387 = vmatprep.subr.bf16.mxu0 %v1198
        %2388 = vmatpush1.bf16.msra.mxu0 %v1197
        %2389 = vmatprep.subr.bf16.mxu0 %v1206
        %2390 = vmatpush1.bf16.msra.mxu0 %v1205
        %2391 = vmatprep.subr.bf16.mxu0 %v1214
        %2392 = vmatpush1.bf16.msra.mxu0 %v1213
        %2393 = vmatprep.subr.bf16.mxu0 %v1222
        %2394 = vmatpush1.bf16.msra.mxu0 %v1221
        %2395 = vmatprep.subr.bf16.mxu0 %v1230
        %2396 = vmatpush1.bf16.msra.mxu0 %v1229
        %2397 = vmatprep.subr.bf16.mxu0 %v1238
        %2398 = vmatpush1.bf16.msra.mxu0 %v1237
        %2399 = vmatprep.subr.bf16.mxu0 %v1246
        %2400 = vmatpush1.bf16.msra.mxu0 %v1245
        %2401 = vmatprep.subr.bf16.mxu0 %v1254
        %2402 = vmatpush1.bf16.msra.mxu0 %v1253
        %2403 = vmatprep.subr.bf16.mxu0 %v1262
        %2404 = vmatpush1.bf16.msra.mxu0 %v1261
        %2405 = vmatprep.subr.bf16.mxu0 %v1270
        %2406 = vmatpush1.bf16.msra.mxu0 %v1269
        %2407 = vmatprep.subr.bf16.mxu0 %v1278
        %2408 = vmatpush1.bf16.msra.mxu0 %v1277
        %2409 = vmatprep.subr.bf16.mxu0 %v1286
        %2410 = vmatpush1.bf16.msra.mxu0 %v1285
        %2411 = vmatprep.subr.bf16.mxu0 %v1294
        %2412 = vmatpush1.bf16.msra.mxu0 %v1293
        %2413 = vmatprep.mubr.bf16.mxu0 %v2339
        %2414 = vmatmul.mubr.bf16.gmra.mrb[0].mxu0 %v2338
        %v2415 = vpop.f32.mrb[0].mxu0
        %v2416 = vadd.f32 0.0, %v2415
        %v2417 = vpop.f32.mrb[0].mxu0
        %v2418 = vadd.f32 0.0, %v2417
        %v2419 = vpop.f32.mrb[0].mxu0
        %v2420 = vpop.f32.mrb[0].mxu0
        %2421 = vdwg.mxu0
        %2422 = vmatprep.subr.bf16.mxu0 %v1176
        %2423 = vmatpush1.bf16.msra.mxu0 %v1175
        %2424 = vmatprep.subr.bf16.mxu0 %v1184
        %2425 = vmatpush1.bf16.msra.mxu0 %v1183
        %2426 = vmatprep.subr.bf16.mxu0 %v1192
        %2427 = vmatpush1.bf16.msra.mxu0 %v1191
        %2428 = vmatprep.subr.bf16.mxu0 %v1200
        %2429 = vmatpush1.bf16.msra.mxu0 %v1199
        %2430 = vmatprep.subr.bf16.mxu0 %v1208
        %2431 = vmatpush1.bf16.msra.mxu0 %v1207
        %2432 = vmatprep.subr.bf16.mxu0 %v1216
        %2433 = vmatpush1.bf16.msra.mxu0 %v1215
        %2434 = vmatprep.subr.bf16.mxu0 %v1224
        %2435 = vmatpush1.bf16.msra.mxu0 %v1223
        %2436 = vmatprep.subr.bf16.mxu0 %v1232
        %2437 = vmatpush1.bf16.msra.mxu0 %v1231
        %2438 = vmatprep.subr.bf16.mxu0 %v1240
        %2439 = vmatpush1.bf16.msra.mxu0 %v1239
        %2440 = vmatprep.subr.bf16.mxu0 %v1248
        %2441 = vmatpush1.bf16.msra.mxu0 %v1247
        %2442 = vmatprep.subr.bf16.mxu0 %v1256
        %2443 = vmatpush1.bf16.msra.mxu0 %v1255
        %2444 = vmatprep.subr.bf16.mxu0 %v1264
        %2445 = vmatpush1.bf16.msra.mxu0 %v1263
        %2446 = vmatprep.subr.bf16.mxu0 %v1272
        %2447 = vmatpush1.bf16.msra.mxu0 %v1271
        %2448 = vmatprep.subr.bf16.mxu0 %v1280
        %2449 = vmatpush1.bf16.msra.mxu0 %v1279
        %2450 = vmatprep.subr.bf16.mxu0 %v1288
        %2451 = vmatpush1.bf16.msra.mxu0 %v1287
        %2452 = vmatprep.subr.bf16.mxu0 %v1296
        %2453 = vmatpush1.bf16.msra.mxu0 %v1295
        %2454 = vmatprep.mubr.bf16.mxu0 %v2339
        %2455 = vmatmul.mubr.bf16.gmra.mrb[0].mxu0 %v2338
        %v2456 = vpop.f32.mrb[0].mxu0
        %v2457 = vadd.f32 0.0, %v2456
        %v2458 = vpop.f32.mrb[0].mxu0
        %v2459 = vadd.f32 0.0, %v2458
        %v2460 = vpop.f32.mrb[0].mxu0
        %v2461 = vpop.f32.mrb[0].mxu0
        %2462 = vdwg.mxu0
        %2463 = vmatprep.subr.bf16.mxu0 %v1178
        %2464 = vmatpush1.bf16.msra.mxu0 %v1177
        %2465 = vmatprep.subr.bf16.mxu0 %v1186
        %2466 = vmatpush1.bf16.msra.mxu0 %v1185
        %2467 = vmatprep.subr.bf16.mxu0 %v1194
        %2468 = vmatpush1.bf16.msra.mxu0 %v1193
        %2469 = vmatprep.subr.bf16.mxu0 %v1202
        %2470 = vmatpush1.bf16.msra.mxu0 %v1201
        %2471 = vmatprep.subr.bf16.mxu0 %v1210
        %2472 = vmatpush1.bf16.msra.mxu0 %v1209
        %2473 = vmatprep.subr.bf16.mxu0 %v1218
        %2474 = vmatpush1.bf16.msra.mxu0 %v1217
        %2475 = vmatprep.subr.bf16.mxu0 %v1226
        %2476 = vmatpush1.bf16.msra.mxu0 %v1225
        %2477 = vmatprep.subr.bf16.mxu0 %v1234
        %2478 = vmatpush1.bf16.msra.mxu0 %v1233
        %2479 = vmatprep.subr.bf16.mxu0 %v1242
        %2480 = vmatpush1.bf16.msra.mxu0 %v1241
        %2481 = vmatprep.subr.bf16.mxu0 %v1250
        %2482 = vmatpush1.bf16.msra.mxu0 %v1249
        %2483 = vmatprep.subr.bf16.mxu0 %v1258
        %2484 = vmatpush1.bf16.msra.mxu0 %v1257
        %2485 = vmatprep.subr.bf16.mxu0 %v1266
        %2486 = vmatpush1.bf16.msra.mxu0 %v1265
        %2487 = vmatprep.subr.bf16.mxu0 %v1274
        %2488 = vmatpush1.bf16.msra.mxu0 %v1273
        %2489 = vmatprep.subr.bf16.mxu0 %v1282
        %2490 = vmatpush1.bf16.msra.mxu0 %v1281
        %2491 = vmatprep.subr.bf16.mxu0 %v1290
        %2492 = vmatpush1.bf16.msra.mxu0 %v1289
        %2493 = vmatprep.subr.bf16.mxu0 %v1298
        %2494 = vmatpush1.bf16.msra.mxu0 %v1297
        %2495 = vmatprep.mubr.bf16.mxu0 %v2339
        %2496 = vmatmul.mubr.bf16.gmra.mrb[0].mxu0 %v2338
        %v2497 = vpop.f32.mrb[0].mxu0
        %v2498 = vadd.f32 0.0, %v2497
        %v2499 = vpop.f32.mrb[0].mxu0
        %v2500 = vadd.f32 0.0, %v2499
        %v2501 = vpop.f32.mrb[0].mxu0
        %v2502 = vpop.f32.mrb[0].mxu0
        %2503 = vdwg.mxu0
        %v2504 = vadd.f32 %v2457, %v1595
        %v2505 = vadd.f32 %v2459, %v1599
        %v2506 = vadd.f32 %v2498, %v1603
        %v2507 = vadd.f32 %v2500, %v1607
        %v2508 = vxor.u32 %v2504, 2147483648
        %v2509 = vxor.u32 %v2505, 2147483648
        %v2510 = vxor.u32 %v2506, 2147483648
        %v2511 = vmul.f32 %v2508, 1.442695
        %v2512 = vpow.pop %v2511
        %v2513 = vmul.f32 %v2509, 1.442695
        %v2514 = vpow.pop %v2513
        %v2515 = vmul.f32 %v2510, 1.442695
        %v2516 = vpow.pop %v2515
        %v2517 = vadd.f32 %v2512, 1.0
        %v2518 = vadd.f32 %v2514, 1.0
        %v2519 = vadd.f32 %v2516, 1.0
        %v2520 = vrcp.pop %v2517
        %v2521 = vmul.f32 1.0, %v2520
        %v2522 = vrcp.pop %v2518
        %v2523 = vmul.f32 1.0, %v2522
        %v2524 = vrcp.pop %v2519
        %v2525 = vmul.f32 1.0, %v2524
        %v2526 = vtanh.pop %v2507
        %v2527 = vmul.f32 %v2523, %v2306
        %v2528 = vmul.f32 %v2521, %v2526
        %v2529 = vadd.f32 %v2527, %v2528
        %v2530 = vtanh.pop %v2529
        %v2531 = vmul.f32 %v2525, %v2530
        %2532 = vst [vmem:[#allocation2 + $0x20] sm:$0xff] %v2531
        %v2533 = vadd.f32 %v545, %v2375
        %v2534 = vadd.f32 %v547, %v2377
        %v2535 = vadd.f32 %v618, %v2416
        %v2536 = vadd.f32 %v620, %v2418
        %v2537 = vxor.u32 %v2533, 2147483648
        %v2538 = vxor.u32 %v2534, 2147483648
        %v2539 = vxor.u32 %v2535, 2147483648
        %v2540 = vmul.f32 %v2537, 1.442695
        %v2541 = vpow.pop %v2540
        %v2542 = vmul.f32 %v2538, 1.442695
        %v2543 = vpow.pop %v2542
        %v2544 = vmul.f32 %v2539, 1.442695
        %v2545 = vpow.pop %v2544
        %v2546 = vadd.f32 %v2541, 1.0
        %v2547 = vadd.f32 %v2543, 1.0
        %v2548 = vadd.f32 %v2545, 1.0
        %v2549 = vrcp.pop %v2546
        %v2550 = vmul.f32 1.0, %v2549
        %v2551 = vrcp.pop %v2547
        %v2552 = vmul.f32 1.0, %v2551
        %v2553 = vrcp.pop %v2548
        %v2554 = vmul.f32 1.0, %v2553
        %v2555 = vtanh.pop %v2536
        %v2556 = vmul.f32 %v2552, %v2335
        %v2557 = vmul.f32 %v2550, %v2555
        %v2558 = vadd.f32 %v2556, %v2557
        %v2559 = vtanh.pop %v2558
        %v2560 = vmul.f32 %v2554, %v2559
        %v2561 = vpack.c.bf16 %v2560, %v2560
        %v2562 = vpack.c.bf16 %v2531, %v2531
        %2563 = vmatprep.subr.bf16.mxu0 %v1172
        %2564 = vmatpush1.bf16.msra.mxu0 %v1171
        %2565 = vmatprep.subr.bf16.mxu0 %v1180
        %2566 = vmatpush1.bf16.msra.mxu0 %v1179
        %2567 = vmatprep.subr.bf16.mxu0 %v1188
        %2568 = vmatpush1.bf16.msra.mxu0 %v1187
        %2569 = vmatprep.subr.bf16.mxu0 %v1196
        %2570 = vmatpush1.bf16.msra.mxu0 %v1195
        %2571 = vmatprep.subr.bf16.mxu0 %v1204
        %2572 = vmatpush1.bf16.msra.mxu0 %v1203
        %2573 = vmatprep.subr.bf16.mxu0 %v1212
        %2574 = vmatpush1.bf16.msra.mxu0 %v1211
        %2575 = vmatprep.subr.bf16.mxu0 %v1220
        %2576 = vmatpush1.bf16.msra.mxu0 %v1219
        %2577 = vmatprep.subr.bf16.mxu0 %v1228
        %2578 = vmatpush1.bf16.msra.mxu0 %v1227
        %2579 = vmatprep.subr.bf16.mxu0 %v1236
        %2580 = vmatpush1.bf16.msra.mxu0 %v1235
        %2581 = vmatprep.subr.bf16.mxu0 %v1244
        %2582 = vmatpush1.bf16.msra.mxu0 %v1243
        %2583 = vmatprep.subr.bf16.mxu0 %v1252
        %2584 = vmatpush1.bf16.msra.mxu0 %v1251
        %2585 = vmatprep.subr.bf16.mxu0 %v1260
        %2586 = vmatpush1.bf16.msra.mxu0 %v1259
        %2587 = vmatprep.subr.bf16.mxu0 %v1268
        %2588 = vmatpush1.bf16.msra.mxu0 %v1267
        %2589 = vmatprep.subr.bf16.mxu0 %v1276
        %2590 = vmatpush1.bf16.msra.mxu0 %v1275
        %2591 = vmatprep.subr.bf16.mxu0 %v1284
        %2592 = vmatpush1.bf16.msra.mxu0 %v1283
        %2593 = vmatprep.subr.bf16.mxu0 %v1292
        %2594 = vmatpush1.bf16.msra.mxu0 %v1291
        %2595 = vmatprep.mubr.bf16.mxu0 %v2562
        %2596 = vmatmul.mubr.bf16.gmra.mrb[0].mxu0 %v2561
        %v2597 = vpop.f32.mrb[0].mxu0
        %v2598 = vadd.f32 0.0, %v2597
        %v2599 = vpop.f32.mrb[0].mxu0
        %v2600 = vadd.f32 0.0, %v2599
        %v2601 = vpop.f32.mrb[0].mxu0
        %v2602 = vpop.f32.mrb[0].mxu0
        %2603 = vdwg.mxu0
        %2604 = vmatprep.subr.bf16.mxu0 %v1174
        %2605 = vmatpush1.bf16.msra.mxu0 %v1173
        %2606 = vmatprep.subr.bf16.mxu0 %v1182
        %2607 = vmatpush1.bf16.msra.mxu0 %v1181
        %2608 = vmatprep.subr.bf16.mxu0 %v1190
        %2609 = vmatpush1.bf16.msra.mxu0 %v1189
        %2610 = vmatprep.subr.bf16.mxu0 %v1198
        %2611 = vmatpush1.bf16.msra.mxu0 %v1197
        %2612 = vmatprep.subr.bf16.mxu0 %v1206
        %2613 = vmatpush1.bf16.msra.mxu0 %v1205
        %2614 = vmatprep.subr.bf16.mxu0 %v1214
        %2615 = vmatpush1.bf16.msra.mxu0 %v1213
        %2616 = vmatprep.subr.bf16.mxu0 %v1222
        %2617 = vmatpush1.bf16.msra.mxu0 %v1221
        %2618 = vmatprep.subr.bf16.mxu0 %v1230
        %2619 = vmatpush1.bf16.msra.mxu0 %v1229
        %2620 = vmatprep.subr.bf16.mxu0 %v1238
        %2621 = vmatpush1.bf16.msra.mxu0 %v1237
        %2622 = vmatprep.subr.bf16.mxu0 %v1246
        %2623 = vmatpush1.bf16.msra.mxu0 %v1245
        %2624 = vmatprep.subr.bf16.mxu0 %v1254
        %2625 = vmatpush1.bf16.msra.mxu0 %v1253
        %2626 = vmatprep.subr.bf16.mxu0 %v1262
        %2627 = vmatpush1.bf16.msra.mxu0 %v1261
        %2628 = vmatprep.subr.bf16.mxu0 %v1270
        %2629 = vmatpush1.bf16.msra.mxu0 %v1269
        %2630 = vmatprep.subr.bf16.mxu0 %v1278
        %2631 = vmatpush1.bf16.msra.mxu0 %v1277
        %2632 = vmatprep.subr.bf16.mxu0 %v1286
        %2633 = vmatpush1.bf16.msra.mxu0 %v1285
        %2634 = vmatprep.subr.bf16.mxu0 %v1294
        %2635 = vmatpush1.bf16.msra.mxu0 %v1293
        %2636 = vmatprep.mubr.bf16.mxu0 %v2562
        %2637 = vmatmul.mubr.bf16.gmra.mrb[0].mxu0 %v2561
        %v2638 = vpop.f32.mrb[0].mxu0
        %v2639 = vadd.f32 0.0, %v2638
        %v2640 = vpop.f32.mrb[0].mxu0
        %v2641 = vadd.f32 0.0, %v2640
        %v2642 = vpop.f32.mrb[0].mxu0
        %v2643 = vpop.f32.mrb[0].mxu0
        %2644 = vdwg.mxu0
        %2645 = vmatprep.subr.bf16.mxu0 %v1176
        %2646 = vmatpush1.bf16.msra.mxu0 %v1175
        %2647 = vmatprep.subr.bf16.mxu0 %v1184
        %2648 = vmatpush1.bf16.msra.mxu0 %v1183
        %2649 = vmatprep.subr.bf16.mxu0 %v1192
        %2650 = vmatpush1.bf16.msra.mxu0 %v1191
        %2651 = vmatprep.subr.bf16.mxu0 %v1200
        %2652 = vmatpush1.bf16.msra.mxu0 %v1199
        %2653 = vmatprep.subr.bf16.mxu0 %v1208
        %2654 = vmatpush1.bf16.msra.mxu0 %v1207
        %2655 = vmatprep.subr.bf16.mxu0 %v1216
        %2656 = vmatpush1.bf16.msra.mxu0 %v1215
        %2657 = vmatprep.subr.bf16.mxu0 %v1224
        %2658 = vmatpush1.bf16.msra.mxu0 %v1223
        %2659 = vmatprep.subr.bf16.mxu0 %v1232
        %2660 = vmatpush1.bf16.msra.mxu0 %v1231
        %2661 = vmatprep.subr.bf16.mxu0 %v1240
        %2662 = vmatpush1.bf16.msra.mxu0 %v1239
        %2663 = vmatprep.subr.bf16.mxu0 %v1248
        %2664 = vmatpush1.bf16.msra.mxu0 %v1247
        %2665 = vmatprep.subr.bf16.mxu0 %v1256
        %2666 = vmatpush1.bf16.msra.mxu0 %v1255
        %2667 = vmatprep.subr.bf16.mxu0 %v1264
        %2668 = vmatpush1.bf16.msra.mxu0 %v1263
        %2669 = vmatprep.subr.bf16.mxu0 %v1272
        %2670 = vmatpush1.bf16.msra.mxu0 %v1271
        %2671 = vmatprep.subr.bf16.mxu0 %v1280
        %2672 = vmatpush1.bf16.msra.mxu0 %v1279
        %2673 = vmatprep.subr.bf16.mxu0 %v1288
        %2674 = vmatpush1.bf16.msra.mxu0 %v1287
        %2675 = vmatprep.subr.bf16.mxu0 %v1296
        %2676 = vmatpush1.bf16.msra.mxu0 %v1295
        %2677 = vmatprep.mubr.bf16.mxu0 %v2562
        %2678 = vmatmul.mubr.bf16.gmra.mrb[0].mxu0 %v2561
        %v2679 = vpop.f32.mrb[0].mxu0
        %v2680 = vadd.f32 0.0, %v2679
        %v2681 = vpop.f32.mrb[0].mxu0
        %v2682 = vadd.f32 0.0, %v2681
        %v2683 = vpop.f32.mrb[0].mxu0
        %v2684 = vpop.f32.mrb[0].mxu0
        %2685 = vdwg.mxu0
        %2686 = vmatprep.subr.bf16.mxu0 %v1178
        %2687 = vmatpush1.bf16.msra.mxu0 %v1177
        %2688 = vmatprep.subr.bf16.mxu0 %v1186
        %2689 = vmatpush1.bf16.msra.mxu0 %v1185
        %2690 = vmatprep.subr.bf16.mxu0 %v1194
        %2691 = vmatpush1.bf16.msra.mxu0 %v1193
        %2692 = vmatprep.subr.bf16.mxu0 %v1202
        %2693 = vmatpush1.bf16.msra.mxu0 %v1201
        %2694 = vmatprep.subr.bf16.mxu0 %v1210
        %2695 = vmatpush1.bf16.msra.mxu0 %v1209
        %2696 = vmatprep.subr.bf16.mxu0 %v1218
        %2697 = vmatpush1.bf16.msra.mxu0 %v1217
        %2698 = vmatprep.subr.bf16.mxu0 %v1226
        %2699 = vmatpush1.bf16.msra.mxu0 %v1225
        %2700 = vmatprep.subr.bf16.mxu0 %v1234
        %2701 = vmatpush1.bf16.msra.mxu0 %v1233
        %2702 = vmatprep.subr.bf16.mxu0 %v1242
        %2703 = vmatpush1.bf16.msra.mxu0 %v1241
        %2704 = vmatprep.subr.bf16.mxu0 %v1250
        %2705 = vmatpush1.bf16.msra.mxu0 %v1249
        %2706 = vmatprep.subr.bf16.mxu0 %v1258
        %2707 = vmatpush1.bf16.msra.mxu0 %v1257
        %2708 = vmatprep.subr.bf16.mxu0 %v1266
        %2709 = vmatpush1.bf16.msra.mxu0 %v1265
        %2710 = vmatprep.subr.bf16.mxu0 %v1274
        %2711 = vmatpush1.bf16.msra.mxu0 %v1273
        %2712 = vmatprep.subr.bf16.mxu0 %v1282
        %2713 = vmatpush1.bf16.msra.mxu0 %v1281
        %2714 = vmatprep.subr.bf16.mxu0 %v1290
        %2715 = vmatpush1.bf16.msra.mxu0 %v1289
        %2716 = vmatprep.subr.bf16.mxu0 %v1298
        %2717 = vmatpush1.bf16.msra.mxu0 %v1297
        %2718 = vmatprep.mubr.bf16.mxu0 %v2562
        %2719 = vmatmul.mubr.bf16.gmra.mrb[0].mxu0 %v2561
        %v2720 = vpop.f32.mrb[0].mxu0
        %v2721 = vadd.f32 0.0, %v2720
        %v2722 = vpop.f32.mrb[0].mxu0
        %v2723 = vadd.f32 0.0, %v2722
        %v2724 = vpop.f32.mrb[0].mxu0
        %v2725 = vpop.f32.mrb[0].mxu0
        %2726 = vdwg.mxu0
        %v2727 = vadd.f32 %v2680, %v1595
        %v2728 = vadd.f32 %v2682, %v1599
        %v2729 = vadd.f32 %v2721, %v1603
        %v2730 = vadd.f32 %v2723, %v1607
        %v2731 = vxor.u32 %v2727, 2147483648
        %v2732 = vxor.u32 %v2728, 2147483648
        %v2733 = vxor.u32 %v2729, 2147483648
        %v2734 = vmul.f32 %v2731, 1.442695
        %v2735 = vpow.pop %v2734
        %v2736 = vmul.f32 %v2732, 1.442695
        %v2737 = vpow.pop %v2736
        %v2738 = vmul.f32 %v2733, 1.442695
        %v2739 = vpow.pop %v2738
        %v2740 = vadd.f32 %v2735, 1.0
        %v2741 = vadd.f32 %v2737, 1.0
        %v2742 = vadd.f32 %v2739, 1.0
        %v2743 = vrcp.pop %v2740
        %v2744 = vmul.f32 1.0, %v2743
        %v2745 = vrcp.pop %v2741
        %v2746 = vmul.f32 1.0, %v2745
        %v2747 = vrcp.pop %v2742
        %v2748 = vmul.f32 1.0, %v2747
        %v2749 = vtanh.pop %v2730
        %v2750 = vmul.f32 %v2746, %v2529
        %v2751 = vmul.f32 %v2744, %v2749
        %v2752 = vadd.f32 %v2750, %v2751
        %v2753 = vtanh.pop %v2752
        %v2754 = vmul.f32 %v2748, %v2753
        %2755 = vst [vmem:[#allocation2 + $0x28] sm:$0xff] %v2754
        %v2756 = vadd.f32 %v551, %v2598
        %v2757 = vadd.f32 %v553, %v2600
        %v2758 = vadd.f32 %v624, %v2639
        %v2759 = vadd.f32 %v626, %v2641
        %v2760 = vxor.u32 %v2756, 2147483648
        %v2761 = vxor.u32 %v2757, 2147483648
        %v2762 = vxor.u32 %v2758, 2147483648
        %v2763 = vmul.f32 %v2760, 1.442695
        %v2764 = vpow.pop %v2763
        %v2765 = vmul.f32 %v2761, 1.442695
        %v2766 = vpow.pop %v2765
        %v2767 = vmul.f32 %v2762, 1.442695
        %v2768 = vpow.pop %v2767
        %v2769 = vadd.f32 %v2764, 1.0
        %v2770 = vadd.f32 %v2766, 1.0
        %v2771 = vadd.f32 %v2768, 1.0
        %v2772 = vrcp.pop %v2769
        %v2773 = vmul.f32 1.0, %v2772
        %v2774 = vrcp.pop %v2770
        %v2775 = vmul.f32 1.0, %v2774
        %v2776 = vrcp.pop %v2771
        %v2777 = vmul.f32 1.0, %v2776
        %v2778 = vtanh.pop %v2759
        %v2779 = vmul.f32 %v2775, %v2558
        %v2780 = vmul.f32 %v2773, %v2778
        %v2781 = vadd.f32 %v2779, %v2780
        %v2782 = vtanh.pop %v2781
        %v2783 = vmul.f32 %v2777, %v2782
        %v2784 = vpack.c.bf16 %v2783, %v2783
        %v2785 = vpack.c.bf16 %v2754, %v2754
        %2786 = vmatprep.subr.bf16.mxu0 %v1172
        %2787 = vmatpush1.bf16.msra.mxu0 %v1171
        %2788 = vmatprep.subr.bf16.mxu0 %v1180
        %2789 = vmatpush1.bf16.msra.mxu0 %v1179
        %2790 = vmatprep.subr.bf16.mxu0 %v1188
        %2791 = vmatpush1.bf16.msra.mxu0 %v1187
        %2792 = vmatprep.subr.bf16.mxu0 %v1196
        %2793 = vmatpush1.bf16.msra.mxu0 %v1195
        %2794 = vmatprep.subr.bf16.mxu0 %v1204
        %2795 = vmatpush1.bf16.msra.mxu0 %v1203
        %2796 = vmatprep.subr.bf16.mxu0 %v1212
        %2797 = vmatpush1.bf16.msra.mxu0 %v1211
        %2798 = vmatprep.subr.bf16.mxu0 %v1220
        %2799 = vmatpush1.bf16.msra.mxu0 %v1219
        %2800 = vmatprep.subr.bf16.mxu0 %v1228
        %2801 = vmatpush1.bf16.msra.mxu0 %v1227
        %2802 = vmatprep.subr.bf16.mxu0 %v1236
        %2803 = vmatpush1.bf16.msra.mxu0 %v1235
        %2804 = vmatprep.subr.bf16.mxu0 %v1244
        %2805 = vmatpush1.bf16.msra.mxu0 %v1243
        %2806 = vmatprep.subr.bf16.mxu0 %v1252
        %2807 = vmatpush1.bf16.msra.mxu0 %v1251
        %2808 = vmatprep.subr.bf16.mxu0 %v1260
        %2809 = vmatpush1.bf16.msra.mxu0 %v1259
        %2810 = vmatprep.subr.bf16.mxu0 %v1268
        %2811 = vmatpush1.bf16.msra.mxu0 %v1267
        %2812 = vmatprep.subr.bf16.mxu0 %v1276
        %2813 = vmatpush1.bf16.msra.mxu0 %v1275
        %2814 = vmatprep.subr.bf16.mxu0 %v1284
        %2815 = vmatpush1.bf16.msra.mxu0 %v1283
        %2816 = vmatprep.subr.bf16.mxu0 %v1292
        %2817 = vmatpush1.bf16.msra.mxu0 %v1291
        %2818 = vmatprep.mubr.bf16.mxu0 %v2785
        %2819 = vmatmul.mubr.bf16.gmra.mrb[0].mxu0 %v2784
        %v2820 = vpop.f32.mrb[0].mxu0
        %v2821 = vadd.f32 0.0, %v2820
        %v2822 = vpop.f32.mrb[0].mxu0
        %v2823 = vadd.f32 0.0, %v2822
        %v2824 = vpop.f32.mrb[0].mxu0
        %v2825 = vpop.f32.mrb[0].mxu0
        %2826 = vdwg.mxu0
        %2827 = vmatprep.subr.bf16.mxu0 %v1174
        %2828 = vmatpush1.bf16.msra.mxu0 %v1173
        %2829 = vmatprep.subr.bf16.mxu0 %v1182
        %2830 = vmatpush1.bf16.msra.mxu0 %v1181
        %2831 = vmatprep.subr.bf16.mxu0 %v1190
        %2832 = vmatpush1.bf16.msra.mxu0 %v1189
        %2833 = vmatprep.subr.bf16.mxu0 %v1198
        %2834 = vmatpush1.bf16.msra.mxu0 %v1197
        %2835 = vmatprep.subr.bf16.mxu0 %v1206
        %2836 = vmatpush1.bf16.msra.mxu0 %v1205
        %2837 = vmatprep.subr.bf16.mxu0 %v1214
        %2838 = vmatpush1.bf16.msra.mxu0 %v1213
        %2839 = vmatprep.subr.bf16.mxu0 %v1222
        %2840 = vmatpush1.bf16.msra.mxu0 %v1221
        %2841 = vmatprep.subr.bf16.mxu0 %v1230
        %2842 = vmatpush1.bf16.msra.mxu0 %v1229
        %2843 = vmatprep.subr.bf16.mxu0 %v1238
        %2844 = vmatpush1.bf16.msra.mxu0 %v1237
        %2845 = vmatprep.subr.bf16.mxu0 %v1246
        %2846 = vmatpush1.bf16.msra.mxu0 %v1245
        %2847 = vmatprep.subr.bf16.mxu0 %v1254
        %2848 = vmatpush1.bf16.msra.mxu0 %v1253
        %2849 = vmatprep.subr.bf16.mxu0 %v1262
        %2850 = vmatpush1.bf16.msra.mxu0 %v1261
        %2851 = vmatprep.subr.bf16.mxu0 %v1270
        %2852 = vmatpush1.bf16.msra.mxu0 %v1269
        %2853 = vmatprep.subr.bf16.mxu0 %v1278
        %2854 = vmatpush1.bf16.msra.mxu0 %v1277
        %2855 = vmatprep.subr.bf16.mxu0 %v1286
        %2856 = vmatpush1.bf16.msra.mxu0 %v1285
        %2857 = vmatprep.subr.bf16.mxu0 %v1294
        %2858 = vmatpush1.bf16.msra.mxu0 %v1293
        %2859 = vmatprep.mubr.bf16.mxu0 %v2785
        %2860 = vmatmul.mubr.bf16.gmra.mrb[0].mxu0 %v2784
        %v2861 = vpop.f32.mrb[0].mxu0
        %v2862 = vadd.f32 0.0, %v2861
        %v2863 = vpop.f32.mrb[0].mxu0
        %v2864 = vadd.f32 0.0, %v2863
        %v2865 = vpop.f32.mrb[0].mxu0
        %v2866 = vpop.f32.mrb[0].mxu0
        %2867 = vdwg.mxu0
        %2868 = vmatprep.subr.bf16.mxu0 %v1176
        %2869 = vmatpush1.bf16.msra.mxu0 %v1175
        %2870 = vmatprep.subr.bf16.mxu0 %v1184
        %2871 = vmatpush1.bf16.msra.mxu0 %v1183
        %2872 = vmatprep.subr.bf16.mxu0 %v1192
        %2873 = vmatpush1.bf16.msra.mxu0 %v1191
        %2874 = vmatprep.subr.bf16.mxu0 %v1200
        %2875 = vmatpush1.bf16.msra.mxu0 %v1199
        %2876 = vmatprep.subr.bf16.mxu0 %v1208
        %2877 = vmatpush1.bf16.msra.mxu0 %v1207
        %2878 = vmatprep.subr.bf16.mxu0 %v1216
        %2879 = vmatpush1.bf16.msra.mxu0 %v1215
        %2880 = vmatprep.subr.bf16.mxu0 %v1224
        %2881 = vmatpush1.bf16.msra.mxu0 %v1223
        %2882 = vmatprep.subr.bf16.mxu0 %v1232
        %2883 = vmatpush1.bf16.msra.mxu0 %v1231
        %2884 = vmatprep.subr.bf16.mxu0 %v1240
        %2885 = vmatpush1.bf16.msra.mxu0 %v1239
        %2886 = vmatprep.subr.bf16.mxu0 %v1248
        %2887 = vmatpush1.bf16.msra.mxu0 %v1247
        %2888 = vmatprep.subr.bf16.mxu0 %v1256
        %2889 = vmatpush1.bf16.msra.mxu0 %v1255
        %2890 = vmatprep.subr.bf16.mxu0 %v1264
        %2891 = vmatpush1.bf16.msra.mxu0 %v1263
        %2892 = vmatprep.subr.bf16.mxu0 %v1272
        %2893 = vmatpush1.bf16.msra.mxu0 %v1271
        %2894 = vmatprep.subr.bf16.mxu0 %v1280
        %2895 = vmatpush1.bf16.msra.mxu0 %v1279
        %2896 = vmatprep.subr.bf16.mxu0 %v1288
        %2897 = vmatpush1.bf16.msra.mxu0 %v1287
        %2898 = vmatprep.subr.bf16.mxu0 %v1296
        %2899 = vmatpush1.bf16.msra.mxu0 %v1295
        %2900 = vmatprep.mubr.bf16.mxu0 %v2785
        %2901 = vmatmul.mubr.bf16.gmra.mrb[0].mxu0 %v2784
        %v2902 = vpop.f32.mrb[0].mxu0
        %v2903 = vadd.f32 0.0, %v2902
        %v2904 = vpop.f32.mrb[0].mxu0
        %v2905 = vadd.f32 0.0, %v2904
        %v2906 = vpop.f32.mrb[0].mxu0
        %v2907 = vpop.f32.mrb[0].mxu0
        %2908 = vdwg.mxu0
        %2909 = vmatprep.subr.bf16.mxu0 %v1178
        %2910 = vmatpush1.bf16.msra.mxu0 %v1177
        %2911 = vmatprep.subr.bf16.mxu0 %v1186
        %2912 = vmatpush1.bf16.msra.mxu0 %v1185
        %2913 = vmatprep.subr.bf16.mxu0 %v1194
        %2914 = vmatpush1.bf16.msra.mxu0 %v1193
        %2915 = vmatprep.subr.bf16.mxu0 %v1202
        %2916 = vmatpush1.bf16.msra.mxu0 %v1201
        %2917 = vmatprep.subr.bf16.mxu0 %v1210
        %2918 = vmatpush1.bf16.msra.mxu0 %v1209
        %2919 = vmatprep.subr.bf16.mxu0 %v1218
        %2920 = vmatpush1.bf16.msra.mxu0 %v1217
        %2921 = vmatprep.subr.bf16.mxu0 %v1226
        %2922 = vmatpush1.bf16.msra.mxu0 %v1225
        %2923 = vmatprep.subr.bf16.mxu0 %v1234
        %2924 = vmatpush1.bf16.msra.mxu0 %v1233
        %2925 = vmatprep.subr.bf16.mxu0 %v1242
        %2926 = vmatpush1.bf16.msra.mxu0 %v1241
        %2927 = vmatprep.subr.bf16.mxu0 %v1250
        %2928 = vmatpush1.bf16.msra.mxu0 %v1249
        %2929 = vmatprep.subr.bf16.mxu0 %v1258
        %2930 = vmatpush1.bf16.msra.mxu0 %v1257
        %2931 = vmatprep.subr.bf16.mxu0 %v1266
        %2932 = vmatpush1.bf16.msra.mxu0 %v1265
        %2933 = vmatprep.subr.bf16.mxu0 %v1274
        %2934 = vmatpush1.bf16.msra.mxu0 %v1273
        %2935 = vmatprep.subr.bf16.mxu0 %v1282
        %2936 = vmatpush1.bf16.msra.mxu0 %v1281
        %2937 = vmatprep.subr.bf16.mxu0 %v1290
        %2938 = vmatpush1.bf16.msra.mxu0 %v1289
        %2939 = vmatprep.subr.bf16.mxu0 %v1298
        %2940 = vmatpush1.bf16.msra.mxu0 %v1297
        %2941 = vmatprep.mubr.bf16.mxu0 %v2785
        %2942 = vmatmul.mubr.bf16.gmra.mrb[0].mxu0 %v2784
        %v2943 = vpop.f32.mrb[0].mxu0
        %v2944 = vadd.f32 0.0, %v2943
        %v2945 = vpop.f32.mrb[0].mxu0
        %v2946 = vadd.f32 0.0, %v2945
        %v2947 = vpop.f32.mrb[0].mxu0
        %v2948 = vpop.f32.mrb[0].mxu0
        %2949 = vdwg.mxu0
        %v2950 = vadd.f32 %v2903, %v1595
        %v2951 = vadd.f32 %v2905, %v1599
        %v2952 = vadd.f32 %v2944, %v1603
        %v2953 = vadd.f32 %v2946, %v1607
        %v2954 = vxor.u32 %v2950, 2147483648
        %v2955 = vxor.u32 %v2951, 2147483648
        %v2956 = vxor.u32 %v2952, 2147483648
        %v2957 = vmul.f32 %v2954, 1.442695
        %v2958 = vpow.pop %v2957
        %v2959 = vmul.f32 %v2955, 1.442695
        %v2960 = vpow.pop %v2959
        %v2961 = vmul.f32 %v2956, 1.442695
        %v2962 = vpow.pop %v2961
        %v2963 = vadd.f32 %v2958, 1.0
        %v2964 = vadd.f32 %v2960, 1.0
        %v2965 = vadd.f32 %v2962, 1.0
        %v2966 = vrcp.pop %v2963
        %v2967 = vmul.f32 1.0, %v2966
        %v2968 = vrcp.pop %v2964
        %v2969 = vmul.f32 1.0, %v2968
        %v2970 = vrcp.pop %v2965
        %v2971 = vmul.f32 1.0, %v2970
        %v2972 = vtanh.pop %v2953
        %v2973 = vmul.f32 %v2969, %v2752
        %v2974 = vmul.f32 %v2967, %v2972
        %v2975 = vadd.f32 %v2973, %v2974
        %v2976 = vtanh.pop %v2975
        %v2977 = vmul.f32 %v2971, %v2976
        %2978 = vst [vmem:[#allocation2 + $0x30] sm:$0xff] %v2977
        %v2979 = vadd.f32 %v555, %v2821
        %v2980 = vadd.f32 %v557, %v2823
        %v2981 = vadd.f32 %v628, %v2862
        %v2982 = vadd.f32 %v630, %v2864
        %v2983 = vxor.u32 %v2979, 2147483648
        %v2984 = vxor.u32 %v2980, 2147483648
        %v2985 = vxor.u32 %v2981, 2147483648
        %v2986 = vmul.f32 %v2983, 1.442695
        %v2987 = vpow.pop %v2986
        %v2988 = vmul.f32 %v2984, 1.442695
        %v2989 = vpow.pop %v2988
        %v2990 = vmul.f32 %v2985, 1.442695
        %v2991 = vpow.pop %v2990
        %v2992 = vadd.f32 %v2987, 1.0
        %v2993 = vadd.f32 %v2989, 1.0
        %v2994 = vadd.f32 %v2991, 1.0
        %v2995 = vrcp.pop %v2992
        %v2996 = vmul.f32 1.0, %v2995
        %v2997 = vrcp.pop %v2993
        %v2998 = vmul.f32 1.0, %v2997
        %v2999 = vrcp.pop %v2994
        %v3000 = vmul.f32 1.0, %v2999
        %v3001 = vtanh.pop %v2982
        %v3002 = vmul.f32 %v2998, %v2781
        %v3003 = vmul.f32 %v2996, %v3001
        %v3004 = vadd.f32 %v3002, %v3003
        %v3005 = vtanh.pop %v3004
        %v3006 = vmul.f32 %v3000, %v3005
        %v3007 = vpack.c.bf16 %v3006, %v3006
        %v3008 = vpack.c.bf16 %v2977, %v2977
        %3009 = vmatprep.subr.bf16.mxu0 %v1176
        %3010 = vmatpush1.bf16.msra.mxu0 %v1175
        %3011 = vmatprep.subr.bf16.mxu0 %v1184
        %3012 = vmatpush1.bf16.msra.mxu0 %v1183
        %3013 = vmatprep.subr.bf16.mxu0 %v1192
        %3014 = vmatpush1.bf16.msra.mxu0 %v1191
        %3015 = vmatprep.subr.bf16.mxu0 %v1200
        %3016 = vmatpush1.bf16.msra.mxu0 %v1199
        %3017 = vmatprep.subr.bf16.mxu0 %v1208
        %3018 = vmatpush1.bf16.msra.mxu0 %v1207
        %3019 = vmatprep.subr.bf16.mxu0 %v1216
        %3020 = vmatpush1.bf16.msra.mxu0 %v1215
        %3021 = vmatprep.subr.bf16.mxu0 %v1224
        %3022 = vmatpush1.bf16.msra.mxu0 %v1223
        %3023 = vmatprep.subr.bf16.mxu0 %v1232
        %3024 = vmatpush1.bf16.msra.mxu0 %v1231
        %3025 = vmatprep.subr.bf16.mxu0 %v1240
        %3026 = vmatpush1.bf16.msra.mxu0 %v1239
        %3027 = vmatprep.subr.bf16.mxu0 %v1248
        %3028 = vmatpush1.bf16.msra.mxu0 %v1247
        %3029 = vmatprep.subr.bf16.mxu0 %v1256
        %3030 = vmatpush1.bf16.msra.mxu0 %v1255
        %3031 = vmatprep.subr.bf16.mxu0 %v1264
        %3032 = vmatpush1.bf16.msra.mxu0 %v1263
        %3033 = vmatprep.subr.bf16.mxu0 %v1272
        %3034 = vmatpush1.bf16.msra.mxu0 %v1271
        %3035 = vmatprep.subr.bf16.mxu0 %v1280
        %3036 = vmatpush1.bf16.msra.mxu0 %v1279
        %3037 = vmatprep.subr.bf16.mxu0 %v1288
        %3038 = vmatpush1.bf16.msra.mxu0 %v1287
        %3039 = vmatprep.subr.bf16.mxu0 %v1296
        %3040 = vmatpush1.bf16.msra.mxu0 %v1295
        %3041 = vmatprep.mubr.bf16.mxu0 %v3008
        %3042 = vmatmul.mubr.bf16.gmra.mrb[0].mxu0 %v3007
        %v3043 = vpop.f32.mrb[0].mxu0
        %v3044 = vadd.f32 0.0, %v3043
        %v3045 = vpop.f32.mrb[0].mxu0
        %v3046 = vadd.f32 0.0, %v3045
        %v3047 = vpop.f32.mrb[0].mxu0
        %v3048 = vpop.f32.mrb[0].mxu0
        %3049 = vdwg.mxu0
        %3050 = vmatprep.subr.bf16.mxu0 %v1178
        %3051 = vmatpush1.bf16.msra.mxu0 %v1177
        %3052 = vmatprep.subr.bf16.mxu0 %v1186
        %3053 = vmatpush1.bf16.msra.mxu0 %v1185
        %3054 = vmatprep.subr.bf16.mxu0 %v1194
        %3055 = vmatpush1.bf16.msra.mxu0 %v1193
        %3056 = vmatprep.subr.bf16.mxu0 %v1202
        %3057 = vmatpush1.bf16.msra.mxu0 %v1201
        %3058 = vmatprep.subr.bf16.mxu0 %v1210
        %3059 = vmatpush1.bf16.msra.mxu0 %v1209
        %3060 = vmatprep.subr.bf16.mxu0 %v1218
        %3061 = vmatpush1.bf16.msra.mxu0 %v1217
        %3062 = vmatprep.subr.bf16.mxu0 %v1226
        %3063 = vmatpush1.bf16.msra.mxu0 %v1225
        %3064 = vmatprep.subr.bf16.mxu0 %v1234
        %3065 = vmatpush1.bf16.msra.mxu0 %v1233
        %3066 = vmatprep.subr.bf16.mxu0 %v1242
        %3067 = vmatpush1.bf16.msra.mxu0 %v1241
        %3068 = vmatprep.subr.bf16.mxu0 %v1250
        %3069 = vmatpush1.bf16.msra.mxu0 %v1249
        %3070 = vmatprep.subr.bf16.mxu0 %v1258
        %3071 = vmatpush1.bf16.msra.mxu0 %v1257
        %3072 = vmatprep.subr.bf16.mxu0 %v1266
        %3073 = vmatpush1.bf16.msra.mxu0 %v1265
        %3074 = vmatprep.subr.bf16.mxu0 %v1274
        %3075 = vmatpush1.bf16.msra.mxu0 %v1273
        %3076 = vmatprep.subr.bf16.mxu0 %v1282
        %3077 = vmatpush1.bf16.msra.mxu0 %v1281
        %3078 = vmatprep.subr.bf16.mxu0 %v1290
        %3079 = vmatpush1.bf16.msra.mxu0 %v1289
        %3080 = vmatprep.subr.bf16.mxu0 %v1298
        %3081 = vmatpush1.bf16.msra.mxu0 %v1297
        %3082 = vmatprep.mubr.bf16.mxu0 %v3008
        %3083 = vmatmul.mubr.bf16.gmra.mrb[0].mxu0 %v3007
        %v3084 = vpop.f32.mrb[0].mxu0
        %v3085 = vadd.f32 0.0, %v3084
        %v3086 = vpop.f32.mrb[0].mxu0
        %v3087 = vadd.f32 0.0, %v3086
        %v3088 = vpop.f32.mrb[0].mxu0
        %v3089 = vpop.f32.mrb[0].mxu0
        %3090 = vdwg.mxu0
        %v3091 = vadd.f32 %v3044, %v1595
        %v3092 = vadd.f32 %v3046, %v1599
        %v3093 = vadd.f32 %v3085, %v1603
        %v3094 = vadd.f32 %v3087, %v1607
        %v3095 = vxor.u32 %v3091, 2147483648
        %v3096 = vxor.u32 %v3092, 2147483648
        %v3097 = vxor.u32 %v3093, 2147483648
        %v3098 = vmul.f32 %v3095, 1.442695
        %v3099 = vpow.pop %v3098
        %v3100 = vmul.f32 %v3096, 1.442695
        %v3101 = vpow.pop %v3100
        %v3102 = vmul.f32 %v3097, 1.442695
        %v3103 = vpow.pop %v3102
        %v3104 = vadd.f32 %v3099, 1.0
        %v3105 = vadd.f32 %v3101, 1.0
        %v3106 = vadd.f32 %v3103, 1.0
        %v3107 = vrcp.pop %v3104
        %v3108 = vmul.f32 1.0, %v3107
        %v3109 = vrcp.pop %v3105
        %v3110 = vmul.f32 1.0, %v3109
        %v3111 = vrcp.pop %v3106
        %v3112 = vmul.f32 1.0, %v3111
        %v3113 = vtanh.pop %v3094
        %v3114 = vmul.f32 %v3110, %v2975
        %v3115 = vmul.f32 %v3108, %v3113
        %v3116 = vadd.f32 %v3114, %v3115
        %v3117 = vtanh.pop %v3116
        %v3118 = vmul.f32 %v3112, %v3117
        %3119 = vst [vmem:[#allocation2 + $0x38] sm:$0xff] %v3118
        %v3120 = vld [vmem:[#allocation2] sm:$0xff]
        %v3121 = vld [vmem:[#allocation2 + $0x8] sm:$0xff]
        %v3122 = vld [vmem:[#allocation2 + $0x10] sm:$0xff]
        %v3123 = vld [vmem:[#allocation2 + $0x18] sm:$0xff]
        %v3124 = vld [vmem:[#allocation2 + $0x20] sm:$0xff]
        %v3125 = vld [vmem:[#allocation2 + $0x28] sm:$0xff]
        %v3126 = vld [vmem:[#allocation2 + $0x30] sm:$0xff]
        %v3127 = vld [vmem:[#allocation2 + $0x38] sm:$0xff]
        %v3128 = vpack.c.bf16 %v3121, %v3120
        %v3129 = vpack.c.bf16 %v3123, %v3122
        %v3130 = vpack.c.bf16 %v3125, %v3124
        %v3131 = vpack.c.bf16 %v3127, %v3126
        %v3132 = vld [vmem:[%s5] sm:$0xff]
        %v3133 = vld [vmem:[%s5 + $0x8] sm:$0xff]
        %v3134 = vld [vmem:[%s5 + $0x10] sm:$0xff]
        %v3135 = vld [vmem:[%s5 + $0x18] sm:$0xff]
        %v3136 = vld [vmem:[%s5 + $0x20] sm:$0xff]
        %v3137 = vld [vmem:[%s5 + $0x28] sm:$0xff]
        %v3138 = vld [vmem:[%s5 + $0x30] sm:$0xff]
        %v3139 = vld [vmem:[%s5 + $0x38] sm:$0xff]
        %v3140 = vld [vmem:[%s5 + $0x40] sm:$0xff]
        %v3141 = vld [vmem:[%s5 + $0x48] sm:$0xff]
        %v3142 = vld [vmem:[%s5 + $0x50] sm:$0xff]
        %v3143 = vld [vmem:[%s5 + $0x58] sm:$0xff]
        %v3144 = vld [vmem:[%s5 + $0x60] sm:$0xff]
        %v3145 = vld [vmem:[%s5 + $0x68] sm:$0xff]
        %v3146 = vld [vmem:[%s5 + $0x70] sm:$0xff]
        %v3147 = vld [vmem:[%s5 + $0x78] sm:$0xff]
        %v3148 = vld [vmem:[%s6] sm:$0x3]
        %v3150 = vlaneseq
        %v3151 = vshrl.u32 %v3150, 7
        %v3152 = vsub.s32 0, %v3151
        %v3153 = vrot.slane %v3148, %v3152
        %v3154 = vlaneseq
        %v3155 = vshrl.u32 %v3154, 7
        %v3156 = vsub.s32 1, %v3155
        %v3157 = vrot.slane %v3148, %v3156
        %v3176 = vunpack.c.l.b16 %v3132
        %v3177 = vunpack.c.h.b16 %v3132
        %v3178 = vunpack.c.l.b16 %v3133
        %v3179 = vunpack.c.h.b16 %v3133
        %v3180 = vunpack.c.l.b16 %v3134
        %v3181 = vunpack.c.h.b16 %v3134
        %v3182 = vunpack.c.l.b16 %v3135
        %v3183 = vunpack.c.h.b16 %v3135
        %v3184 = vunpack.c.l.b16 %v3136
        %v3185 = vunpack.c.h.b16 %v3136
        %v3186 = vunpack.c.l.b16 %v3137
        %v3187 = vunpack.c.h.b16 %v3137
        %v3188 = vunpack.c.l.b16 %v3138
        %v3189 = vunpack.c.h.b16 %v3138
        %v3190 = vunpack.c.l.b16 %v3139
        %v3191 = vunpack.c.h.b16 %v3139
        %v3192 = vunpack.c.l.b16 %v3140
        %v3193 = vunpack.c.h.b16 %v3140
        %v3194 = vunpack.c.l.b16 %v3141
        %v3195 = vunpack.c.h.b16 %v3141
        %v3196 = vunpack.c.l.b16 %v3142
        %v3197 = vunpack.c.h.b16 %v3142
        %v3198 = vunpack.c.l.b16 %v3143
        %v3199 = vunpack.c.h.b16 %v3143
        %v3200 = vunpack.c.l.b16 %v3144
        %v3201 = vunpack.c.h.b16 %v3144
        %v3202 = vunpack.c.l.b16 %v3145
        %v3203 = vunpack.c.h.b16 %v3145
        %v3204 = vunpack.c.l.b16 %v3146
        %v3205 = vunpack.c.h.b16 %v3146
        %v3206 = vunpack.c.l.b16 %v3147
        %v3207 = vunpack.c.h.b16 %v3147
        %v3208 = vpack.c.b16 %v3178, %v3176
        %v3209 = vpack.c.b16 %v3179, %v3177
        %v3210 = vpack.c.b16 %v3182, %v3180
        %v3211 = vpack.c.b16 %v3183, %v3181
        %v3212 = vpack.c.b16 %v3186, %v3184
        %v3213 = vpack.c.b16 %v3187, %v3185
        %v3214 = vpack.c.b16 %v3190, %v3188
        %v3215 = vpack.c.b16 %v3191, %v3189
        %v3216 = vpack.c.b16 %v3194, %v3192
        %v3217 = vpack.c.b16 %v3195, %v3193
        %v3218 = vpack.c.b16 %v3198, %v3196
        %v3219 = vpack.c.b16 %v3199, %v3197
        %v3220 = vpack.c.b16 %v3202, %v3200
        %v3221 = vpack.c.b16 %v3203, %v3201
        %v3222 = vpack.c.b16 %v3206, %v3204
        %v3223 = vpack.c.b16 %v3207, %v3205
        %3240 = vmatprep.subr.bf16.mxu0 %v3209
        %3241 = vmatpush1.bf16.msra.mxu0 %v3208
        %3242 = vmatprep.subr.bf16.mxu0 %v3211
        %3243 = vmatpush1.bf16.msra.mxu0 %v3210
        %3244 = vmatprep.subr.bf16.mxu0 %v3213
        %3245 = vmatpush1.bf16.msra.mxu0 %v3212
        %3246 = vmatprep.subr.bf16.mxu0 %v3215
        %3247 = vmatpush1.bf16.msra.mxu0 %v3214
        %3248 = vmatprep.subr.bf16.mxu0 %v3217
        %3249 = vmatpush1.bf16.msra.mxu0 %v3216
        %3250 = vmatprep.subr.bf16.mxu0 %v3219
        %3251 = vmatpush1.bf16.msra.mxu0 %v3218
        %3252 = vmatprep.subr.bf16.mxu0 %v3221
        %3253 = vmatpush1.bf16.msra.mxu0 %v3220
        %3254 = vmatprep.subr.bf16.mxu0 %v3223
        %3255 = vmatpush1.bf16.msra.mxu0 %v3222
        %3256 = vmatprep.subr.bf16.mxu0 0
        %3257 = vmatpush1.bf16.msra.mxu0 0
        %3258 = vmatprep.subr.bf16.mxu0 0
        %3259 = vmatpush1.bf16.msra.mxu0 0
        %3260 = vmatprep.subr.bf16.mxu0 0
        %3261 = vmatpush1.bf16.msra.mxu0 0
        %3262 = vmatprep.subr.bf16.mxu0 0
        %3263 = vmatpush1.bf16.msra.mxu0 0
        %3264 = vmatprep.subr.bf16.mxu0 0
        %3265 = vmatpush1.bf16.msra.mxu0 0
        %3266 = vmatprep.subr.bf16.mxu0 0
        %3267 = vmatpush1.bf16.msra.mxu0 0
        %3268 = vmatprep.subr.bf16.mxu0 0
        %3269 = vmatpush1.bf16.msra.mxu0 0
        %3270 = vmatprep.subr.bf16.mxu0 0
        %3271 = vmatpush1.bf16.msra.mxu0 0
        %3272 = vmatprep.mubr.bf16.mxu0 0
        %3273 = vmatmul.mubr.bf16.gmra.mrb[0].mxu0 %v3128
        %v3274 = vpop.f32.mrb[0].mxu0
        %v3275 = vadd.f32 %v3153, %v3274
        %v3276 = vpop.f32.mrb[0].mxu0
        %v3277 = vadd.f32 %v3157, %v3276
        %v3278 = vpop.f32.mrb[0].mxu0
        %v3279 = vadd.f32 %v3153, %v3278
        %v3280 = vpop.f32.mrb[0].mxu0
        %v3281 = vadd.f32 %v3157, %v3280
        %3282 = vmatprep.mubr.bf16.mxu0 0
        %3283 = vmatmul.mubr.bf16.gmra.mrb[0].mxu0 %v3129
        %v3284 = vpop.f32.mrb[0].mxu0
        %v3285 = vadd.f32 %v3153, %v3284
        %v3286 = vpop.f32.mrb[0].mxu0
        %v3287 = vadd.f32 %v3157, %v3286
        %v3288 = vpop.f32.mrb[0].mxu0
        %v3289 = vadd.f32 %v3153, %v3288
        %v3290 = vpop.f32.mrb[0].mxu0
        %v3291 = vadd.f32 %v3157, %v3290
        %3292 = vmatprep.mubr.bf16.mxu0 0
        %3293 = vmatmul.mubr.bf16.gmra.mrb[0].mxu0 %v3130
        %v3294 = vpop.f32.mrb[0].mxu0
        %v3295 = vadd.f32 %v3153, %v3294
        %v3296 = vpop.f32.mrb[0].mxu0
        %v3297 = vadd.f32 %v3157, %v3296
        %v3298 = vpop.f32.mrb[0].mxu0
        %v3299 = vadd.f32 %v3153, %v3298
        %v3300 = vpop.f32.mrb[0].mxu0
        %v3301 = vadd.f32 %v3157, %v3300
        %3302 = vmatprep.mubr.bf16.mxu0 0
        %3303 = vmatmul.mubr.bf16.gmra.mrb[0].mxu0 %v3131
        %v3304 = vpop.f32.mrb[0].mxu0
        %v3305 = vadd.f32 %v3153, %v3304
        %v3306 = vpop.f32.mrb[0].mxu0
        %v3307 = vadd.f32 %v3157, %v3306
        %v3308 = vpop.f32.mrb[0].mxu0
        %v3309 = vadd.f32 %v3153, %v3308
        %v3310 = vpop.f32.mrb[0].mxu0
        %v3311 = vadd.f32 %v3157, %v3310
        %3312 = vdwg.mxu0
        %v3313 = vmax.f32 %v3275, 0.0
        %v3314 = vmax.f32 %v3277, 0.0
        %v3315 = vmax.f32 %v3279, 0.0
        %v3316 = vmax.f32 %v3281, 0.0
        %v3317 = vmax.f32 %v3285, 0.0
        %v3318 = vmax.f32 %v3287, 0.0
        %v3319 = vmax.f32 %v3289, 0.0
        %v3320 = vmax.f32 %v3291, 0.0
        %v3321 = vmax.f32 %v3295, 0.0
        %v3322 = vmax.f32 %v3297, 0.0
        %v3323 = vmax.f32 %v3299, 0.0
        %v3324 = vmax.f32 %v3301, 0.0
        %v3325 = vmax.f32 %v3305, 0.0
        %v3326 = vmax.f32 %v3307, 0.0
        %v3327 = vmax.f32 %v3309, 0.0
        %v3328 = vmax.f32 %v3311, 0.0
        %v3329 = vpack.c.bf16 %v3315, %v3313
        %v3330 = vpack.c.bf16 %v3316, %v3314
        %v3331 = vpack.c.bf16 %v3319, %v3317
        %v3332 = vpack.c.bf16 %v3320, %v3318
        %v3333 = vpack.c.bf16 %v3323, %v3321
        %v3334 = vpack.c.bf16 %v3324, %v3322
        %v3335 = vpack.c.bf16 %v3327, %v3325
        %v3336 = vpack.c.bf16 %v3328, %v3326
        %v3337 = vld [vmem:[%s7] sm:$0xf]
        %v3338 = vld [vmem:[%s7 + $0x4] sm:$0xf]
        %v3339 = vld [vmem:[%s7 + $0x8] sm:$0xf]
        %v3340 = vld [vmem:[%s7 + $0xc] sm:$0xf]
        %v3341 = vld [vmem:[%s7 + $0x10] sm:$0xf]
        %v3342 = vld [vmem:[%s7 + $0x14] sm:$0xf]
        %v3343 = vld [vmem:[%s7 + $0x18] sm:$0xf]
        %v3344 = vld [vmem:[%s7 + $0x1c] sm:$0xf]
        %v3345 = vld [vmem:[%s7 + $0x20] sm:$0xf]
        %v3346 = vld [vmem:[%s7 + $0x24] sm:$0xf]
        %v3347 = vld [vmem:[%s7 + $0x28] sm:$0xf]
        %v3348 = vld [vmem:[%s7 + $0x2c] sm:$0xf]
        %v3349 = vld [vmem:[%s7 + $0x30] sm:$0xf]
        %v3350 = vld [vmem:[%s7 + $0x34] sm:$0xf]
        %v3351 = vld [vmem:[%s7 + $0x38] sm:$0xf]
        %v3352 = vld [vmem:[%s7 + $0x3c] sm:$0xf]
        %v3353 = vld [vmem:[%s7 + $0x40] sm:$0xf]
        %v3354 = vld [vmem:[%s7 + $0x44] sm:$0xf]
        %v3355 = vld [vmem:[%s7 + $0x48] sm:$0xf]
        %v3356 = vld [vmem:[%s7 + $0x4c] sm:$0xf]
        %v3357 = vld [vmem:[%s7 + $0x50] sm:$0xf]
        %v3358 = vld [vmem:[%s7 + $0x54] sm:$0xf]
        %v3359 = vld [vmem:[%s7 + $0x58] sm:$0xf]
        %v3360 = vld [vmem:[%s7 + $0x5c] sm:$0xf]
        %v3361 = vld [vmem:[%s7 + $0x60] sm:$0xf]
        %v3362 = vld [vmem:[%s7 + $0x64] sm:$0xf]
        %v3363 = vld [vmem:[%s7 + $0x68] sm:$0xf]
        %v3364 = vld [vmem:[%s7 + $0x6c] sm:$0xf]
        %v3365 = vld [vmem:[%s7 + $0x70] sm:$0xf]
        %v3366 = vld [vmem:[%s7 + $0x74] sm:$0xf]
        %v3367 = vld [vmem:[%s7 + $0x78] sm:$0xf]
        %v3368 = vld [vmem:[%s7 + $0x7c] sm:$0xf]
        %v3369 = vld [vmem:[%s8] sm:$0x1]
        %v3371 = vlaneseq
        %v3372 = vshrl.u32 %v3371, 7
        %v3373 = vsub.s32 0, %v3372
        %v3374 = vrot.slane %v3369, %v3373
        %v3408 = vunpack.c.l.b16 %v3337
        %v3409 = vunpack.c.l.b16 %v3338
        %v3410 = vunpack.c.l.b16 %v3339
        %v3411 = vunpack.c.l.b16 %v3340
        %v3412 = vunpack.c.l.b16 %v3341
        %v3413 = vunpack.c.l.b16 %v3342
        %v3414 = vunpack.c.l.b16 %v3343
        %v3415 = vunpack.c.l.b16 %v3344
        %v3416 = vunpack.c.l.b16 %v3345
        %v3417 = vunpack.c.l.b16 %v3346
        %v3418 = vunpack.c.l.b16 %v3347
        %v3419 = vunpack.c.l.b16 %v3348
        %v3420 = vunpack.c.l.b16 %v3349
        %v3421 = vunpack.c.l.b16 %v3350
        %v3422 = vunpack.c.l.b16 %v3351
        %v3423 = vunpack.c.l.b16 %v3352
        %v3424 = vunpack.c.l.b16 %v3353
        %v3425 = vunpack.c.l.b16 %v3354
        %v3426 = vunpack.c.l.b16 %v3355
        %v3427 = vunpack.c.l.b16 %v3356
        %v3428 = vunpack.c.l.b16 %v3357
        %v3429 = vunpack.c.l.b16 %v3358
        %v3430 = vunpack.c.l.b16 %v3359
        %v3431 = vunpack.c.l.b16 %v3360
        %v3432 = vunpack.c.l.b16 %v3361
        %v3433 = vunpack.c.l.b16 %v3362
        %v3434 = vunpack.c.l.b16 %v3363
        %v3435 = vunpack.c.l.b16 %v3364
        %v3436 = vunpack.c.l.b16 %v3365
        %v3437 = vunpack.c.l.b16 %v3366
        %v3438 = vunpack.c.l.b16 %v3367
        %v3439 = vunpack.c.l.b16 %v3368
        %v3440 = vpack.c.b16 %v3409, %v3408
        %v3441 = vpack.c.b16 %v3411, %v3410
        %v3442 = vpack.c.b16 %v3413, %v3412
        %v3443 = vpack.c.b16 %v3415, %v3414
        %v3444 = vpack.c.b16 %v3417, %v3416
        %v3445 = vpack.c.b16 %v3419, %v3418
        %v3446 = vpack.c.b16 %v3421, %v3420
        %v3447 = vpack.c.b16 %v3423, %v3422
        %v3448 = vpack.c.b16 %v3425, %v3424
        %v3449 = vpack.c.b16 %v3427, %v3426
        %v3450 = vpack.c.b16 %v3429, %v3428
        %v3451 = vpack.c.b16 %v3431, %v3430
        %v3452 = vpack.c.b16 %v3433, %v3432
        %v3453 = vpack.c.b16 %v3435, %v3434
        %v3454 = vpack.c.b16 %v3437, %v3436
        %v3455 = vpack.c.b16 %v3439, %v3438
        %3472 = vmatprep.subr.bf16.mxu0 0
        %3473 = vmatpush1.bf16.msra.mxu0 %v3440
        %3474 = vmatprep.subr.bf16.mxu0 0
        %3475 = vmatpush1.bf16.msra.mxu0 %v3441
        %3476 = vmatprep.subr.bf16.mxu0 0
        %3477 = vmatpush1.bf16.msra.mxu0 %v3442
        %3478 = vmatprep.subr.bf16.mxu0 0
        %3479 = vmatpush1.bf16.msra.mxu0 %v3443
        %3480 = vmatprep.subr.bf16.mxu0 0
        %3481 = vmatpush1.bf16.msra.mxu0 %v3444
        %3482 = vmatprep.subr.bf16.mxu0 0
        %3483 = vmatpush1.bf16.msra.mxu0 %v3445
        %3484 = vmatprep.subr.bf16.mxu0 0
        %3485 = vmatpush1.bf16.msra.mxu0 %v3446
        %3486 = vmatprep.subr.bf16.mxu0 0
        %3487 = vmatpush1.bf16.msra.mxu0 %v3447
        %3488 = vmatprep.subr.bf16.mxu0 0
        %3489 = vmatpush1.bf16.msra.mxu0 %v3448
        %3490 = vmatprep.subr.bf16.mxu0 0
        %3491 = vmatpush1.bf16.msra.mxu0 %v3449
        %3492 = vmatprep.subr.bf16.mxu0 0
        %3493 = vmatpush1.bf16.msra.mxu0 %v3450
        %3494 = vmatprep.subr.bf16.mxu0 0
        %3495 = vmatpush1.bf16.msra.mxu0 %v3451
        %3496 = vmatprep.subr.bf16.mxu0 0
        %3497 = vmatpush1.bf16.msra.mxu0 %v3452
        %3498 = vmatprep.subr.bf16.mxu0 0
        %3499 = vmatpush1.bf16.msra.mxu0 %v3453
        %3500 = vmatprep.subr.bf16.mxu0 0
        %3501 = vmatpush1.bf16.msra.mxu0 %v3454
        %3502 = vmatprep.subr.bf16.mxu0 0
        %3503 = vmatpush1.bf16.msra.mxu0 %v3455
        %3504 = vmatprep.mubr.bf16.mxu0 %v3330
        %3505 = vmatmul.mubr.bf16.gmra.mrb[0].mxu0 %v3329
        %v3506 = vpop.f32.mrb[0].mxu0
        %v3507 = vadd.f32 %v3374, %v3506
        %v3508 = vpop.f32.mrb[0].mxu0
        %v3509 = vpop.f32.mrb[0].mxu0
        %v3510 = vadd.f32 %v3374, %v3509
        %v3511 = vpop.f32.mrb[0].mxu0
        %3512 = vmatprep.mubr.bf16.mxu0 %v3332
        %3513 = vmatmul.mubr.bf16.gmra.mrb[0].mxu0 %v3331
        %v3514 = vpop.f32.mrb[0].mxu0
        %v3515 = vadd.f32 %v3374, %v3514
        %v3516 = vpop.f32.mrb[0].mxu0
        %v3517 = vpop.f32.mrb[0].mxu0
        %v3518 = vadd.f32 %v3374, %v3517
        %v3519 = vpop.f32.mrb[0].mxu0
        %3520 = vmatprep.mubr.bf16.mxu0 %v3334
        %3521 = vmatmul.mubr.bf16.gmra.mrb[0].mxu0 %v3333
        %v3522 = vpop.f32.mrb[0].mxu0
        %v3523 = vadd.f32 %v3374, %v3522
        %v3524 = vpop.f32.mrb[0].mxu0
        %v3525 = vpop.f32.mrb[0].mxu0
        %v3526 = vadd.f32 %v3374, %v3525
        %v3527 = vpop.f32.mrb[0].mxu0
        %3528 = vmatprep.mubr.bf16.mxu0 %v3336
        %3529 = vmatmul.mubr.bf16.gmra.mrb[0].mxu0 %v3335
        %v3530 = vpop.f32.mrb[0].mxu0
        %v3531 = vadd.f32 %v3374, %v3530
        %v3532 = vpop.f32.mrb[0].mxu0
        %v3533 = vpop.f32.mrb[0].mxu0
        %v3534 = vadd.f32 %v3374, %v3533
        %v3535 = vpop.f32.mrb[0].mxu0
        %3536 = vdwg.mxu0
        %3537 = vst [vmem:[%s388] sm:$0xff] %v3507
        %3538 = vst [vmem:[%s388 + $0x8] sm:$0xff] %v3510
        %3539 = vst [vmem:[%s388 + $0x10] sm:$0xff] %v3515
        %3540 = vst [vmem:[%s388 + $0x18] sm:$0xff] %v3518
        %3541 = vst [vmem:[%s388 + $0x20] sm:$0xff] %v3523
        %3542 = vst [vmem:[%s388 + $0x28] sm:$0xff] %v3526
        %3543 = vst [vmem:[%s388 + $0x30] sm:$0xff] %v3531
        %3544 = vst [vmem:[%s388 + $0x38] sm:$0xff] %v3534
        %s3545 = sand.u32 %s222, 1
        %s3546 = sand.u32 %s222, 1
        %s3547 = smul.addr %s3546, 64
        %s3548 = scalar_lea.vmem [#allocation4], %s3547
        // Predicated region
        $region95: #{lstm_q_forward.1} parent=89 // pred_check
          %p3549 = pneg %p232
        $region96: #{lstm_q_forward.1} parent=89 // pred_check_branch
          %3551 = sbr.rel (%p3549) target = $region98
        $region97: #{lstm_q_forward.1} parent=89 // pred_region
          %s3552 = smul.addr %s20, 8
          %s3553 = scalar_lea.vmem %s9, %s3552
          // Predicated region
          $region99: #{lstm_q_forward.1} parent=97 // pred_check
            _
          $region100: #{lstm_q_forward.1} parent=97 // pred_check_branch
            %3555 = sbr.rel (0) target = $region102
          $region101: #{lstm_q_forward.1} parent=97 // pred_region
            // Predicated region
            $region103: #{lstm_q_forward.1} parent=101 // pred_check
              _
            $region104: #{lstm_q_forward.1} parent=101 // pred_check_branch
              %3557 = sbr.rel (0) target = $region106
            $region105: #{lstm_q_forward.1} parent=101 // pred_region
              // Predicated region
              $region118: #{lstm_q_forward.1} parent=105 // pred_check
                _
              $region119: #{lstm_q_forward.1} parent=105 // pred_check_branch
                %3586 = sbr.rel (0) target = $region121
              $region120: #{lstm_q_forward.1} parent=105 // pred_region
                loop: start=0, step=1, limit=1
                $region122: #{lstm_q_forward.1} parent=120 // loop_pre_header
                  _
                $region123: #{lstm_q_forward.1} parent=120 // loop_header
                  %s3588 = sphi 0, %s3592
                  %p3589 = scmp.ge.s32.totalorder %s3588, 1
                  %s3593 = sphi %s3548, %s3548
                  %s3594 = sphi %s3553, %s3553
                $region124: #{lstm_q_forward.1} parent=120 // loop_header_branch
                  %3591 = sbr.rel (%p3589) target = $region128
                $region125: #{lstm_q_forward.1} parent=120 // loop_body
                  %v3595 = vld [vmem:[%s3593] sm:$0xff]
                  %3596 = vst [vmem:[%s3594] sm:$0xff] %v3595
                  %v3597 = vld [vmem:[%s3593 + $0x8] sm:$0xff]
                  %3598 = vst [vmem:[%s3594 + $0x10] sm:$0xff] %v3597
                  %v3599 = vld [vmem:[%s3593 + $0x10] sm:$0xff]
                  %3600 = vst [vmem:[%s3594 + $0x20] sm:$0xff] %v3599
                  %v3601 = vld [vmem:[%s3593 + $0x18] sm:$0xff]
                  %3602 = vst [vmem:[%s3594 + $0x30] sm:$0xff] %v3601
                  %v3603 = vld [vmem:[%s3593 + $0x20] sm:$0xff]
                  %3604 = vst [vmem:[%s3594 + $0x40] sm:$0xff] %v3603
                  %v3605 = vld [vmem:[%s3593 + $0x28] sm:$0xff]
                  %3606 = vst [vmem:[%s3594 + $0x50] sm:$0xff] %v3605
                  %v3607 = vld [vmem:[%s3593 + $0x30] sm:$0xff]
                  %3608 = vst [vmem:[%s3594 + $0x60] sm:$0xff] %v3607
                  %v3609 = vld [vmem:[%s3593 + $0x38] sm:$0xff]
                  %3610 = vst [vmem:[%s3594 + $0x70] sm:$0xff] %v3609
                $region126: #{lstm_q_forward.1} parent=120 // loop_footer
                  %s3592 = sadd.s32 1, %s3588
                $region127: #{lstm_q_forward.1} parent=120 // loop_footer_branch
                  %3587 = sbr.rel target = $region123
                $region128: #{lstm_q_forward.1} parent=120 // loop_exit
                  _
              $region121: #{lstm_q_forward.1} parent=105 // pred_fallthru
                _
              // Predicated region
              $region129: #{lstm_q_forward.1} parent=105 // pred_check
                _
              $region130: #{lstm_q_forward.1} parent=105 // pred_check_branch
                %3612 = sbr.rel target = $region132
              $region131: #{lstm_q_forward.1} parent=105 // pred_region
                _
              $region132: #{lstm_q_forward.1} parent=105 // pred_fallthru
                _
            $region106: #{lstm_q_forward.1} parent=101 // pred_fallthru
              _
            // Predicated region
            $region107: #{lstm_q_forward.1} parent=101 // pred_check
              _
            $region108: #{lstm_q_forward.1} parent=101 // pred_check_branch
              %3559 = sbr.rel target = $region110
            $region109: #{lstm_q_forward.1} parent=101 // pred_region
              loop: start=0, step=1, limit=1
              $region111: #{lstm_q_forward.1} parent=109 // loop_pre_header
                _
              $region112: #{lstm_q_forward.1} parent=109 // loop_header
                %s3562 = sphi 0, %s3566
                %p3563 = scmp.ge.s32.totalorder %s3562, 1
                %s3567 = sphi %s3548, %s3548
                %s3568 = sphi %s3553, %s3553
              $region113: #{lstm_q_forward.1} parent=109 // loop_header_branch
                %3565 = sbr.rel (%p3563) target = $region117
              $region114: #{lstm_q_forward.1} parent=109 // loop_body
                %v3569 = vld [vmem:[%s3567] sm:$0xff]
                %3570 = vst [vmem:[%s3568] sm:$0xff] %v3569
                %v3571 = vld [vmem:[%s3567 + $0x8] sm:$0xff]
                %3572 = vst [vmem:[%s3568 + $0x10] sm:$0xff] %v3571
                %v3573 = vld [vmem:[%s3567 + $0x10] sm:$0xff]
                %3574 = vst [vmem:[%s3568 + $0x20] sm:$0xff] %v3573
                %v3575 = vld [vmem:[%s3567 + $0x18] sm:$0xff]
                %3576 = vst [vmem:[%s3568 + $0x30] sm:$0xff] %v3575
                %v3577 = vld [vmem:[%s3567 + $0x20] sm:$0xff]
                %3578 = vst [vmem:[%s3568 + $0x40] sm:$0xff] %v3577
                %v3579 = vld [vmem:[%s3567 + $0x28] sm:$0xff]
                %3580 = vst [vmem:[%s3568 + $0x50] sm:$0xff] %v3579
                %v3581 = vld [vmem:[%s3567 + $0x30] sm:$0xff]
                %3582 = vst [vmem:[%s3568 + $0x60] sm:$0xff] %v3581
                %v3583 = vld [vmem:[%s3567 + $0x38] sm:$0xff]
                %3584 = vst [vmem:[%s3568 + $0x70] sm:$0xff] %v3583
              $region115: #{lstm_q_forward.1} parent=109 // loop_footer
                %s3566 = sadd.s32 1, %s3562
              $region116: #{lstm_q_forward.1} parent=109 // loop_footer_branch
                %3561 = sbr.rel target = $region112
              $region117: #{lstm_q_forward.1} parent=109 // loop_exit
                _
            $region110: #{lstm_q_forward.1} parent=101 // pred_fallthru
              _
          $region102: #{lstm_q_forward.1} parent=97 // pred_fallthru
            _
          %3613 = vnop
        $region98: #{lstm_q_forward.1} parent=89 // pred_fallthru
          _
      $region90: #{lstm_q_forward.1} parent=5 // pred_fallthru
        _
      %p3614 = scmp.le.s32.totalorder 2, %s15
      // Predicated region
      $region133: #{lstm_q_forward.1} parent=5 // pred_check
        %p3615 = pneg %p3614
      $region134: #{lstm_q_forward.1} parent=5 // pred_check_branch
        %3617 = sbr.rel (%p3615) target = $region136
      $region135: #{lstm_q_forward.1} parent=5 // pred_region
        %s3618 = ssub.s32 %s15, 2
        // Predicated region
        $region137: #{lstm_q_forward.1} parent=135 // pred_check
          %p3619 = pneg %p238
        $region138: #{lstm_q_forward.1} parent=135 // pred_check_branch
          %3621 = sbr.rel (%p3619) target = $region140
        $region139: #{lstm_q_forward.1} parent=135 // pred_region
          %s3622 = sand.u32 %s223, 1
          %s3623 = sand.u32 %s223, 1
          %s3624 = smul.addr %s3623, 64
          %s3625 = scalar_lea.vmem [#allocation4], %s3624
        $region140: #{lstm_q_forward.1} parent=135 // pred_fallthru
          _
      $region136: #{lstm_q_forward.1} parent=5 // pred_fallthru
        _
    $region6: #{lstm_q_forward.1} parent=1 // loop_footer
      %s19 = sadd.s32 1, %s15
    $region7: #{lstm_q_forward.1} parent=1 // loop_footer_branch
      %14 = sbr.rel target = $region3
    $region8: #{lstm_q_forward.1} parent=1 // loop_exit
      _

</llo_original>
